<compile_context>
chip_gen: v7x
topology: tpu7x:2x2x1
jax: 0.10.0
libtpu: 0.0.40
codegen_flags: <defaults>
</compile_context>

<pallas_src>
import functools
import inspect

import jax
import jax.numpy as jnp
from jax import lax
from jax.experimental import pallas as pl
from jax.experimental.pallas import tpu as pltpu

N_FEATURES = 39
N_FEATURES_PAD = 128         # 39 -> 128, zero-filled (lane-aligned K for matmul 1)
HIDDEN = 1000
HIDDEN_PAD = 1024            # 1000 -> 1024, zero-filled
LATENT_DIM = 10
N_CLASSES = 2
HEAD_PAD = 128               # fused head width: [0:10]=gauss, [10:12]=cat, rest zero


def _round_up(x, m):
    return (x + m - 1) // m * m


# Single-buffer the VMEM-resident weights (their block index never changes, so a
# second pipeline buffer is pure VMEM waste).  Guarded so the script still runs
# on jax versions without the pipeline_mode kwarg.
try:
    _HAS_BUFFERED = (hasattr(pl, "Buffered")
                     and "pipeline_mode" in inspect.signature(pl.BlockSpec).parameters)
except (TypeError, ValueError):
    _HAS_BUFFERED = False


def _resident_spec(block_shape):
    """BlockSpec for a weight/bias that stays VMEM-resident across the whole grid."""
    index_map = lambda i: (0, 0)
    if _HAS_BUFFERED:
        return pl.BlockSpec(block_shape, index_map, pipeline_mode=pl.Buffered(1))
    return pl.BlockSpec(block_shape, index_map)


def _chip_config():
    """Chip-aware batch tile + scoped VMEM budget."""
    kind = jax.devices()[0].device_kind.lower()
    if "v7" in kind:
        # 64 MiB physical VMEM per TC, 2 TCs: moderate tile, stay well under physical.
        return dict(block_b=512, vmem=40 << 20, two_core=True)
    if "v6" in kind:
        # 128 MiB VMEM, ~0.35 us/step overhead dominates small tiles: go big.
        return dict(block_b=1024, vmem=64 << 20, two_core=False)
    if "v5e" in kind or "v5 lite" in kind:
        # 197 TF/s -> step overhead is noise; bigger tiles only add spill pressure.
        return dict(block_b=256, vmem=32 << 20, two_core=False)
    return dict(block_b=256, vmem=None, two_core=False)


def encoder_kernel(x_ref, w1_ref, b1_ref, w2_ref, b2_ref, wh_ref, bh_ref, out_ref):
    """One batch tile: two hidden layers + fused (gauss | cat) head, lane-dense store."""
    x = x_ref[...].astype(jnp.bfloat16)                              # (TB, 128)

    # ---- Linear(128 -> 1024) + ReLU  (bf16 MXU inputs, f32 accumulate) ----
    h1 = jnp.dot(x, w1_ref[...], preferred_element_type=jnp.float32) + b1_ref[...]
    h1 = jnp.maximum(h1, 0.0).astype(jnp.bfloat16)                   # early bf16 cast

    # ---- Linear(1024 -> 1024) + ReLU ----
    h2 = jnp.dot(h1, w2_ref[...], preferred_element_type=jnp.float32) + b2_ref[...]
    h2 = jnp.maximum(h2, 0.0).astype(jnp.bfloat16)                   # early bf16 cast

    # ---- Fused head: (1024 -> 128) = [lin_D | lin_D_cat | zero pad] ----
    head = jnp.dot(h2, wh_ref[...], preferred_element_type=jnp.float32) + bh_ref[...]

    # 2-class softmax on lanes [10, 12) via pairwise sigmoid:
    #   p_c = sigmoid(l_c - l_other).  No cross-lane max/sum reductions, no -inf.
    col = lax.broadcasted_iota(jnp.int32, head.shape, 1)
    is_cat = jnp.logical_and(col >= LATENT_DIM, col < LATENT_DIM + N_CLASSES)
    up = pltpu.roll(head, shift=HEAD_PAD - 1, axis=1)   # lane i <- head lane i+1
    down = pltpu.roll(head, shift=1, axis=1)            # lane i <- head lane i-1
    other = jnp.where(col == LATENT_DIM, up, down)      # the "other" cat logit
    d = jnp.where(is_cat, head - other, 0.0)            # 0 outside cat lanes (no inf)
    z_cat = 1.0 / (1.0 + jnp.exp(-d))

    out_ref[...] = jnp.where(is_cat, z_cat, head).astype(out_ref.dtype)


@functools.partial(jax.jit, static_argnames=("block_b",))
def encoder_forward(x, params, block_b=None):
    """x: (B, 39) float32; params: packed dict (see pack_params). Returns (z_gauss, z_cat)."""
    B = x.shape[0]
    cfg = _chip_config()
    bb = block_b if block_b is not None else cfg["block_b"]

    tb = min(bb, _round_up(B, 8))                 # small B -> single small tile
    if cfg["two_core"] and B >= 512:
        # Ensure >= 2 grid steps so the 'parallel' batch axis shards across both TCs.
        tb = min(tb, max(128, _round_up(-(-B // 2), 128)))
    bp = _round_up(B, tb)

    # Pad batch to a multiple of tb and features 39 -> 128 (zero-filled).
    x = jnp.pad(x, ((0, bp - B), (0, N_FEATURES_PAD - N_FEATURES)))
    grid = (bp // tb,)

    flops = 2 * bp * (N_FEATURES_PAD * HIDDEN_PAD
                      + HIDDEN_PAD * HIDDEN_PAD
                      + HIDDEN_PAD * HEAD_PAD)
    bytes_accessed = (
        (params["w1"].size + params["w2"].size + params["wh"].size) * 2      # bf16 weights
        + (params["b1"].size + params["b2"].size + params["bh"].size) * 4    # f32 biases
        + bp * N_FEATURES_PAD * 4 + bp * HEAD_PAD * 4)                       # x in, out

    cp_kwargs = dict(dimension_semantics=("parallel",))
    if cfg["vmem"] is not None:
        cp_kwargs["vmem_limit_bytes"] = cfg["vmem"]

    out = pl.pallas_call(
        encoder_kernel,
        out_shape=jax.ShapeDtypeStruct((bp, HEAD_PAD), jnp.float32),
        grid=grid,
        in_specs=[
            pl.BlockSpec((tb, N_FEATURES_PAD), lambda i: (i, 0)),   # x tile
            _resident_spec((N_FEATURES_PAD, HIDDEN_PAD)),           # w1
            _resident_spec((1, HIDDEN_PAD)),                        # b1
            _resident_spec((HIDDEN_PAD, HIDDEN_PAD)),               # w2
            _resident_spec((1, HIDDEN_PAD)),                        # b2
            _resident_spec((HIDDEN_PAD, HEAD_PAD)),                 # fused head weight
            _resident_spec((1, HEAD_PAD)),                          # fused head bias
        ],
        out_specs=pl.BlockSpec((tb, HEAD_PAD), lambda i: (i, 0)),
        compiler_params=pltpu.CompilerParams(**cp_kwargs),
        cost_estimate=pl.CostEstimate(
            flops=flops,
            transcendentals=bp * HEAD_PAD,
            bytes_accessed=bytes_accessed),
    )(x, params["w1"], params["b1"], params["w2"], params["b2"],
      params["wh"], params["bh"])

    z_gauss = out[:B, :LATENT_DIM]
    z_cat = out[:B, LATENT_DIM:LATENT_DIM + N_CLASSES]
    return z_gauss, z_cat


def init_params(key):
    """Deterministic synthetic init (PyTorch-style uniform bounds), f32, PyTorch-T layout."""
    def linear(key, fan_in, fan_out):
        kw, kb = jax.random.split(key)
        bound = 1.0 / (fan_in ** 0.5)
        w = jax.random.uniform(kw, (fan_in, fan_out), jnp.float32, -bound, bound)  # = W.T
        b = jax.random.uniform(kb, (fan_out,), jnp.float32, -bound, bound)
        return w, b

    k1, k2, k3, k4 = jax.random.split(key, 4)
    w1, b1 = linear(k1, N_FEATURES, HIDDEN)
    w2, b2 = linear(k2, HIDDEN, HIDDEN)
    wd, bd = linear(k3, HIDDEN, LATENT_DIM)
    wc, bc = linear(k4, HIDDEN, N_CLASSES)
    return dict(w1=w1, b1=b1, w2=w2, b2=b2, wd=wd, bd=bd, wc=wc, bc=bc)


def pack_params(p):
    """Pad features 39->128 and hidden 1000->1024 with zeros, fuse the two heads into
    one (1024,128) weight, cast weights to bf16 (biases stay f32, shaped (1, N))."""
    w1 = jnp.zeros((N_FEATURES_PAD, HIDDEN_PAD), jnp.float32).at[:N_FEATURES, :HIDDEN].set(p["w1"])
    b1 = jnp.zeros((1, HIDDEN_PAD), jnp.float32).at[0, :HIDDEN].set(p["b1"])
    w2 = jnp.zeros((HIDDEN_PAD, HIDDEN_PAD), jnp.float32).at[:HIDDEN, :HIDDEN].set(p["w2"])
    b2 = jnp.zeros((1, HIDDEN_PAD), jnp.float32).at[0, :HIDDEN].set(p["b2"])

    wh = jnp.zeros((HIDDEN_PAD, HEAD_PAD), jnp.float32)
    wh = wh.at[:HIDDEN, :LATENT_DIM].set(p["wd"])
    wh = wh.at[:HIDDEN, LATENT_DIM:LATENT_DIM + N_CLASSES].set(p["wc"])
    bh = jnp.zeros((1, HEAD_PAD), jnp.float32)
    bh = bh.at[0, :LATENT_DIM].set(p["bd"])
    bh = bh.at[0, LATENT_DIM:LATENT_DIM + N_CLASSES].set(p["bc"])

    return dict(w1=w1.astype(jnp.bfloat16), b1=b1,
                w2=w2.astype(jnp.bfloat16), b2=b2,
                wh=wh.astype(jnp.bfloat16), bh=bh)


def reference_forward(x, p):
    """Pure-JAX reference emulating the kernel's precision (bf16 operands, f32 accum)."""
    def mm(a, w):
        return jnp.dot(a.astype(jnp.bfloat16), w.astype(jnp.bfloat16),
                       preferred_element_type=jnp.float32)
    h1 = jnp.maximum(mm(x, p["w1"]) + p["b1"], 0.0)
    h2 = jnp.maximum(mm(h1, p["w2"]) + p["b2"], 0.0)
    z_gauss = mm(h2, p["wd"]) + p["bd"]
    z_cat = jax.nn.softmax(mm(h2, p["wc"]) + p["bc"], axis=-1)
    return z_gauss, z_cat


if __name__ == "__main__":
    key = jax.random.PRNGKey(0)
    kx, kp = jax.random.split(key)

    B = 8
    x = jax.random.normal(kx, (B, N_FEATURES), jnp.float32)
    raw_params = init_params(kp)
    packed_params = pack_params(raw_params)

    z_gauss, z_cat = encoder_forward(x, packed_params)
    jax.block_until_ready((z_gauss, z_cat))

    # Sanity check against a pure-JAX reference at matching (bf16-weight) precision.
    zg_ref, zc_ref = reference_forward(x, raw_params)
    assert z_gauss.shape == (B, LATENT_DIM) and z_cat.shape == (B, N_CLASSES)
    assert jnp.allclose(z_gauss, zg_ref, atol=5e-3, rtol=5e-3)
    assert jnp.allclose(z_cat, zc_ref, atol=5e-3, rtol=5e-3)
    assert jnp.allclose(jnp.sum(z_cat, axis=-1), 1.0, atol=1e-5)

    print("KERNEL_OK")
</pallas_src>

<mosaic_0001>
module attributes {stable_mosaic.version = 11 : i64} {
  func.func @encoder_kernel(%arg0: i32, %arg1: memref<8x128xf32, #tpu.memory_space<vmem>>, %arg2: memref<128x1024xbf16, #tpu.memory_space<vmem>>, %arg3: memref<1x1024xf32, #tpu.memory_space<vmem>>, %arg4: memref<1024x1024xbf16, #tpu.memory_space<vmem>>, %arg5: memref<1x1024xf32, #tpu.memory_space<vmem>>, %arg6: memref<1024x128xbf16, #tpu.memory_space<vmem>>, %arg7: memref<1x128xf32, #tpu.memory_space<vmem>>, %arg8: memref<8x128xf32, #tpu.memory_space<vmem>>) attributes {dimension_semantics = [#tpu.dimension_semantics<parallel>], iteration_bounds = array<i64: 1>, scalar_prefetch = 0 : i64, scratch_operands = 0 : i64, tpu.core_type = #tpu.core_type<tc>, window_params = [{transform_indices = @transform_0, window_bounds = array<i64: 8, 128>}, {pipeline_mode = #tpu.pipeline_mode<synchronous>, transform_indices = @transform_1, window_bounds = array<i64: 128, 1024>}, {pipeline_mode = #tpu.pipeline_mode<synchronous>, transform_indices = @transform_2, window_bounds = array<i64: 1, 1024>}, {pipeline_mode = #tpu.pipeline_mode<synchronous>, transform_indices = @transform_3, window_bounds = array<i64: 1024, 1024>}, {pipeline_mode = #tpu.pipeline_mode<synchronous>, transform_indices = @transform_4, window_bounds = array<i64: 1, 1024>}, {pipeline_mode = #tpu.pipeline_mode<synchronous>, transform_indices = @transform_5, window_bounds = array<i64: 1024, 128>}, {pipeline_mode = #tpu.pipeline_mode<synchronous>, transform_indices = @transform_6, window_bounds = array<i64: 1, 128>}, {transform_indices = @transform_7, window_bounds = array<i64: 8, 128>}]} {
    %c0 = arith.constant 0 : index
    %c0_0 = arith.constant 0 : index
    %0 = vector.load %arg1[%c0, %c0_0] : memref<8x128xf32, #tpu.memory_space<vmem>>, vector<8x128xf32>
    %1 = arith.truncf %0 : vector<8x128xf32> to vector<8x128xbf16>
    %c0_1 = arith.constant 0 : index
    %c0_2 = arith.constant 0 : index
    %2 = vector.load %arg2[%c0_1, %c0_2] : memref<128x1024xbf16, #tpu.memory_space<vmem>>, vector<128x1024xbf16>
    %cst = arith.constant dense<0.000000e+00> : vector<8x1024xf32>
    %3 = tpu.matmul %1, %2, %cst {dimension_numbers = #tpu.dot_dimension_numbers<[1], [0], [0], [1], [0, 0, 1, 1], [], []>} : vector<8x128xbf16>, vector<128x1024xbf16>, vector<8x1024xf32> -> vector<8x1024xf32>
    %c0_3 = arith.constant 0 : index
    %c0_4 = arith.constant 0 : index
    %4 = vector.load %arg3[%c0_3, %c0_4] : memref<1x1024xf32, #tpu.memory_space<vmem>>, vector<1x1024xf32>
    %5 = vector.broadcast %4 : vector<1x1024xf32> to vector<8x1024xf32>
    %6 = arith.addf %3, %5 : vector<8x1024xf32>
    %cst_5 = arith.constant 0.000000e+00 : f32
    %7 = vector.broadcast %cst_5 : f32 to vector<8x1024xf32>
    %8 = arith.maximumf %6, %7 : vector<8x1024xf32>
    %9 = arith.truncf %8 : vector<8x1024xf32> to vector<8x1024xbf16>
    %c0_6 = arith.constant 0 : index
    %c0_7 = arith.constant 0 : index
    %10 = vector.load %arg4[%c0_6, %c0_7] : memref<1024x1024xbf16, #tpu.memory_space<vmem>>, vector<1024x1024xbf16>
    %cst_8 = arith.constant dense<0.000000e+00> : vector<8x1024xf32>
    %11 = tpu.matmul %9, %10, %cst_8 {dimension_numbers = #tpu.dot_dimension_numbers<[1], [0], [0], [1], [0, 0, 1, 1], [], []>} : vector<8x1024xbf16>, vector<1024x1024xbf16>, vector<8x1024xf32> -> vector<8x1024xf32>
    %c0_9 = arith.constant 0 : index
    %c0_10 = arith.constant 0 : index
    %12 = vector.load %arg5[%c0_9, %c0_10] : memref<1x1024xf32, #tpu.memory_space<vmem>>, vector<1x1024xf32>
    %13 = vector.broadcast %12 : vector<1x1024xf32> to vector<8x1024xf32>
    %14 = arith.addf %11, %13 : vector<8x1024xf32>
    %cst_11 = arith.constant 0.000000e+00 : f32
    %15 = vector.broadcast %cst_11 : f32 to vector<8x1024xf32>
    %16 = arith.maximumf %14, %15 : vector<8x1024xf32>
    %17 = arith.truncf %16 : vector<8x1024xf32> to vector<8x1024xbf16>
    %c0_12 = arith.constant 0 : index
    %c0_13 = arith.constant 0 : index
    %18 = vector.load %arg6[%c0_12, %c0_13] : memref<1024x128xbf16, #tpu.memory_space<vmem>>, vector<1024x128xbf16>
    %cst_14 = arith.constant dense<0.000000e+00> : vector<8x128xf32>
    %19 = tpu.matmul %17, %18, %cst_14 {dimension_numbers = #tpu.dot_dimension_numbers<[1], [0], [0], [1], [0, 0, 1, 1], [], []>} : vector<8x1024xbf16>, vector<1024x128xbf16>, vector<8x128xf32> -> vector<8x128xf32>
    %c0_15 = arith.constant 0 : index
    %c0_16 = arith.constant 0 : index
    %20 = vector.load %arg7[%c0_15, %c0_16] : memref<1x128xf32, #tpu.memory_space<vmem>>, vector<1x128xf32>
    %21 = vector.broadcast %20 : vector<1x128xf32> to vector<8x128xf32>
    %22 = arith.addf %19, %21 : vector<8x128xf32>
    %23 = tpu.iota {dimensions = array<i32: 1>} : vector<8x128xi32>
    %c10_i32 = arith.constant 10 : i32
    %24 = vector.broadcast %c10_i32 : i32 to vector<8x128xi32>
    %25 = arith.cmpi sge, %23, %24 : vector<8x128xi32>
    %c12_i32 = arith.constant 12 : i32
    %26 = vector.broadcast %c12_i32 : i32 to vector<8x128xi32>
    %27 = arith.cmpi slt, %23, %26 : vector<8x128xi32>
    %28 = arith.andi %25, %27 : vector<8x128xi1>
    %c127_i32 = arith.constant 127 : i32
    %29 = tpu.dynamic_rotate %22 by %c127_i32 dim 1 : vector<8x128xf32>, i32 -> vector<8x128xf32>
    %c1_i32 = arith.constant 1 : i32
    %30 = tpu.dynamic_rotate %22 by %c1_i32 dim 1 : vector<8x128xf32>, i32 -> vector<8x128xf32>
    %c10_i32_17 = arith.constant 10 : i32
    %31 = vector.broadcast %c10_i32_17 : i32 to vector<8x128xi32>
    %32 = arith.cmpi eq, %23, %31 : vector<8x128xi32>
    %33 = arith.select %32, %29, %30 : vector<8x128xi1>, vector<8x128xf32>
    %34 = arith.subf %22, %33 : vector<8x128xf32>
    %cst_18 = arith.constant 0.000000e+00 : f32
    %35 = vector.broadcast %cst_18 : f32 to vector<8x128xf32>
    %36 = arith.select %28, %34, %35 : vector<8x128xi1>, vector<8x128xf32>
    %cst_19 = arith.constant 0.000000e+00 : f32
    %37 = vector.broadcast %cst_19 : f32 to vector<8x128xf32>
    %38 = arith.subf %37, %36 : vector<8x128xf32>
    %39 = math.exp %38 : vector<8x128xf32>
    %cst_20 = arith.constant 1.000000e+00 : f32
    %40 = vector.broadcast %cst_20 : f32 to vector<8x128xf32>
    %41 = arith.addf %40, %39 : vector<8x128xf32>
    %cst_21 = arith.constant 1.000000e+00 : f32
    %42 = vector.broadcast %cst_21 : f32 to vector<8x128xf32>
    %43 = arith.divf %42, %41 : vector<8x128xf32>
    %44 = arith.select %28, %43, %22 : vector<8x128xi1>, vector<8x128xf32>
    %c0_22 = arith.constant 0 : index
    %c0_23 = arith.constant 0 : index
    %45 = vector.load %arg8[%c0_22, %c0_23] : memref<8x128xf32, #tpu.memory_space<vmem>>, vector<8x128xf32>
    tpu.vector_store %arg8[%c0_22, %c0_23], %44 {strides = array<i32>} : memref<8x128xf32, #tpu.memory_space<vmem>>, vector<8x128xf32>,
    return
  }
  func.func @transform_0(%arg0: i32) -> (i32, i32) {
    %c0_i32 = arith.constant 0 : i32
    %c0_i32_0 = arith.constant 0 : i32
    return %arg0, %c0_i32 : i32, i32
  }
  func.func @transform_1(%arg0: i32) -> (i32, i32) {
    %c0_i32 = arith.constant 0 : i32
    %c0_i32_0 = arith.constant 0 : i32
    %c0_i32_1 = arith.constant 0 : i32
    return %c0_i32, %c0_i32_0 : i32, i32
  }
  func.func @transform_2(%arg0: i32) -> (i32, i32) {
    %c0_i32 = arith.constant 0 : i32
    %c0_i32_0 = arith.constant 0 : i32
    %c0_i32_1 = arith.constant 0 : i32
    return %c0_i32, %c0_i32_0 : i32, i32
  }
  func.func @transform_3(%arg0: i32) -> (i32, i32) {
    %c0_i32 = arith.constant 0 : i32
    %c0_i32_0 = arith.constant 0 : i32
    %c0_i32_1 = arith.constant 0 : i32
    return %c0_i32, %c0_i32_0 : i32, i32
  }
  func.func @transform_4(%arg0: i32) -> (i32, i32) {
    %c0_i32 = arith.constant 0 : i32
    %c0_i32_0 = arith.constant 0 : i32
    %c0_i32_1 = arith.constant 0 : i32
    return %c0_i32, %c0_i32_0 : i32, i32
  }
  func.func @transform_5(%arg0: i32) -> (i32, i32) {
    %c0_i32 = arith.constant 0 : i32
    %c0_i32_0 = arith.constant 0 : i32
    %c0_i32_1 = arith.constant 0 : i32
    return %c0_i32, %c0_i32_0 : i32, i32
  }
  func.func @transform_6(%arg0: i32) -> (i32, i32) {
    %c0_i32 = arith.constant 0 : i32
    %c0_i32_0 = arith.constant 0 : i32
    %c0_i32_1 = arith.constant 0 : i32
    return %c0_i32, %c0_i32_0 : i32, i32
  }
  func.func @transform_7(%arg0: i32) -> (i32, i32) {
    %c0_i32 = arith.constant 0 : i32
    %c0_i32_0 = arith.constant 0 : i32
    return %arg0, %c0_i32 : i32, i32
  }
}

</mosaic_0001>

<llo_original>
// kernel: encoder_forward.1
$region0: #{encoder_forward.1}
  #allocation0 [shape = 'u32[]', space=smem, size = 0x4, offset = 0x4, fixed_abs, tag = 'smem constant byte address 0x4 - core index']
  #allocation1 [shape = 'u32[144,128]{1,0:T(1,128)}', space=vmem, size = 0x12000, scoped, tag = 'internal scratch']
  %s0 = inlined_call_operand.vmem [shape: f32[8,128], index: 0, kind: input, shape index: {}]
  %s1 = inlined_call_operand.hbm [shape: bf16[128,1024], index: 1, kind: input, shape index: {}]
  %s2 = inlined_call_operand.hbm [shape: f32[1,1024], index: 2, kind: input, shape index: {}]
  %s3 = inlined_call_operand.hbm [shape: bf16[1024,1024], index: 3, kind: input, shape index: {}]
  %s4 = inlined_call_operand.hbm [shape: f32[1,1024], index: 4, kind: input, shape index: {}]
  %s5 = inlined_call_operand.hbm [shape: bf16[1024,128], index: 5, kind: input, shape index: {}]
  %s6 = inlined_call_operand.hbm [shape: f32[1,128], index: 6, kind: input, shape index: {}]
  %s7 = inlined_call_operand.vmem [shape: f32[8,128], index: 7, kind: output, shape index: {}]
  %s8 = sld [smem:[#allocation0]]
  $region62: #{encoder_forward.1} parent=0
    _
  %s10 = ssub.s32 1, %s8
  %s11 = scalar_select 0, %s10, %s8
  $region1: #{encoder_forward.1} parent=0
    #allocation2 [shape = 'u8[262144]{0}', space=vmem, size = 0x40000, scoped, tag = 'input window, operand 1, single buffered']
    #allocation3 [shape = 's32[1]{0}', space=sflag, size = 0x4, scoped, tag = 'scoped memory for encoder_forward.1']
    #allocation4 [shape = 'u8[4096]{0}', space=vmem, size = 0x1000, scoped, tag = 'input window, operand 2, single buffered']
    #allocation5 [shape = 's32[1]{0}', space=sflag, size = 0x4, scoped, tag = 'scoped memory for encoder_forward.1']
    #allocation6 [shape = 'u8[2097152]{0}', space=vmem, size = 0x200000, scoped, tag = 'input window, operand 3, single buffered']
    #allocation7 [shape = 'u8[4096]{0}', space=vmem, size = 0x1000, scoped, tag = 'input window, operand 4, single buffered']
    #allocation8 [shape = 's32[1]{0}', space=sflag, size = 0x4, scoped, tag = 'scoped memory for encoder_forward.1']
    #allocation9 [shape = 'u8[262144]{0}', space=vmem, size = 0x40000, scoped, tag = 'input window, operand 5, single buffered']
    #allocation10 [shape = 'u8[512]{0}', space=vmem, size = 0x400, scoped, tag = 'input window, operand 6, single buffered']
    #allocation11 [shape = 's32[1]{0}', space=sflag, size = 0x4, scoped, tag = 'scoped memory for encoder_forward.1']
    %12 = vsyncpa [#allocation3], 0
    %13 = vsyncpa [#allocation5], 0
    %14 = vsyncpa [#allocation8], 0
    %15 = vsyncpa [#allocation11], 0
    // Predicated region
    $region2: #{encoder_forward.1} parent=1 // pred_check
      _
    $region3: #{encoder_forward.1} parent=1 // pred_check_branch
      %17 = sbr.rel (0) target = $region5
    $region4: #{encoder_forward.1} parent=1 // pred_region
      _
    $region5: #{encoder_forward.1} parent=1 // pred_fallthru
      _
    // Predicated region
    $region6: #{encoder_forward.1} parent=1 // pred_check
      _
    $region7: #{encoder_forward.1} parent=1 // pred_check_branch
      %19 = sbr.rel (0) target = $region9
    $region8: #{encoder_forward.1} parent=1 // pred_region
      %s21 = ssub.s32 8192, 8192
      %22 = vsyncadd [#allocation3], %s21
      %s23 = sshll.u32 [#allocation2], 4
      %s24 = int_to_ptr.vmem [resolvable:$true] %s23
      %29 = dma.hbm_to_vmem [thread:$0]  %s1, 8192, %s24, [#allocation3], 512, 512, 32
    $region9: #{encoder_forward.1} parent=1 // pred_fallthru
      _
    // Predicated region
    $region10: #{encoder_forward.1} parent=1 // pred_check
      _
    $region11: #{encoder_forward.1} parent=1 // pred_check_branch
      %31 = sbr.rel (0) target = $region13
    $region12: #{encoder_forward.1} parent=1 // pred_region
      %s33 = ssub.s32 128, 128
      %34 = vsyncadd [#allocation5], %s33
      %s36 = sshll.u32 [#allocation4], 4
      %s37 = int_to_ptr.vmem [resolvable:$true] %s36
      %39 = dma.hbm_to_vmem [thread:$0]  %s2, 128, %s37, [#allocation5]
    $region13: #{encoder_forward.1} parent=1 // pred_fallthru
      _
    // Predicated region
    $region14: #{encoder_forward.1} parent=1 // pred_check
      _
    $region15: #{encoder_forward.1} parent=1 // pred_check_branch
      %41 = sbr.rel (0) target = $region17
    $region16: #{encoder_forward.1} parent=1 // pred_region
      %s43 = ssub.s32 65536, 65536
      %44 = vsyncadd [#allocation5], %s43
      %s45 = sshll.u32 [#allocation6], 4
      %s46 = int_to_ptr.vmem [resolvable:$true] %s45
      %51 = dma.hbm_to_vmem [thread:$0]  %s3, 65536, %s46, [#allocation5], 512, 512, 32
    $region17: #{encoder_forward.1} parent=1 // pred_fallthru
      _
    // Predicated region
    $region18: #{encoder_forward.1} parent=1 // pred_check
      _
    $region19: #{encoder_forward.1} parent=1 // pred_check_branch
      %53 = sbr.rel (0) target = $region21
    $region20: #{encoder_forward.1} parent=1 // pred_region
      %s55 = ssub.s32 128, 128
      %56 = vsyncadd [#allocation8], %s55
      %s58 = sshll.u32 [#allocation7], 4
      %s59 = int_to_ptr.vmem [resolvable:$true] %s58
      %61 = dma.hbm_to_vmem [thread:$0]  %s4, 128, %s59, [#allocation8]
    $region21: #{encoder_forward.1} parent=1 // pred_fallthru
      _
    // Predicated region
    $region22: #{encoder_forward.1} parent=1 // pred_check
      _
    $region23: #{encoder_forward.1} parent=1 // pred_check_branch
      %63 = sbr.rel (0) target = $region25
    $region24: #{encoder_forward.1} parent=1 // pred_region
      %s65 = ssub.s32 8192, 8192
      %66 = vsyncadd [#allocation8], %s65
      %s67 = sshll.u32 [#allocation9], 4
      %s68 = int_to_ptr.vmem [resolvable:$true] %s67
      %73 = dma.hbm_to_vmem [thread:$0]  %s5, 8192, %s68, [#allocation8], 64, 64, 4
    $region25: #{encoder_forward.1} parent=1 // pred_fallthru
      _
    // Predicated region
    $region26: #{encoder_forward.1} parent=1 // pred_check
      _
    $region27: #{encoder_forward.1} parent=1 // pred_check_branch
      %75 = sbr.rel (0) target = $region29
    $region28: #{encoder_forward.1} parent=1 // pred_region
      %s77 = ssub.s32 16, 16
      %78 = vsyncadd [#allocation11], %s77
      %s80 = sshll.u32 [#allocation10], 4
      %s81 = int_to_ptr.vmem [resolvable:$true] %s80
      %83 = dma.hbm_to_vmem [thread:$0]  %s6, 16, %s81, [#allocation11]
    $region29: #{encoder_forward.1} parent=1 // pred_fallthru
      _
    // Predicated region
    $region30: #{encoder_forward.1} parent=1 // pred_check
      _
    $region31: #{encoder_forward.1} parent=1 // pred_check_branch
      %85 = sbr.rel (0) target = $region33
    $region32: #{encoder_forward.1} parent=1 // pred_region
      %86 = dma.done [#allocation3], 8192
    $region33: #{encoder_forward.1} parent=1 // pred_fallthru
      _
    // Predicated region
    $region34: #{encoder_forward.1} parent=1 // pred_check
      _
    $region35: #{encoder_forward.1} parent=1 // pred_check_branch
      %88 = sbr.rel (0) target = $region37
    $region36: #{encoder_forward.1} parent=1 // pred_region
      %89 = dma.done [#allocation5], 128
    $region37: #{encoder_forward.1} parent=1 // pred_fallthru
      _
    // Predicated region
    $region38: #{encoder_forward.1} parent=1 // pred_check
      _
    $region39: #{encoder_forward.1} parent=1 // pred_check_branch
      %91 = sbr.rel (0) target = $region41
    $region40: #{encoder_forward.1} parent=1 // pred_region
      %92 = dma.done [#allocation5], 65536
    $region41: #{encoder_forward.1} parent=1 // pred_fallthru
      _
    // Predicated region
    $region42: #{encoder_forward.1} parent=1 // pred_check
      _
    $region43: #{encoder_forward.1} parent=1 // pred_check_branch
      %94 = sbr.rel (0) target = $region45
    $region44: #{encoder_forward.1} parent=1 // pred_region
      %95 = dma.done [#allocation8], 128
    $region45: #{encoder_forward.1} parent=1 // pred_fallthru
      _
    // Predicated region
    $region46: #{encoder_forward.1} parent=1 // pred_check
      _
    $region47: #{encoder_forward.1} parent=1 // pred_check_branch
      %97 = sbr.rel (0) target = $region49
    $region48: #{encoder_forward.1} parent=1 // pred_region
      %98 = dma.done [#allocation8], 8192
    $region49: #{encoder_forward.1} parent=1 // pred_fallthru
      _
    // Predicated region
    $region50: #{encoder_forward.1} parent=1 // pred_check
      _
    $region51: #{encoder_forward.1} parent=1 // pred_check_branch
      %100 = sbr.rel (0) target = $region53
    $region52: #{encoder_forward.1} parent=1 // pred_region
      %101 = dma.done [#allocation11], 16
    $region53: #{encoder_forward.1} parent=1 // pred_fallthru
      _
    %v103 = vld [vmem:[%s0] sm:$0xff]
    %v104 = vpack.c.bf16 %v103, %v103
    %v105 = vld [vmem:[#allocation2] sm:$0xff]
    %v106 = vld [vmem:[#allocation2 + $0x8] sm:$0xff]
    %v107 = vld [vmem:[#allocation2 + $0x10] sm:$0xff]
    %v108 = vld [vmem:[#allocation2 + $0x18] sm:$0xff]
    %v109 = vld [vmem:[#allocation2 + $0x20] sm:$0xff]
    %v110 = vld [vmem:[#allocation2 + $0x28] sm:$0xff]
    %v111 = vld [vmem:[#allocation2 + $0x30] sm:$0xff]
    %v112 = vld [vmem:[#allocation2 + $0x38] sm:$0xff]
    %v113 = vld [vmem:[#allocation2 + $0x40] sm:$0xff]
    %v114 = vld [vmem:[#allocation2 + $0x48] sm:$0xff]
    %v115 = vld [vmem:[#allocation2 + $0x50] sm:$0xff]
    %v116 = vld [vmem:[#allocation2 + $0x58] sm:$0xff]
    %v117 = vld [vmem:[#allocation2 + $0x60] sm:$0xff]
    %v118 = vld [vmem:[#allocation2 + $0x68] sm:$0xff]
    %v119 = vld [vmem:[#allocation2 + $0x70] sm:$0xff]
    %v120 = vld [vmem:[#allocation2 + $0x78] sm:$0xff]
    %v121 = vld [vmem:[#allocation2 + $0x80] sm:$0xff]
    %v122 = vld [vmem:[#allocation2 + $0x88] sm:$0xff]
    %v123 = vld [vmem:[#allocation2 + $0x90] sm:$0xff]
    %v124 = vld [vmem:[#allocation2 + $0x98] sm:$0xff]
    %v125 = vld [vmem:[#allocation2 + $0xa0] sm:$0xff]
    %v126 = vld [vmem:[#allocation2 + $0xa8] sm:$0xff]
    %v127 = vld [vmem:[#allocation2 + $0xb0] sm:$0xff]
    %v128 = vld [vmem:[#allocation2 + $0xb8] sm:$0xff]
    %v129 = vld [vmem:[#allocation2 + $0xc0] sm:$0xff]
    %v130 = vld [vmem:[#allocation2 + $0xc8] sm:$0xff]
    %v131 = vld [vmem:[#allocation2 + $0xd0] sm:$0xff]
    %v132 = vld [vmem:[#allocation2 + $0xd8] sm:$0xff]
    %v133 = vld [vmem:[#allocation2 + $0xe0] sm:$0xff]
    %v134 = vld [vmem:[#allocation2 + $0xe8] sm:$0xff]
    %v135 = vld [vmem:[#allocation2 + $0xf0] sm:$0xff]
    %v136 = vld [vmem:[#allocation2 + $0xf8] sm:$0xff]
    %v137 = vld [vmem:[#allocation2 + $0x100] sm:$0xff]
    %v138 = vld [vmem:[#allocation2 + $0x108] sm:$0xff]
    %v139 = vld [vmem:[#allocation2 + $0x110] sm:$0xff]
    %v140 = vld [vmem:[#allocation2 + $0x118] sm:$0xff]
    %v141 = vld [vmem:[#allocation2 + $0x120] sm:$0xff]
    %v142 = vld [vmem:[#allocation2 + $0x128] sm:$0xff]
    %v143 = vld [vmem:[#allocation2 + $0x130] sm:$0xff]
    %v144 = vld [vmem:[#allocation2 + $0x138] sm:$0xff]
    %v145 = vld [vmem:[#allocation2 + $0x140] sm:$0xff]
    %v146 = vld [vmem:[#allocation2 + $0x148] sm:$0xff]
    %v147 = vld [vmem:[#allocation2 + $0x150] sm:$0xff]
    %v148 = vld [vmem:[#allocation2 + $0x158] sm:$0xff]
    %v149 = vld [vmem:[#allocation2 + $0x160] sm:$0xff]
    %v150 = vld [vmem:[#allocation2 + $0x168] sm:$0xff]
    %v151 = vld [vmem:[#allocation2 + $0x170] sm:$0xff]
    %v152 = vld [vmem:[#allocation2 + $0x178] sm:$0xff]
    %v153 = vld [vmem:[#allocation2 + $0x180] sm:$0xff]
    %v154 = vld [vmem:[#allocation2 + $0x188] sm:$0xff]
    %v155 = vld [vmem:[#allocation2 + $0x190] sm:$0xff]
    %v156 = vld [vmem:[#allocation2 + $0x198] sm:$0xff]
    %v157 = vld [vmem:[#allocation2 + $0x1a0] sm:$0xff]
    %v158 = vld [vmem:[#allocation2 + $0x1a8] sm:$0xff]
    %v159 = vld [vmem:[#allocation2 + $0x1b0] sm:$0xff]
    %v160 = vld [vmem:[#allocation2 + $0x1b8] sm:$0xff]
    %v161 = vld [vmem:[#allocation2 + $0x1c0] sm:$0xff]
    %v162 = vld [vmem:[#allocation2 + $0x1c8] sm:$0xff]
    %v163 = vld [vmem:[#allocation2 + $0x1d0] sm:$0xff]
    %v164 = vld [vmem:[#allocation2 + $0x1d8] sm:$0xff]
    %v165 = vld [vmem:[#allocation2 + $0x1e0] sm:$0xff]
    %v166 = vld [vmem:[#allocation2 + $0x1e8] sm:$0xff]
    %v167 = vld [vmem:[#allocation2 + $0x1f0] sm:$0xff]
    %v168 = vld [vmem:[#allocation2 + $0x1f8] sm:$0xff]
    %v169 = vld [vmem:[#allocation4] sm:$0xff]
    %v171 = vlaneseq
    %v172 = vshrl.u32 %v171, 7
    %v173 = vsub.s32 0, %v172
    %v174 = vrot.slane %v169, %v173
    %v175 = vlaneseq
    %v176 = vshrl.u32 %v175, 7
    %v177 = vsub.s32 1, %v176
    %v178 = vrot.slane %v169, %v177
    %v179 = vlaneseq
    %v180 = vshrl.u32 %v179, 7
    %v181 = vsub.s32 2, %v180
    %v182 = vrot.slane %v169, %v181
    %v183 = vlaneseq
    %v184 = vshrl.u32 %v183, 7
    %v185 = vsub.s32 3, %v184
    %v186 = vrot.slane %v169, %v185
    %v187 = vlaneseq
    %v188 = vshrl.u32 %v187, 7
    %v189 = vsub.s32 4, %v188
    %v190 = vrot.slane %v169, %v189
    %v191 = vlaneseq
    %v192 = vshrl.u32 %v191, 7
    %v193 = vsub.s32 5, %v192
    %v194 = vrot.slane %v169, %v193
    %v195 = vlaneseq
    %v196 = vshrl.u32 %v195, 7
    %v197 = vsub.s32 6, %v196
    %v198 = vrot.slane %v169, %v197
    %v199 = vlaneseq
    %v200 = vshrl.u32 %v199, 7
    %v201 = vsub.s32 7, %v200
    %v202 = vrot.slane %v169, %v201
    %v275 = vunpack.c.l.b16 %v105
    %v276 = vunpack.c.h.b16 %v105
    %v277 = vunpack.c.l.b16 %v106
    %v278 = vunpack.c.h.b16 %v106
    %v279 = vunpack.c.l.b16 %v107
    %v280 = vunpack.c.h.b16 %v107
    %v281 = vunpack.c.l.b16 %v108
    %v282 = vunpack.c.h.b16 %v108
    %v283 = vunpack.c.l.b16 %v109
    %v284 = vunpack.c.h.b16 %v109
    %v285 = vunpack.c.l.b16 %v110
    %v286 = vunpack.c.h.b16 %v110
    %v287 = vunpack.c.l.b16 %v111
    %v288 = vunpack.c.h.b16 %v111
    %v289 = vunpack.c.l.b16 %v112
    %v290 = vunpack.c.h.b16 %v112
    %v291 = vunpack.c.l.b16 %v113
    %v292 = vunpack.c.h.b16 %v113
    %v293 = vunpack.c.l.b16 %v114
    %v294 = vunpack.c.h.b16 %v114
    %v295 = vunpack.c.l.b16 %v115
    %v296 = vunpack.c.h.b16 %v115
    %v297 = vunpack.c.l.b16 %v116
    %v298 = vunpack.c.h.b16 %v116
    %v299 = vunpack.c.l.b16 %v117
    %v300 = vunpack.c.h.b16 %v117
    %v301 = vunpack.c.l.b16 %v118
    %v302 = vunpack.c.h.b16 %v118
    %v303 = vunpack.c.l.b16 %v119
    %v304 = vunpack.c.h.b16 %v119
    %v305 = vunpack.c.l.b16 %v120
    %v306 = vunpack.c.h.b16 %v120
    %v307 = vunpack.c.l.b16 %v121
    %v308 = vunpack.c.h.b16 %v121
    %v309 = vunpack.c.l.b16 %v122
    %v310 = vunpack.c.h.b16 %v122
    %v311 = vunpack.c.l.b16 %v123
    %v312 = vunpack.c.h.b16 %v123
    %v313 = vunpack.c.l.b16 %v124
    %v314 = vunpack.c.h.b16 %v124
    %v315 = vunpack.c.l.b16 %v125
    %v316 = vunpack.c.h.b16 %v125
    %v317 = vunpack.c.l.b16 %v126
    %v318 = vunpack.c.h.b16 %v126
    %v319 = vunpack.c.l.b16 %v127
    %v320 = vunpack.c.h.b16 %v127
    %v321 = vunpack.c.l.b16 %v128
    %v322 = vunpack.c.h.b16 %v128
    %v323 = vunpack.c.l.b16 %v129
    %v324 = vunpack.c.h.b16 %v129
    %v325 = vunpack.c.l.b16 %v130
    %v326 = vunpack.c.h.b16 %v130
    %v327 = vunpack.c.l.b16 %v131
    %v328 = vunpack.c.h.b16 %v131
    %v329 = vunpack.c.l.b16 %v132
    %v330 = vunpack.c.h.b16 %v132
    %v331 = vunpack.c.l.b16 %v133
    %v332 = vunpack.c.h.b16 %v133
    %v333 = vunpack.c.l.b16 %v134
    %v334 = vunpack.c.h.b16 %v134
    %v335 = vunpack.c.l.b16 %v135
    %v336 = vunpack.c.h.b16 %v135
    %v337 = vunpack.c.l.b16 %v136
    %v338 = vunpack.c.h.b16 %v136
    %v339 = vunpack.c.l.b16 %v137
    %v340 = vunpack.c.h.b16 %v137
    %v341 = vunpack.c.l.b16 %v138
    %v342 = vunpack.c.h.b16 %v138
    %v343 = vunpack.c.l.b16 %v139
    %v344 = vunpack.c.h.b16 %v139
    %v345 = vunpack.c.l.b16 %v140
    %v346 = vunpack.c.h.b16 %v140
    %v347 = vunpack.c.l.b16 %v141
    %v348 = vunpack.c.h.b16 %v141
    %v349 = vunpack.c.l.b16 %v142
    %v350 = vunpack.c.h.b16 %v142
    %v351 = vunpack.c.l.b16 %v143
    %v352 = vunpack.c.h.b16 %v143
    %v353 = vunpack.c.l.b16 %v144
    %v354 = vunpack.c.h.b16 %v144
    %v355 = vunpack.c.l.b16 %v145
    %v356 = vunpack.c.h.b16 %v145
    %v357 = vunpack.c.l.b16 %v146
    %v358 = vunpack.c.h.b16 %v146
    %v359 = vunpack.c.l.b16 %v147
    %v360 = vunpack.c.h.b16 %v147
    %v361 = vunpack.c.l.b16 %v148
    %v362 = vunpack.c.h.b16 %v148
    %v363 = vunpack.c.l.b16 %v149
    %v364 = vunpack.c.h.b16 %v149
    %v365 = vunpack.c.l.b16 %v150
    %v366 = vunpack.c.h.b16 %v150
    %v367 = vunpack.c.l.b16 %v151
    %v368 = vunpack.c.h.b16 %v151
    %v369 = vunpack.c.l.b16 %v152
    %v370 = vunpack.c.h.b16 %v152
    %v371 = vunpack.c.l.b16 %v153
    %v372 = vunpack.c.h.b16 %v153
    %v373 = vunpack.c.l.b16 %v154
    %v374 = vunpack.c.h.b16 %v154
    %v375 = vunpack.c.l.b16 %v155
    %v376 = vunpack.c.h.b16 %v155
    %v377 = vunpack.c.l.b16 %v156
    %v378 = vunpack.c.h.b16 %v156
    %v379 = vunpack.c.l.b16 %v157
    %v380 = vunpack.c.h.b16 %v157
    %v381 = vunpack.c.l.b16 %v158
    %v382 = vunpack.c.h.b16 %v158
    %v383 = vunpack.c.l.b16 %v159
    %v384 = vunpack.c.h.b16 %v159
    %v385 = vunpack.c.l.b16 %v160
    %v386 = vunpack.c.h.b16 %v160
    %v387 = vunpack.c.l.b16 %v161
    %v388 = vunpack.c.h.b16 %v161
    %v389 = vunpack.c.l.b16 %v162
    %v390 = vunpack.c.h.b16 %v162
    %v391 = vunpack.c.l.b16 %v163
    %v392 = vunpack.c.h.b16 %v163
    %v393 = vunpack.c.l.b16 %v164
    %v394 = vunpack.c.h.b16 %v164
    %v395 = vunpack.c.l.b16 %v165
    %v396 = vunpack.c.h.b16 %v165
    %v397 = vunpack.c.l.b16 %v166
    %v398 = vunpack.c.h.b16 %v166
    %v399 = vunpack.c.l.b16 %v167
    %v400 = vunpack.c.h.b16 %v167
    %v401 = vunpack.c.l.b16 %v168
    %v402 = vunpack.c.h.b16 %v168
    %v403 = vpack.c.b16 %v283, %v275
    %v404 = vpack.c.b16 %v284, %v276
    %v405 = vpack.c.b16 %v285, %v277
    %v406 = vpack.c.b16 %v286, %v278
    %v407 = vpack.c.b16 %v287, %v279
    %v408 = vpack.c.b16 %v288, %v280
    %v409 = vpack.c.b16 %v289, %v281
    %v410 = vpack.c.b16 %v290, %v282
    %v411 = vpack.c.b16 %v299, %v291
    %v412 = vpack.c.b16 %v300, %v292
    %v413 = vpack.c.b16 %v301, %v293
    %v414 = vpack.c.b16 %v302, %v294
    %v415 = vpack.c.b16 %v303, %v295
    %v416 = vpack.c.b16 %v304, %v296
    %v417 = vpack.c.b16 %v305, %v297
    %v418 = vpack.c.b16 %v306, %v298
    %v419 = vpack.c.b16 %v315, %v307
    %v420 = vpack.c.b16 %v316, %v308
    %v421 = vpack.c.b16 %v317, %v309
    %v422 = vpack.c.b16 %v318, %v310
    %v423 = vpack.c.b16 %v319, %v311
    %v424 = vpack.c.b16 %v320, %v312
    %v425 = vpack.c.b16 %v321, %v313
    %v426 = vpack.c.b16 %v322, %v314
    %v427 = vpack.c.b16 %v331, %v323
    %v428 = vpack.c.b16 %v332, %v324
    %v429 = vpack.c.b16 %v333, %v325
    %v430 = vpack.c.b16 %v334, %v326
    %v431 = vpack.c.b16 %v335, %v327
    %v432 = vpack.c.b16 %v336, %v328
    %v433 = vpack.c.b16 %v337, %v329
    %v434 = vpack.c.b16 %v338, %v330
    %v435 = vpack.c.b16 %v347, %v339
    %v436 = vpack.c.b16 %v348, %v340
    %v437 = vpack.c.b16 %v349, %v341
    %v438 = vpack.c.b16 %v350, %v342
    %v439 = vpack.c.b16 %v351, %v343
    %v440 = vpack.c.b16 %v352, %v344
    %v441 = vpack.c.b16 %v353, %v345
    %v442 = vpack.c.b16 %v354, %v346
    %v443 = vpack.c.b16 %v363, %v355
    %v444 = vpack.c.b16 %v364, %v356
    %v445 = vpack.c.b16 %v365, %v357
    %v446 = vpack.c.b16 %v366, %v358
    %v447 = vpack.c.b16 %v367, %v359
    %v448 = vpack.c.b16 %v368, %v360
    %v449 = vpack.c.b16 %v369, %v361
    %v450 = vpack.c.b16 %v370, %v362
    %v451 = vpack.c.b16 %v379, %v371
    %v452 = vpack.c.b16 %v380, %v372
    %v453 = vpack.c.b16 %v381, %v373
    %v454 = vpack.c.b16 %v382, %v374
    %v455 = vpack.c.b16 %v383, %v375
    %v456 = vpack.c.b16 %v384, %v376
    %v457 = vpack.c.b16 %v385, %v377
    %v458 = vpack.c.b16 %v386, %v378
    %v459 = vpack.c.b16 %v395, %v387
    %v460 = vpack.c.b16 %v396, %v388
    %v461 = vpack.c.b16 %v397, %v389
    %v462 = vpack.c.b16 %v398, %v390
    %v463 = vpack.c.b16 %v399, %v391
    %v464 = vpack.c.b16 %v400, %v392
    %v465 = vpack.c.b16 %v401, %v393
    %v466 = vpack.c.b16 %v402, %v394
    %531 = vmatprep.subr.bf16.mxu0 %v404
    %532 = vmatpush1.bf16.msra.mxu0 %v403
    %533 = vmatprep.subr.bf16.mxu0 %v412
    %534 = vmatpush1.bf16.msra.mxu0 %v411
    %535 = vmatprep.subr.bf16.mxu0 %v420
    %536 = vmatpush1.bf16.msra.mxu0 %v419
    %537 = vmatprep.subr.bf16.mxu0 %v428
    %538 = vmatpush1.bf16.msra.mxu0 %v427
    %539 = vmatprep.subr.bf16.mxu0 %v436
    %540 = vmatpush1.bf16.msra.mxu0 %v435
    %541 = vmatprep.subr.bf16.mxu0 %v444
    %542 = vmatpush1.bf16.msra.mxu0 %v443
    %543 = vmatprep.subr.bf16.mxu0 %v452
    %544 = vmatpush1.bf16.msra.mxu0 %v451
    %545 = vmatprep.subr.bf16.mxu0 %v460
    %546 = vmatpush1.bf16.msra.mxu0 %v459
    %547 = vmatprep.subr.bf16.mxu0 0
    %548 = vmatpush1.bf16.msra.mxu0 0
    %549 = vmatprep.subr.bf16.mxu0 0
    %550 = vmatpush1.bf16.msra.mxu0 0
    %551 = vmatprep.subr.bf16.mxu0 0
    %552 = vmatpush1.bf16.msra.mxu0 0
    %553 = vmatprep.subr.bf16.mxu0 0
    %554 = vmatpush1.bf16.msra.mxu0 0
    %555 = vmatprep.subr.bf16.mxu0 0
    %556 = vmatpush1.bf16.msra.mxu0 0
    %557 = vmatprep.subr.bf16.mxu0 0
    %558 = vmatpush1.bf16.msra.mxu0 0
    %559 = vmatprep.subr.bf16.mxu0 0
    %560 = vmatpush1.bf16.msra.mxu0 0
    %561 = vmatprep.subr.bf16.mxu0 0
    %562 = vmatpush1.bf16.msra.mxu0 0
    %563 = vmatprep.mubr.bf16.mxu0 0
    %564 = vmatmul.mubr.bf16.gmra.mrb[0].mxu0 %v104
    %v565 = vpop.f32.mrb[0].mxu0
    %v566 = vadd.f32 %v174, %v565
    %v567 = vpop.f32.mrb[0].mxu0
    %v568 = vadd.f32 %v178, %v567
    %v569 = vpop.f32.mrb[0].mxu0
    %v570 = vpop.f32.mrb[0].mxu0
    %571 = vdwg.mxu0
    %572 = vmatprep.subr.bf16.mxu0 %v406
    %573 = vmatpush1.bf16.msra.mxu0 %v405
    %574 = vmatprep.subr.bf16.mxu0 %v414
    %575 = vmatpush1.bf16.msra.mxu0 %v413
    %576 = vmatprep.subr.bf16.mxu0 %v422
    %577 = vmatpush1.bf16.msra.mxu0 %v421
    %578 = vmatprep.subr.bf16.mxu0 %v430
    %579 = vmatpush1.bf16.msra.mxu0 %v429
    %580 = vmatprep.subr.bf16.mxu0 %v438
    %581 = vmatpush1.bf16.msra.mxu0 %v437
    %582 = vmatprep.subr.bf16.mxu0 %v446
    %583 = vmatpush1.bf16.msra.mxu0 %v445
    %584 = vmatprep.subr.bf16.mxu0 %v454
    %585 = vmatpush1.bf16.msra.mxu0 %v453
    %586 = vmatprep.subr.bf16.mxu0 %v462
    %587 = vmatpush1.bf16.msra.mxu0 %v461
    %588 = vmatprep.subr.bf16.mxu0 0
    %589 = vmatpush1.bf16.msra.mxu0 0
    %590 = vmatprep.subr.bf16.mxu0 0
    %591 = vmatpush1.bf16.msra.mxu0 0
    %592 = vmatprep.subr.bf16.mxu0 0
    %593 = vmatpush1.bf16.msra.mxu0 0
    %594 = vmatprep.subr.bf16.mxu0 0
    %595 = vmatpush1.bf16.msra.mxu0 0
    %596 = vmatprep.subr.bf16.mxu0 0
    %597 = vmatpush1.bf16.msra.mxu0 0
    %598 = vmatprep.subr.bf16.mxu0 0
    %599 = vmatpush1.bf16.msra.mxu0 0
    %600 = vmatprep.subr.bf16.mxu0 0
    %601 = vmatpush1.bf16.msra.mxu0 0
    %602 = vmatprep.subr.bf16.mxu0 0
    %603 = vmatpush1.bf16.msra.mxu0 0
    %604 = vmatprep.mubr.bf16.mxu0 0
    %605 = vmatmul.mubr.bf16.gmra.mrb[0].mxu0 %v104
    %v606 = vpop.f32.mrb[0].mxu0
    %v607 = vadd.f32 %v182, %v606
    %v608 = vpop.f32.mrb[0].mxu0
    %v609 = vadd.f32 %v186, %v608
    %v610 = vpop.f32.mrb[0].mxu0
    %v611 = vpop.f32.mrb[0].mxu0
    %612 = vdwg.mxu0
    %613 = vmatprep.subr.bf16.mxu0 %v408
    %614 = vmatpush1.bf16.msra.mxu0 %v407
    %615 = vmatprep.subr.bf16.mxu0 %v416
    %616 = vmatpush1.bf16.msra.mxu0 %v415
    %617 = vmatprep.subr.bf16.mxu0 %v424
    %618 = vmatpush1.bf16.msra.mxu0 %v423
    %619 = vmatprep.subr.bf16.mxu0 %v432
    %620 = vmatpush1.bf16.msra.mxu0 %v431
    %621 = vmatprep.subr.bf16.mxu0 %v440
    %622 = vmatpush1.bf16.msra.mxu0 %v439
    %623 = vmatprep.subr.bf16.mxu0 %v448
    %624 = vmatpush1.bf16.msra.mxu0 %v447
    %625 = vmatprep.subr.bf16.mxu0 %v456
    %626 = vmatpush1.bf16.msra.mxu0 %v455
    %627 = vmatprep.subr.bf16.mxu0 %v464
    %628 = vmatpush1.bf16.msra.mxu0 %v463
    %629 = vmatprep.subr.bf16.mxu0 0
    %630 = vmatpush1.bf16.msra.mxu0 0
    %631 = vmatprep.subr.bf16.mxu0 0
    %632 = vmatpush1.bf16.msra.mxu0 0
    %633 = vmatprep.subr.bf16.mxu0 0
    %634 = vmatpush1.bf16.msra.mxu0 0
    %635 = vmatprep.subr.bf16.mxu0 0
    %636 = vmatpush1.bf16.msra.mxu0 0
    %637 = vmatprep.subr.bf16.mxu0 0
    %638 = vmatpush1.bf16.msra.mxu0 0
    %639 = vmatprep.subr.bf16.mxu0 0
    %640 = vmatpush1.bf16.msra.mxu0 0
    %641 = vmatprep.subr.bf16.mxu0 0
    %642 = vmatpush1.bf16.msra.mxu0 0
    %643 = vmatprep.subr.bf16.mxu0 0
    %644 = vmatpush1.bf16.msra.mxu0 0
    %645 = vmatprep.mubr.bf16.mxu0 0
    %646 = vmatmul.mubr.bf16.gmra.mrb[0].mxu0 %v104
    %v647 = vpop.f32.mrb[0].mxu0
    %v648 = vadd.f32 %v190, %v647
    %v649 = vpop.f32.mrb[0].mxu0
    %v650 = vadd.f32 %v194, %v649
    %v651 = vpop.f32.mrb[0].mxu0
    %v652 = vpop.f32.mrb[0].mxu0
    %653 = vdwg.mxu0
    %654 = vmatprep.subr.bf16.mxu0 %v410
    %655 = vmatpush1.bf16.msra.mxu0 %v409
    %656 = vmatprep.subr.bf16.mxu0 %v418
    %657 = vmatpush1.bf16.msra.mxu0 %v417
    %658 = vmatprep.subr.bf16.mxu0 %v426
    %659 = vmatpush1.bf16.msra.mxu0 %v425
    %660 = vmatprep.subr.bf16.mxu0 %v434
    %661 = vmatpush1.bf16.msra.mxu0 %v433
    %662 = vmatprep.subr.bf16.mxu0 %v442
    %663 = vmatpush1.bf16.msra.mxu0 %v441
    %664 = vmatprep.subr.bf16.mxu0 %v450
    %665 = vmatpush1.bf16.msra.mxu0 %v449
    %666 = vmatprep.subr.bf16.mxu0 %v458
    %667 = vmatpush1.bf16.msra.mxu0 %v457
    %668 = vmatprep.subr.bf16.mxu0 %v466
    %669 = vmatpush1.bf16.msra.mxu0 %v465
    %670 = vmatprep.subr.bf16.mxu0 0
    %671 = vmatpush1.bf16.msra.mxu0 0
    %672 = vmatprep.subr.bf16.mxu0 0
    %673 = vmatpush1.bf16.msra.mxu0 0
    %674 = vmatprep.subr.bf16.mxu0 0
    %675 = vmatpush1.bf16.msra.mxu0 0
    %676 = vmatprep.subr.bf16.mxu0 0
    %677 = vmatpush1.bf16.msra.mxu0 0
    %678 = vmatprep.subr.bf16.mxu0 0
    %679 = vmatpush1.bf16.msra.mxu0 0
    %680 = vmatprep.subr.bf16.mxu0 0
    %681 = vmatpush1.bf16.msra.mxu0 0
    %682 = vmatprep.subr.bf16.mxu0 0
    %683 = vmatpush1.bf16.msra.mxu0 0
    %684 = vmatprep.subr.bf16.mxu0 0
    %685 = vmatpush1.bf16.msra.mxu0 0
    %686 = vmatprep.mubr.bf16.mxu0 0
    %687 = vmatmul.mubr.bf16.gmra.mrb[0].mxu0 %v104
    %v688 = vpop.f32.mrb[0].mxu0
    %v689 = vadd.f32 %v198, %v688
    %v690 = vpop.f32.mrb[0].mxu0
    %v691 = vadd.f32 %v202, %v690
    %v692 = vpop.f32.mrb[0].mxu0
    %v693 = vpop.f32.mrb[0].mxu0
    %694 = vdwg.mxu0
    %v695 = vmax.f32 %v566, 0.0
    %v696 = vmax.f32 %v568, 0.0
    %v697 = vmax.f32 %v607, 0.0
    %v698 = vmax.f32 %v609, 0.0
    %v699 = vmax.f32 %v648, 0.0
    %v700 = vmax.f32 %v650, 0.0
    %v701 = vmax.f32 %v689, 0.0
    %v702 = vmax.f32 %v691, 0.0
    %v703 = vpack.c.bf16 %v695, %v695
    %v704 = vpack.c.bf16 %v696, %v696
    %v705 = vpack.c.bf16 %v697, %v697
    %v706 = vpack.c.bf16 %v698, %v698
    %v707 = vpack.c.bf16 %v699, %v699
    %v708 = vpack.c.bf16 %v700, %v700
    %v709 = vpack.c.bf16 %v701, %v701
    %v710 = vpack.c.bf16 %v702, %v702
    %v711 = vld [vmem:[#allocation6] sm:$0xff]
    %v712 = vld [vmem:[#allocation6 + $0x8] sm:$0xff]
    %v713 = vld [vmem:[#allocation6 + $0x10] sm:$0xff]
    %v714 = vld [vmem:[#allocation6 + $0x18] sm:$0xff]
    %v715 = vld [vmem:[#allocation6 + $0x20] sm:$0xff]
    %v716 = vld [vmem:[#allocation6 + $0x28] sm:$0xff]
    %v717 = vld [vmem:[#allocation6 + $0x30] sm:$0xff]
    %v718 = vld [vmem:[#allocation6 + $0x38] sm:$0xff]
    %v719 = vld [vmem:[#allocation6 + $0x40] sm:$0xff]
    %v720 = vld [vmem:[#allocation6 + $0x48] sm:$0xff]
    %v721 = vld [vmem:[#allocation6 + $0x50] sm:$0xff]
    %v722 = vld [vmem:[#allocation6 + $0x58] sm:$0xff]
    %v723 = vld [vmem:[#allocation6 + $0x60] sm:$0xff]
    %v724 = vld [vmem:[#allocation6 + $0x68] sm:$0xff]
    %v725 = vld [vmem:[#allocation6 + $0x70] sm:$0xff]
    %v726 = vld [vmem:[#allocation6 + $0x78] sm:$0xff]
    %v727 = vld [vmem:[#allocation6 + $0x80] sm:$0xff]
    %v728 = vld [vmem:[#allocation6 + $0x88] sm:$0xff]
    %v729 = vld [vmem:[#allocation6 + $0x90] sm:$0xff]
    %v730 = vld [vmem:[#allocation6 + $0x98] sm:$0xff]
    %v731 = vld [vmem:[#allocation6 + $0xa0] sm:$0xff]
    %v732 = vld [vmem:[#allocation6 + $0xa8] sm:$0xff]
    %v733 = vld [vmem:[#allocation6 + $0xb0] sm:$0xff]
    %v734 = vld [vmem:[#allocation6 + $0xb8] sm:$0xff]
    %v735 = vld [vmem:[#allocation6 + $0xc0] sm:$0xff]
    %v736 = vld [vmem:[#allocation6 + $0xc8] sm:$0xff]
    %v737 = vld [vmem:[#allocation6 + $0xd0] sm:$0xff]
    %v738 = vld [vmem:[#allocation6 + $0xd8] sm:$0xff]
    %v739 = vld [vmem:[#allocation6 + $0xe0] sm:$0xff]
    %v740 = vld [vmem:[#allocation6 + $0xe8] sm:$0xff]
    %v741 = vld [vmem:[#allocation6 + $0xf0] sm:$0xff]
    %v742 = vld [vmem:[#allocation6 + $0xf8] sm:$0xff]
    %v743 = vld [vmem:[#allocation6 + $0x100] sm:$0xff]
    %v744 = vld [vmem:[#allocation6 + $0x108] sm:$0xff]
    %v745 = vld [vmem:[#allocation6 + $0x110] sm:$0xff]
    %v746 = vld [vmem:[#allocation6 + $0x118] sm:$0xff]
    %v747 = vld [vmem:[#allocation6 + $0x120] sm:$0xff]
    %v748 = vld [vmem:[#allocation6 + $0x128] sm:$0xff]
    %v749 = vld [vmem:[#allocation6 + $0x130] sm:$0xff]
    %v750 = vld [vmem:[#allocation6 + $0x138] sm:$0xff]
    %v751 = vld [vmem:[#allocation6 + $0x140] sm:$0xff]
    %v752 = vld [vmem:[#allocation6 + $0x148] sm:$0xff]
    %v753 = vld [vmem:[#allocation6 + $0x150] sm:$0xff]
    %v754 = vld [vmem:[#allocation6 + $0x158] sm:$0xff]
    %v755 = vld [vmem:[#allocation6 + $0x160] sm:$0xff]
    %v756 = vld [vmem:[#allocation6 + $0x168] sm:$0xff]
    %v757 = vld [vmem:[#allocation6 + $0x170] sm:$0xff]
    %v758 = vld [vmem:[#allocation6 + $0x178] sm:$0xff]
    %v759 = vld [vmem:[#allocation6 + $0x180] sm:$0xff]
    %v760 = vld [vmem:[#allocation6 + $0x188] sm:$0xff]
    %v761 = vld [vmem:[#allocation6 + $0x190] sm:$0xff]
    %v762 = vld [vmem:[#allocation6 + $0x198] sm:$0xff]
    %v763 = vld [vmem:[#allocation6 + $0x1a0] sm:$0xff]
    %v764 = vld [vmem:[#allocation6 + $0x1a8] sm:$0xff]
    %v765 = vld [vmem:[#allocation6 + $0x1b0] sm:$0xff]
    %v766 = vld [vmem:[#allocation6 + $0x1b8] sm:$0xff]
    %v767 = vld [vmem:[#allocation6 + $0x1c0] sm:$0xff]
    %v768 = vld [vmem:[#allocation6 + $0x1c8] sm:$0xff]
    %v769 = vld [vmem:[#allocation6 + $0x1d0] sm:$0xff]
    %v770 = vld [vmem:[#allocation6 + $0x1d8] sm:$0xff]
    %v771 = vld [vmem:[#allocation6 + $0x1e0] sm:$0xff]
    %v772 = vld [vmem:[#allocation6 + $0x1e8] sm:$0xff]
    %v773 = vld [vmem:[#allocation6 + $0x1f0] sm:$0xff]
    %v774 = vld [vmem:[#allocation6 + $0x1f8] sm:$0xff]
    %v775 = vld [vmem:[#allocation6 + $0x200] sm:$0xff]
    %v776 = vld [vmem:[#allocation6 + $0x208] sm:$0xff]
    %v777 = vld [vmem:[#allocation6 + $0x210] sm:$0xff]
    %v778 = vld [vmem:[#allocation6 + $0x218] sm:$0xff]
    %v779 = vld [vmem:[#allocation6 + $0x220] sm:$0xff]
    %v780 = vld [vmem:[#allocation6 + $0x228] sm:$0xff]
    %v781 = vld [vmem:[#allocation6 + $0x230] sm:$0xff]
    %v782 = vld [vmem:[#allocation6 + $0x238] sm:$0xff]
    %v783 = vld [vmem:[#allocation6 + $0x240] sm:$0xff]
    %v784 = vld [vmem:[#allocation6 + $0x248] sm:$0xff]
    %v785 = vld [vmem:[#allocation6 + $0x250] sm:$0xff]
    %v786 = vld [vmem:[#allocation6 + $0x258] sm:$0xff]
    %v787 = vld [vmem:[#allocation6 + $0x260] sm:$0xff]
    %v788 = vld [vmem:[#allocation6 + $0x268] sm:$0xff]
    %v789 = vld [vmem:[#allocation6 + $0x270] sm:$0xff]
    %v790 = vld [vmem:[#allocation6 + $0x278] sm:$0xff]
    %v791 = vld [vmem:[#allocation6 + $0x280] sm:$0xff]
    %v792 = vld [vmem:[#allocation6 + $0x288] sm:$0xff]
    %v793 = vld [vmem:[#allocation6 + $0x290] sm:$0xff]
    %v794 = vld [vmem:[#allocation6 + $0x298] sm:$0xff]
    %v795 = vld [vmem:[#allocation6 + $0x2a0] sm:$0xff]
    %v796 = vld [vmem:[#allocation6 + $0x2a8] sm:$0xff]
    %v797 = vld [vmem:[#allocation6 + $0x2b0] sm:$0xff]
    %v798 = vld [vmem:[#allocation6 + $0x2b8] sm:$0xff]
    %v799 = vld [vmem:[#allocation6 + $0x2c0] sm:$0xff]
    %v800 = vld [vmem:[#allocation6 + $0x2c8] sm:$0xff]
    %v801 = vld [vmem:[#allocation6 + $0x2d0] sm:$0xff]
    %v802 = vld [vmem:[#allocation6 + $0x2d8] sm:$0xff]
    %v803 = vld [vmem:[#allocation6 + $0x2e0] sm:$0xff]
    %v804 = vld [vmem:[#allocation6 + $0x2e8] sm:$0xff]
    %v805 = vld [vmem:[#allocation6 + $0x2f0] sm:$0xff]
    %v806 = vld [vmem:[#allocation6 + $0x2f8] sm:$0xff]
    %v807 = vld [vmem:[#allocation6 + $0x300] sm:$0xff]
    %v808 = vld [vmem:[#allocation6 + $0x308] sm:$0xff]
    %v809 = vld [vmem:[#allocation6 + $0x310] sm:$0xff]
    %v810 = vld [vmem:[#allocation6 + $0x318] sm:$0xff]
    %v811 = vld [vmem:[#allocation6 + $0x320] sm:$0xff]
    %v812 = vld [vmem:[#allocation6 + $0x328] sm:$0xff]
    %v813 = vld [vmem:[#allocation6 + $0x330] sm:$0xff]
    %v814 = vld [vmem:[#allocation6 + $0x338] sm:$0xff]
    %v815 = vld [vmem:[#allocation6 + $0x340] sm:$0xff]
    %v816 = vld [vmem:[#allocation6 + $0x348] sm:$0xff]
    %v817 = vld [vmem:[#allocation6 + $0x350] sm:$0xff]
    %v818 = vld [vmem:[#allocation6 + $0x358] sm:$0xff]
    %v819 = vld [vmem:[#allocation6 + $0x360] sm:$0xff]
    %v820 = vld [vmem:[#allocation6 + $0x368] sm:$0xff]
    %v821 = vld [vmem:[#allocation6 + $0x370] sm:$0xff]
    %v822 = vld [vmem:[#allocation6 + $0x378] sm:$0xff]
    %v823 = vld [vmem:[#allocation6 + $0x380] sm:$0xff]
    %v824 = vld [vmem:[#allocation6 + $0x388] sm:$0xff]
    %v825 = vld [vmem:[#allocation6 + $0x390] sm:$0xff]
    %v826 = vld [vmem:[#allocation6 + $0x398] sm:$0xff]
    %v827 = vld [vmem:[#allocation6 + $0x3a0] sm:$0xff]
    %v828 = vld [vmem:[#allocation6 + $0x3a8] sm:$0xff]
    %v829 = vld [vmem:[#allocation6 + $0x3b0] sm:$0xff]
    %v830 = vld [vmem:[#allocation6 + $0x3b8] sm:$0xff]
    %v831 = vld [vmem:[#allocation6 + $0x3c0] sm:$0xff]
    %v832 = vld [vmem:[#allocation6 + $0x3c8] sm:$0xff]
    %v833 = vld [vmem:[#allocation6 + $0x3d0] sm:$0xff]
    %v834 = vld [vmem:[#allocation6 + $0x3d8] sm:$0xff]
    %v835 = vld [vmem:[#allocation6 + $0x3e0] sm:$0xff]
    %v836 = vld [vmem:[#allocation6 + $0x3e8] sm:$0xff]
    %v837 = vld [vmem:[#allocation6 + $0x3f0] sm:$0xff]
    %v838 = vld [vmem:[#allocation6 + $0x3f8] sm:$0xff]
    %v839 = vld [vmem:[#allocation6 + $0x400] sm:$0xff]
    %v840 = vld [vmem:[#allocation6 + $0x408] sm:$0xff]
    %v841 = vld [vmem:[#allocation6 + $0x410] sm:$0xff]
    %v842 = vld [vmem:[#allocation6 + $0x418] sm:$0xff]
    %v843 = vld [vmem:[#allocation6 + $0x420] sm:$0xff]
    %v844 = vld [vmem:[#allocation6 + $0x428] sm:$0xff]
    %v845 = vld [vmem:[#allocation6 + $0x430] sm:$0xff]
    %v846 = vld [vmem:[#allocation6 + $0x438] sm:$0xff]
    %v847 = vld [vmem:[#allocation6 + $0x440] sm:$0xff]
    %v848 = vld [vmem:[#allocation6 + $0x448] sm:$0xff]
    %v849 = vld [vmem:[#allocation6 + $0x450] sm:$0xff]
    %v850 = vld [vmem:[#allocation6 + $0x458] sm:$0xff]
    %v851 = vld [vmem:[#allocation6 + $0x460] sm:$0xff]
    %v852 = vld [vmem:[#allocation6 + $0x468] sm:$0xff]
    %v853 = vld [vmem:[#allocation6 + $0x470] sm:$0xff]
    %v854 = vld [vmem:[#allocation6 + $0x478] sm:$0xff]
    %v855 = vld [vmem:[#allocation6 + $0x480] sm:$0xff]
    %v856 = vld [vmem:[#allocation6 + $0x488] sm:$0xff]
    %v857 = vld [vmem:[#allocation6 + $0x490] sm:$0xff]
    %v858 = vld [vmem:[#allocation6 + $0x498] sm:$0xff]
    %v859 = vld [vmem:[#allocation6 + $0x4a0] sm:$0xff]
    %v860 = vld [vmem:[#allocation6 + $0x4a8] sm:$0xff]
    %v861 = vld [vmem:[#allocation6 + $0x4b0] sm:$0xff]
    %v862 = vld [vmem:[#allocation6 + $0x4b8] sm:$0xff]
    %v863 = vld [vmem:[#allocation6 + $0x4c0] sm:$0xff]
    %v864 = vld [vmem:[#allocation6 + $0x4c8] sm:$0xff]
    %v865 = vld [vmem:[#allocation6 + $0x4d0] sm:$0xff]
    %v866 = vld [vmem:[#allocation6 + $0x4d8] sm:$0xff]
    %v867 = vld [vmem:[#allocation6 + $0x4e0] sm:$0xff]
    %v868 = vld [vmem:[#allocation6 + $0x4e8] sm:$0xff]
    %v869 = vld [vmem:[#allocation6 + $0x4f0] sm:$0xff]
    %v870 = vld [vmem:[#allocation6 + $0x4f8] sm:$0xff]
    %v871 = vld [vmem:[#allocation6 + $0x500] sm:$0xff]
    %v872 = vld [vmem:[#allocation6 + $0x508] sm:$0xff]
    %v873 = vld [vmem:[#allocation6 + $0x510] sm:$0xff]
    %v874 = vld [vmem:[#allocation6 + $0x518] sm:$0xff]
    %v875 = vld [vmem:[#allocation6 + $0x520] sm:$0xff]
    %v876 = vld [vmem:[#allocation6 + $0x528] sm:$0xff]
    %v877 = vld [vmem:[#allocation6 + $0x530] sm:$0xff]
    %v878 = vld [vmem:[#allocation6 + $0x538] sm:$0xff]
    %v879 = vld [vmem:[#allocation6 + $0x540] sm:$0xff]
    %v880 = vld [vmem:[#allocation6 + $0x548] sm:$0xff]
    %v881 = vld [vmem:[#allocation6 + $0x550] sm:$0xff]
    %v882 = vld [vmem:[#allocation6 + $0x558] sm:$0xff]
    %v883 = vld [vmem:[#allocation6 + $0x560] sm:$0xff]
    %v884 = vld [vmem:[#allocation6 + $0x568] sm:$0xff]
    %v885 = vld [vmem:[#allocation6 + $0x570] sm:$0xff]
    %v886 = vld [vmem:[#allocation6 + $0x578] sm:$0xff]
    %v887 = vld [vmem:[#allocation6 + $0x580] sm:$0xff]
    %v888 = vld [vmem:[#allocation6 + $0x588] sm:$0xff]
    %v889 = vld [vmem:[#allocation6 + $0x590] sm:$0xff]
    %v890 = vld [vmem:[#allocation6 + $0x598] sm:$0xff]
    %v891 = vld [vmem:[#allocation6 + $0x5a0] sm:$0xff]
    %v892 = vld [vmem:[#allocation6 + $0x5a8] sm:$0xff]
    %v893 = vld [vmem:[#allocation6 + $0x5b0] sm:$0xff]
    %v894 = vld [vmem:[#allocation6 + $0x5b8] sm:$0xff]
    %v895 = vld [vmem:[#allocation6 + $0x5c0] sm:$0xff]
    %v896 = vld [vmem:[#allocation6 + $0x5c8] sm:$0xff]
    %v897 = vld [vmem:[#allocation6 + $0x5d0] sm:$0xff]
    %v898 = vld [vmem:[#allocation6 + $0x5d8] sm:$0xff]
    %v899 = vld [vmem:[#allocation6 + $0x5e0] sm:$0xff]
    %v900 = vld [vmem:[#allocation6 + $0x5e8] sm:$0xff]
    %v901 = vld [vmem:[#allocation6 + $0x5f0] sm:$0xff]
    %v902 = vld [vmem:[#allocation6 + $0x5f8] sm:$0xff]
    %v903 = vld [vmem:[#allocation6 + $0x600] sm:$0xff]
    %v904 = vld [vmem:[#allocation6 + $0x608] sm:$0xff]
    %v905 = vld [vmem:[#allocation6 + $0x610] sm:$0xff]
    %v906 = vld [vmem:[#allocation6 + $0x618] sm:$0xff]
    %v907 = vld [vmem:[#allocation6 + $0x620] sm:$0xff]
    %v908 = vld [vmem:[#allocation6 + $0x628] sm:$0xff]
    %v909 = vld [vmem:[#allocation6 + $0x630] sm:$0xff]
    %v910 = vld [vmem:[#allocation6 + $0x638] sm:$0xff]
    %v911 = vld [vmem:[#allocation6 + $0x640] sm:$0xff]
    %v912 = vld [vmem:[#allocation6 + $0x648] sm:$0xff]
    %v913 = vld [vmem:[#allocation6 + $0x650] sm:$0xff]
    %v914 = vld [vmem:[#allocation6 + $0x658] sm:$0xff]
    %v915 = vld [vmem:[#allocation6 + $0x660] sm:$0xff]
    %v916 = vld [vmem:[#allocation6 + $0x668] sm:$0xff]
    %v917 = vld [vmem:[#allocation6 + $0x670] sm:$0xff]
    %v918 = vld [vmem:[#allocation6 + $0x678] sm:$0xff]
    %v919 = vld [vmem:[#allocation6 + $0x680] sm:$0xff]
    %v920 = vld [vmem:[#allocation6 + $0x688] sm:$0xff]
    %v921 = vld [vmem:[#allocation6 + $0x690] sm:$0xff]
    %v922 = vld [vmem:[#allocation6 + $0x698] sm:$0xff]
    %v923 = vld [vmem:[#allocation6 + $0x6a0] sm:$0xff]
    %v924 = vld [vmem:[#allocation6 + $0x6a8] sm:$0xff]
    %v925 = vld [vmem:[#allocation6 + $0x6b0] sm:$0xff]
    %v926 = vld [vmem:[#allocation6 + $0x6b8] sm:$0xff]
    %v927 = vld [vmem:[#allocation6 + $0x6c0] sm:$0xff]
    %v928 = vld [vmem:[#allocation6 + $0x6c8] sm:$0xff]
    %v929 = vld [vmem:[#allocation6 + $0x6d0] sm:$0xff]
    %v930 = vld [vmem:[#allocation6 + $0x6d8] sm:$0xff]
    %v931 = vld [vmem:[#allocation6 + $0x6e0] sm:$0xff]
    %v932 = vld [vmem:[#allocation6 + $0x6e8] sm:$0xff]
    %v933 = vld [vmem:[#allocation6 + $0x6f0] sm:$0xff]
    %v934 = vld [vmem:[#allocation6 + $0x6f8] sm:$0xff]
    %v935 = vld [vmem:[#allocation6 + $0x700] sm:$0xff]
    %v936 = vld [vmem:[#allocation6 + $0x708] sm:$0xff]
    %v937 = vld [vmem:[#allocation6 + $0x710] sm:$0xff]
    %v938 = vld [vmem:[#allocation6 + $0x718] sm:$0xff]
    %v939 = vld [vmem:[#allocation6 + $0x720] sm:$0xff]
    %v940 = vld [vmem:[#allocation6 + $0x728] sm:$0xff]
    %v941 = vld [vmem:[#allocation6 + $0x730] sm:$0xff]
    %v942 = vld [vmem:[#allocation6 + $0x738] sm:$0xff]
    %v943 = vld [vmem:[#allocation6 + $0x740] sm:$0xff]
    %v944 = vld [vmem:[#allocation6 + $0x748] sm:$0xff]
    %v945 = vld [vmem:[#allocation6 + $0x750] sm:$0xff]
    %v946 = vld [vmem:[#allocation6 + $0x758] sm:$0xff]
    %v947 = vld [vmem:[#allocation6 + $0x760] sm:$0xff]
    %v948 = vld [vmem:[#allocation6 + $0x768] sm:$0xff]
    %v949 = vld [vmem:[#allocation6 + $0x770] sm:$0xff]
    %v950 = vld [vmem:[#allocation6 + $0x778] sm:$0xff]
    %v951 = vld [vmem:[#allocation6 + $0x780] sm:$0xff]
    %v952 = vld [vmem:[#allocation6 + $0x788] sm:$0xff]
    %v953 = vld [vmem:[#allocation6 + $0x790] sm:$0xff]
    %v954 = vld [vmem:[#allocation6 + $0x798] sm:$0xff]
    %v955 = vld [vmem:[#allocation6 + $0x7a0] sm:$0xff]
    %v956 = vld [vmem:[#allocation6 + $0x7a8] sm:$0xff]
    %v957 = vld [vmem:[#allocation6 + $0x7b0] sm:$0xff]
    %v958 = vld [vmem:[#allocation6 + $0x7b8] sm:$0xff]
    %v959 = vld [vmem:[#allocation6 + $0x7c0] sm:$0xff]
    %v960 = vld [vmem:[#allocation6 + $0x7c8] sm:$0xff]
    %v961 = vld [vmem:[#allocation6 + $0x7d0] sm:$0xff]
    %v962 = vld [vmem:[#allocation6 + $0x7d8] sm:$0xff]
    %v963 = vld [vmem:[#allocation6 + $0x7e0] sm:$0xff]
    %v964 = vld [vmem:[#allocation6 + $0x7e8] sm:$0xff]
    %v965 = vld [vmem:[#allocation6 + $0x7f0] sm:$0xff]
    %v966 = vld [vmem:[#allocation6 + $0x7f8] sm:$0xff]
    %v967 = vld [vmem:[#allocation6 + $0x800] sm:$0xff]
    %v968 = vld [vmem:[#allocation6 + $0x808] sm:$0xff]
    %v969 = vld [vmem:[#allocation6 + $0x810] sm:$0xff]
    %v970 = vld [vmem:[#allocation6 + $0x818] sm:$0xff]
    %v971 = vld [vmem:[#allocation6 + $0x820] sm:$0xff]
    %v972 = vld [vmem:[#allocation6 + $0x828] sm:$0xff]
    %v973 = vld [vmem:[#allocation6 + $0x830] sm:$0xff]
    %v974 = vld [vmem:[#allocation6 + $0x838] sm:$0xff]
    %v975 = vld [vmem:[#allocation6 + $0x840] sm:$0xff]
    %v976 = vld [vmem:[#allocation6 + $0x848] sm:$0xff]
    %v977 = vld [vmem:[#allocation6 + $0x850] sm:$0xff]
    %v978 = vld [vmem:[#allocation6 + $0x858] sm:$0xff]
    %v979 = vld [vmem:[#allocation6 + $0x860] sm:$0xff]
    %v980 = vld [vmem:[#allocation6 + $0x868] sm:$0xff]
    %v981 = vld [vmem:[#allocation6 + $0x870] sm:$0xff]
    %v982 = vld [vmem:[#allocation6 + $0x878] sm:$0xff]
    %v983 = vld [vmem:[#allocation6 + $0x880] sm:$0xff]
    %v984 = vld [vmem:[#allocation6 + $0x888] sm:$0xff]
    %v985 = vld [vmem:[#allocation6 + $0x890] sm:$0xff]
    %v986 = vld [vmem:[#allocation6 + $0x898] sm:$0xff]
    %v987 = vld [vmem:[#allocation6 + $0x8a0] sm:$0xff]
    %v988 = vld [vmem:[#allocation6 + $0x8a8] sm:$0xff]
    %v989 = vld [vmem:[#allocation6 + $0x8b0] sm:$0xff]
    %v990 = vld [vmem:[#allocation6 + $0x8b8] sm:$0xff]
    %v991 = vld [vmem:[#allocation6 + $0x8c0] sm:$0xff]
    %v992 = vld [vmem:[#allocation6 + $0x8c8] sm:$0xff]
    %v993 = vld [vmem:[#allocation6 + $0x8d0] sm:$0xff]
    %v994 = vld [vmem:[#allocation6 + $0x8d8] sm:$0xff]
    %v995 = vld [vmem:[#allocation6 + $0x8e0] sm:$0xff]
    %v996 = vld [vmem:[#allocation6 + $0x8e8] sm:$0xff]
    %v997 = vld [vmem:[#allocation6 + $0x8f0] sm:$0xff]
    %v998 = vld [vmem:[#allocation6 + $0x8f8] sm:$0xff]
    %v999 = vld [vmem:[#allocation6 + $0x900] sm:$0xff]
    %v1000 = vld [vmem:[#allocation6 + $0x908] sm:$0xff]
    %v1001 = vld [vmem:[#allocation6 + $0x910] sm:$0xff]
    %v1002 = vld [vmem:[#allocation6 + $0x918] sm:$0xff]
    %v1003 = vld [vmem:[#allocation6 + $0x920] sm:$0xff]
    %v1004 = vld [vmem:[#allocation6 + $0x928] sm:$0xff]
    %v1005 = vld [vmem:[#allocation6 + $0x930] sm:$0xff]
    %v1006 = vld [vmem:[#allocation6 + $0x938] sm:$0xff]
    %v1007 = vld [vmem:[#allocation6 + $0x940] sm:$0xff]
    %v1008 = vld [vmem:[#allocation6 + $0x948] sm:$0xff]
    %v1009 = vld [vmem:[#allocation6 + $0x950] sm:$0xff]
    %v1010 = vld [vmem:[#allocation6 + $0x958] sm:$0xff]
    %v1011 = vld [vmem:[#allocation6 + $0x960] sm:$0xff]
    %v1012 = vld [vmem:[#allocation6 + $0x968] sm:$0xff]
    %v1013 = vld [vmem:[#allocation6 + $0x970] sm:$0xff]
    %v1014 = vld [vmem:[#allocation6 + $0x978] sm:$0xff]
    %v1015 = vld [vmem:[#allocation6 + $0x980] sm:$0xff]
    %v1016 = vld [vmem:[#allocation6 + $0x988] sm:$0xff]
    %v1017 = vld [vmem:[#allocation6 + $0x990] sm:$0xff]
    %v1018 = vld [vmem:[#allocation6 + $0x998] sm:$0xff]
    %v1019 = vld [vmem:[#allocation6 + $0x9a0] sm:$0xff]
    %v1020 = vld [vmem:[#allocation6 + $0x9a8] sm:$0xff]
    %v1021 = vld [vmem:[#allocation6 + $0x9b0] sm:$0xff]
    %v1022 = vld [vmem:[#allocation6 + $0x9b8] sm:$0xff]
    %v1023 = vld [vmem:[#allocation6 + $0x9c0] sm:$0xff]
    %v1024 = vld [vmem:[#allocation6 + $0x9c8] sm:$0xff]
    %v1025 = vld [vmem:[#allocation6 + $0x9d0] sm:$0xff]
    %v1026 = vld [vmem:[#allocation6 + $0x9d8] sm:$0xff]
    %v1027 = vld [vmem:[#allocation6 + $0x9e0] sm:$0xff]
    %v1028 = vld [vmem:[#allocation6 + $0x9e8] sm:$0xff]
    %v1029 = vld [vmem:[#allocation6 + $0x9f0] sm:$0xff]
    %v1030 = vld [vmem:[#allocation6 + $0x9f8] sm:$0xff]
    %v1031 = vld [vmem:[#allocation6 + $0xa00] sm:$0xff]
    %v1032 = vld [vmem:[#allocation6 + $0xa08] sm:$0xff]
    %v1033 = vld [vmem:[#allocation6 + $0xa10] sm:$0xff]
    %v1034 = vld [vmem:[#allocation6 + $0xa18] sm:$0xff]
    %v1035 = vld [vmem:[#allocation6 + $0xa20] sm:$0xff]
    %v1036 = vld [vmem:[#allocation6 + $0xa28] sm:$0xff]
    %v1037 = vld [vmem:[#allocation6 + $0xa30] sm:$0xff]
    %v1038 = vld [vmem:[#allocation6 + $0xa38] sm:$0xff]
    %v1039 = vld [vmem:[#allocation6 + $0xa40] sm:$0xff]
    %v1040 = vld [vmem:[#allocation6 + $0xa48] sm:$0xff]
    %v1041 = vld [vmem:[#allocation6 + $0xa50] sm:$0xff]
    %v1042 = vld [vmem:[#allocation6 + $0xa58] sm:$0xff]
    %v1043 = vld [vmem:[#allocation6 + $0xa60] sm:$0xff]
    %v1044 = vld [vmem:[#allocation6 + $0xa68] sm:$0xff]
    %v1045 = vld [vmem:[#allocation6 + $0xa70] sm:$0xff]
    %v1046 = vld [vmem:[#allocation6 + $0xa78] sm:$0xff]
    %v1047 = vld [vmem:[#allocation6 + $0xa80] sm:$0xff]
    %v1048 = vld [vmem:[#allocation6 + $0xa88] sm:$0xff]
    %v1049 = vld [vmem:[#allocation6 + $0xa90] sm:$0xff]
    %v1050 = vld [vmem:[#allocation6 + $0xa98] sm:$0xff]
    %v1051 = vld [vmem:[#allocation6 + $0xaa0] sm:$0xff]
    %v1052 = vld [vmem:[#allocation6 + $0xaa8] sm:$0xff]
    %v1053 = vld [vmem:[#allocation6 + $0xab0] sm:$0xff]
    %v1054 = vld [vmem:[#allocation6 + $0xab8] sm:$0xff]
    %v1055 = vld [vmem:[#allocation6 + $0xac0] sm:$0xff]
    %v1056 = vld [vmem:[#allocation6 + $0xac8] sm:$0xff]
    %v1057 = vld [vmem:[#allocation6 + $0xad0] sm:$0xff]
    %v1058 = vld [vmem:[#allocation6 + $0xad8] sm:$0xff]
    %v1059 = vld [vmem:[#allocation6 + $0xae0] sm:$0xff]
    %v1060 = vld [vmem:[#allocation6 + $0xae8] sm:$0xff]
    %v1061 = vld [vmem:[#allocation6 + $0xaf0] sm:$0xff]
    %v1062 = vld [vmem:[#allocation6 + $0xaf8] sm:$0xff]
    %v1063 = vld [vmem:[#allocation6 + $0xb00] sm:$0xff]
    %v1064 = vld [vmem:[#allocation6 + $0xb08] sm:$0xff]
    %v1065 = vld [vmem:[#allocation6 + $0xb10] sm:$0xff]
    %v1066 = vld [vmem:[#allocation6 + $0xb18] sm:$0xff]
    %v1067 = vld [vmem:[#allocation6 + $0xb20] sm:$0xff]
    %v1068 = vld [vmem:[#allocation6 + $0xb28] sm:$0xff]
    %v1069 = vld [vmem:[#allocation6 + $0xb30] sm:$0xff]
    %v1070 = vld [vmem:[#allocation6 + $0xb38] sm:$0xff]
    %v1071 = vld [vmem:[#allocation6 + $0xb40] sm:$0xff]
    %v1072 = vld [vmem:[#allocation6 + $0xb48] sm:$0xff]
    %v1073 = vld [vmem:[#allocation6 + $0xb50] sm:$0xff]
    %v1074 = vld [vmem:[#allocation6 + $0xb58] sm:$0xff]
    %v1075 = vld [vmem:[#allocation6 + $0xb60] sm:$0xff]
    %v1076 = vld [vmem:[#allocation6 + $0xb68] sm:$0xff]
    %v1077 = vld [vmem:[#allocation6 + $0xb70] sm:$0xff]
    %v1078 = vld [vmem:[#allocation6 + $0xb78] sm:$0xff]
    %v1079 = vld [vmem:[#allocation6 + $0xb80] sm:$0xff]
    %v1080 = vld [vmem:[#allocation6 + $0xb88] sm:$0xff]
    %v1081 = vld [vmem:[#allocation6 + $0xb90] sm:$0xff]
    %v1082 = vld [vmem:[#allocation6 + $0xb98] sm:$0xff]
    %v1083 = vld [vmem:[#allocation6 + $0xba0] sm:$0xff]
    %v1084 = vld [vmem:[#allocation6 + $0xba8] sm:$0xff]
    %v1085 = vld [vmem:[#allocation6 + $0xbb0] sm:$0xff]
    %v1086 = vld [vmem:[#allocation6 + $0xbb8] sm:$0xff]
    %v1087 = vld [vmem:[#allocation6 + $0xbc0] sm:$0xff]
    %v1088 = vld [vmem:[#allocation6 + $0xbc8] sm:$0xff]
    %v1089 = vld [vmem:[#allocation6 + $0xbd0] sm:$0xff]
    %v1090 = vld [vmem:[#allocation6 + $0xbd8] sm:$0xff]
    %v1091 = vld [vmem:[#allocation6 + $0xbe0] sm:$0xff]
    %v1092 = vld [vmem:[#allocation6 + $0xbe8] sm:$0xff]
    %v1093 = vld [vmem:[#allocation6 + $0xbf0] sm:$0xff]
    %v1094 = vld [vmem:[#allocation6 + $0xbf8] sm:$0xff]
    %v1095 = vld [vmem:[#allocation6 + $0xc00] sm:$0xff]
    %v1096 = vld [vmem:[#allocation6 + $0xc08] sm:$0xff]
    %v1097 = vld [vmem:[#allocation6 + $0xc10] sm:$0xff]
    %v1098 = vld [vmem:[#allocation6 + $0xc18] sm:$0xff]
    %v1099 = vld [vmem:[#allocation6 + $0xc20] sm:$0xff]
    %v1100 = vld [vmem:[#allocation6 + $0xc28] sm:$0xff]
    %v1101 = vld [vmem:[#allocation6 + $0xc30] sm:$0xff]
    %v1102 = vld [vmem:[#allocation6 + $0xc38] sm:$0xff]
    %v1103 = vld [vmem:[#allocation6 + $0xc40] sm:$0xff]
    %v1104 = vld [vmem:[#allocation6 + $0xc48] sm:$0xff]
    %v1105 = vld [vmem:[#allocation6 + $0xc50] sm:$0xff]
    %v1106 = vld [vmem:[#allocation6 + $0xc58] sm:$0xff]
    %v1107 = vld [vmem:[#allocation6 + $0xc60] sm:$0xff]
    %v1108 = vld [vmem:[#allocation6 + $0xc68] sm:$0xff]
    %v1109 = vld [vmem:[#allocation6 + $0xc70] sm:$0xff]
    %v1110 = vld [vmem:[#allocation6 + $0xc78] sm:$0xff]
    %v1111 = vld [vmem:[#allocation6 + $0xc80] sm:$0xff]
    %v1112 = vld [vmem:[#allocation6 + $0xc88] sm:$0xff]
    %v1113 = vld [vmem:[#allocation6 + $0xc90] sm:$0xff]
    %v1114 = vld [vmem:[#allocation6 + $0xc98] sm:$0xff]
    %v1115 = vld [vmem:[#allocation6 + $0xca0] sm:$0xff]
    %v1116 = vld [vmem:[#allocation6 + $0xca8] sm:$0xff]
    %v1117 = vld [vmem:[#allocation6 + $0xcb0] sm:$0xff]
    %v1118 = vld [vmem:[#allocation6 + $0xcb8] sm:$0xff]
    %v1119 = vld [vmem:[#allocation6 + $0xcc0] sm:$0xff]
    %v1120 = vld [vmem:[#allocation6 + $0xcc8] sm:$0xff]
    %v1121 = vld [vmem:[#allocation6 + $0xcd0] sm:$0xff]
    %v1122 = vld [vmem:[#allocation6 + $0xcd8] sm:$0xff]
    %v1123 = vld [vmem:[#allocation6 + $0xce0] sm:$0xff]
    %v1124 = vld [vmem:[#allocation6 + $0xce8] sm:$0xff]
    %v1125 = vld [vmem:[#allocation6 + $0xcf0] sm:$0xff]
    %v1126 = vld [vmem:[#allocation6 + $0xcf8] sm:$0xff]
    %v1127 = vld [vmem:[#allocation6 + $0xd00] sm:$0xff]
    %v1128 = vld [vmem:[#allocation6 + $0xd08] sm:$0xff]
    %v1129 = vld [vmem:[#allocation6 + $0xd10] sm:$0xff]
    %v1130 = vld [vmem:[#allocation6 + $0xd18] sm:$0xff]
    %v1131 = vld [vmem:[#allocation6 + $0xd20] sm:$0xff]
    %v1132 = vld [vmem:[#allocation6 + $0xd28] sm:$0xff]
    %v1133 = vld [vmem:[#allocation6 + $0xd30] sm:$0xff]
    %v1134 = vld [vmem:[#allocation6 + $0xd38] sm:$0xff]
    %v1135 = vld [vmem:[#allocation6 + $0xd40] sm:$0xff]
    %v1136 = vld [vmem:[#allocation6 + $0xd48] sm:$0xff]
    %v1137 = vld [vmem:[#allocation6 + $0xd50] sm:$0xff]
    %v1138 = vld [vmem:[#allocation6 + $0xd58] sm:$0xff]
    %v1139 = vld [vmem:[#allocation6 + $0xd60] sm:$0xff]
    %v1140 = vld [vmem:[#allocation6 + $0xd68] sm:$0xff]
    %v1141 = vld [vmem:[#allocation6 + $0xd70] sm:$0xff]
    %v1142 = vld [vmem:[#allocation6 + $0xd78] sm:$0xff]
    %v1143 = vld [vmem:[#allocation6 + $0xd80] sm:$0xff]
    %v1144 = vld [vmem:[#allocation6 + $0xd88] sm:$0xff]
    %v1145 = vld [vmem:[#allocation6 + $0xd90] sm:$0xff]
    %v1146 = vld [vmem:[#allocation6 + $0xd98] sm:$0xff]
    %v1147 = vld [vmem:[#allocation6 + $0xda0] sm:$0xff]
    %v1148 = vld [vmem:[#allocation6 + $0xda8] sm:$0xff]
    %v1149 = vld [vmem:[#allocation6 + $0xdb0] sm:$0xff]
    %v1150 = vld [vmem:[#allocation6 + $0xdb8] sm:$0xff]
    %v1151 = vld [vmem:[#allocation6 + $0xdc0] sm:$0xff]
    %v1152 = vld [vmem:[#allocation6 + $0xdc8] sm:$0xff]
    %v1153 = vld [vmem:[#allocation6 + $0xdd0] sm:$0xff]
    %v1154 = vld [vmem:[#allocation6 + $0xdd8] sm:$0xff]
    %v1155 = vld [vmem:[#allocation6 + $0xde0] sm:$0xff]
    %v1156 = vld [vmem:[#allocation6 + $0xde8] sm:$0xff]
    %v1157 = vld [vmem:[#allocation6 + $0xdf0] sm:$0xff]
    %v1158 = vld [vmem:[#allocation6 + $0xdf8] sm:$0xff]
    %v1159 = vld [vmem:[#allocation6 + $0xe00] sm:$0xff]
    %v1160 = vld [vmem:[#allocation6 + $0xe08] sm:$0xff]
    %v1161 = vld [vmem:[#allocation6 + $0xe10] sm:$0xff]
    %v1162 = vld [vmem:[#allocation6 + $0xe18] sm:$0xff]
    %v1163 = vld [vmem:[#allocation6 + $0xe20] sm:$0xff]
    %v1164 = vld [vmem:[#allocation6 + $0xe28] sm:$0xff]
    %v1165 = vld [vmem:[#allocation6 + $0xe30] sm:$0xff]
    %v1166 = vld [vmem:[#allocation6 + $0xe38] sm:$0xff]
    %v1167 = vld [vmem:[#allocation6 + $0xe40] sm:$0xff]
    %v1168 = vld [vmem:[#allocation6 + $0xe48] sm:$0xff]
    %v1169 = vld [vmem:[#allocation6 + $0xe50] sm:$0xff]
    %v1170 = vld [vmem:[#allocation6 + $0xe58] sm:$0xff]
    %v1171 = vld [vmem:[#allocation6 + $0xe60] sm:$0xff]
    %v1172 = vld [vmem:[#allocation6 + $0xe68] sm:$0xff]
    %v1173 = vld [vmem:[#allocation6 + $0xe70] sm:$0xff]
    %v1174 = vld [vmem:[#allocation6 + $0xe78] sm:$0xff]
    %v1175 = vld [vmem:[#allocation6 + $0xe80] sm:$0xff]
    %v1176 = vld [vmem:[#allocation6 + $0xe88] sm:$0xff]
    %v1177 = vld [vmem:[#allocation6 + $0xe90] sm:$0xff]
    %v1178 = vld [vmem:[#allocation6 + $0xe98] sm:$0xff]
    %v1179 = vld [vmem:[#allocation6 + $0xea0] sm:$0xff]
    %v1180 = vld [vmem:[#allocation6 + $0xea8] sm:$0xff]
    %v1181 = vld [vmem:[#allocation6 + $0xeb0] sm:$0xff]
    %v1182 = vld [vmem:[#allocation6 + $0xeb8] sm:$0xff]
    %v1183 = vld [vmem:[#allocation6 + $0xec0] sm:$0xff]
    %v1184 = vld [vmem:[#allocation6 + $0xec8] sm:$0xff]
    %v1185 = vld [vmem:[#allocation6 + $0xed0] sm:$0xff]
    %v1186 = vld [vmem:[#allocation6 + $0xed8] sm:$0xff]
    %v1187 = vld [vmem:[#allocation6 + $0xee0] sm:$0xff]
    %v1188 = vld [vmem:[#allocation6 + $0xee8] sm:$0xff]
    %v1189 = vld [vmem:[#allocation6 + $0xef0] sm:$0xff]
    %v1190 = vld [vmem:[#allocation6 + $0xef8] sm:$0xff]
    %v1191 = vld [vmem:[#allocation6 + $0xf00] sm:$0xff]
    %v1192 = vld [vmem:[#allocation6 + $0xf08] sm:$0xff]
    %v1193 = vld [vmem:[#allocation6 + $0xf10] sm:$0xff]
    %v1194 = vld [vmem:[#allocation6 + $0xf18] sm:$0xff]
    %v1195 = vld [vmem:[#allocation6 + $0xf20] sm:$0xff]
    %v1196 = vld [vmem:[#allocation6 + $0xf28] sm:$0xff]
    %v1197 = vld [vmem:[#allocation6 + $0xf30] sm:$0xff]
    %v1198 = vld [vmem:[#allocation6 + $0xf38] sm:$0xff]
    %v1199 = vld [vmem:[#allocation6 + $0xf40] sm:$0xff]
    %v1200 = vld [vmem:[#allocation6 + $0xf48] sm:$0xff]
    %v1201 = vld [vmem:[#allocation6 + $0xf50] sm:$0xff]
    %v1202 = vld [vmem:[#allocation6 + $0xf58] sm:$0xff]
    %v1203 = vld [vmem:[#allocation6 + $0xf60] sm:$0xff]
    %v1204 = vld [vmem:[#allocation6 + $0xf68] sm:$0xff]
    %v1205 = vld [vmem:[#allocation6 + $0xf70] sm:$0xff]
    %v1206 = vld [vmem:[#allocation6 + $0xf78] sm:$0xff]
    %v1207 = vld [vmem:[#allocation6 + $0xf80] sm:$0xff]
    %v1208 = vld [vmem:[#allocation6 + $0xf88] sm:$0xff]
    %v1209 = vld [vmem:[#allocation6 + $0xf90] sm:$0xff]
    %v1210 = vld [vmem:[#allocation6 + $0xf98] sm:$0xff]
    %v1211 = vld [vmem:[#allocation6 + $0xfa0] sm:$0xff]
    %v1212 = vld [vmem:[#allocation6 + $0xfa8] sm:$0xff]
    %v1213 = vld [vmem:[#allocation6 + $0xfb0] sm:$0xff]
    %v1214 = vld [vmem:[#allocation6 + $0xfb8] sm:$0xff]
    %v1215 = vld [vmem:[#allocation6 + $0xfc0] sm:$0xff]
    %v1216 = vld [vmem:[#allocation6 + $0xfc8] sm:$0xff]
    %v1217 = vld [vmem:[#allocation6 + $0xfd0] sm:$0xff]
    %v1218 = vld [vmem:[#allocation6 + $0xfd8] sm:$0xff]
    %v1219 = vld [vmem:[#allocation6 + $0xfe0] sm:$0xff]
    %v1220 = vld [vmem:[#allocation6 + $0xfe8] sm:$0xff]
    %v1221 = vld [vmem:[#allocation6 + $0xff0] sm:$0xff]
    %v1222 = vld [vmem:[#allocation6 + $0xff8] sm:$0xff]
    %v1223 = vld [vmem:[#allocation7] sm:$0xff]
    %v1225 = vlaneseq
    %v1226 = vshrl.u32 %v1225, 7
    %v1227 = vsub.s32 0, %v1226
    %v1228 = vrot.slane %v1223, %v1227
    %v1229 = vlaneseq
    %v1230 = vshrl.u32 %v1229, 7
    %v1231 = vsub.s32 1, %v1230
    %v1232 = vrot.slane %v1223, %v1231
    %v1233 = vlaneseq
    %v1234 = vshrl.u32 %v1233, 7
    %v1235 = vsub.s32 2, %v1234
    %v1236 = vrot.slane %v1223, %v1235
    %v1237 = vlaneseq
    %v1238 = vshrl.u32 %v1237, 7
    %v1239 = vsub.s32 3, %v1238
    %v1240 = vrot.slane %v1223, %v1239
    %v1241 = vlaneseq
    %v1242 = vshrl.u32 %v1241, 7
    %v1243 = vsub.s32 4, %v1242
    %v1244 = vrot.slane %v1223, %v1243
    %v1245 = vlaneseq
    %v1246 = vshrl.u32 %v1245, 7
    %v1247 = vsub.s32 5, %v1246
    %v1248 = vrot.slane %v1223, %v1247
    %v1249 = vlaneseq
    %v1250 = vshrl.u32 %v1249, 7
    %v1251 = vsub.s32 6, %v1250
    %v1252 = vrot.slane %v1223, %v1251
    %v1253 = vlaneseq
    %v1254 = vshrl.u32 %v1253, 7
    %v1255 = vsub.s32 7, %v1254
    %v1256 = vrot.slane %v1223, %v1255
    %v1777 = vunpack.c.l.b16 %v711
    %v1778 = vunpack.c.h.b16 %v711
    %v1779 = vunpack.c.l.b16 %v712
    %v1780 = vunpack.c.h.b16 %v712
    %v1781 = vunpack.c.l.b16 %v713
    %v1782 = vunpack.c.h.b16 %v713
    %v1783 = vunpack.c.l.b16 %v714
    %v1784 = vunpack.c.h.b16 %v714
    %v1785 = vunpack.c.l.b16 %v715
    %v1786 = vunpack.c.h.b16 %v715
    %v1787 = vunpack.c.l.b16 %v716
    %v1788 = vunpack.c.h.b16 %v716
    %v1789 = vunpack.c.l.b16 %v717
    %v1790 = vunpack.c.h.b16 %v717
    %v1791 = vunpack.c.l.b16 %v718
    %v1792 = vunpack.c.h.b16 %v718
    %v1793 = vunpack.c.l.b16 %v719
    %v1794 = vunpack.c.h.b16 %v719
    %v1795 = vunpack.c.l.b16 %v720
    %v1796 = vunpack.c.h.b16 %v720
    %v1797 = vunpack.c.l.b16 %v721
    %v1798 = vunpack.c.h.b16 %v721
    %v1799 = vunpack.c.l.b16 %v722
    %v1800 = vunpack.c.h.b16 %v722
    %v1801 = vunpack.c.l.b16 %v723
    %v1802 = vunpack.c.h.b16 %v723
    %v1803 = vunpack.c.l.b16 %v724
    %v1804 = vunpack.c.h.b16 %v724
    %v1805 = vunpack.c.l.b16 %v725
    %v1806 = vunpack.c.h.b16 %v725
    %v1807 = vunpack.c.l.b16 %v726
    %v1808 = vunpack.c.h.b16 %v726
    %v1809 = vunpack.c.l.b16 %v727
    %v1810 = vunpack.c.h.b16 %v727
    %v1811 = vunpack.c.l.b16 %v728
    %v1812 = vunpack.c.h.b16 %v728
    %v1813 = vunpack.c.l.b16 %v729
    %v1814 = vunpack.c.h.b16 %v729
    %v1815 = vunpack.c.l.b16 %v730
    %v1816 = vunpack.c.h.b16 %v730
    %v1817 = vunpack.c.l.b16 %v731
    %v1818 = vunpack.c.h.b16 %v731
    %v1819 = vunpack.c.l.b16 %v732
    %v1820 = vunpack.c.h.b16 %v732
    %v1821 = vunpack.c.l.b16 %v733
    %v1822 = vunpack.c.h.b16 %v733
    %v1823 = vunpack.c.l.b16 %v734
    %v1824 = vunpack.c.h.b16 %v734
    %v1825 = vunpack.c.l.b16 %v735
    %v1826 = vunpack.c.h.b16 %v735
    %v1827 = vunpack.c.l.b16 %v736
    %v1828 = vunpack.c.h.b16 %v736
    %v1829 = vunpack.c.l.b16 %v737
    %v1830 = vunpack.c.h.b16 %v737
    %v1831 = vunpack.c.l.b16 %v738
    %v1832 = vunpack.c.h.b16 %v738
    %v1833 = vunpack.c.l.b16 %v739
    %v1834 = vunpack.c.h.b16 %v739
    %v1835 = vunpack.c.l.b16 %v740
    %v1836 = vunpack.c.h.b16 %v740
    %v1837 = vunpack.c.l.b16 %v741
    %v1838 = vunpack.c.h.b16 %v741
    %v1839 = vunpack.c.l.b16 %v742
    %v1840 = vunpack.c.h.b16 %v742
    %v1841 = vunpack.c.l.b16 %v743
    %v1842 = vunpack.c.h.b16 %v743
    %v1843 = vunpack.c.l.b16 %v744
    %v1844 = vunpack.c.h.b16 %v744
    %v1845 = vunpack.c.l.b16 %v745
    %v1846 = vunpack.c.h.b16 %v745
    %v1847 = vunpack.c.l.b16 %v746
    %v1848 = vunpack.c.h.b16 %v746
    %v1849 = vunpack.c.l.b16 %v747
    %v1850 = vunpack.c.h.b16 %v747
    %v1851 = vunpack.c.l.b16 %v748
    %v1852 = vunpack.c.h.b16 %v748
    %v1853 = vunpack.c.l.b16 %v749
    %v1854 = vunpack.c.h.b16 %v749
    %v1855 = vunpack.c.l.b16 %v750
    %v1856 = vunpack.c.h.b16 %v750
    %v1857 = vunpack.c.l.b16 %v751
    %v1858 = vunpack.c.h.b16 %v751
    %v1859 = vunpack.c.l.b16 %v752
    %v1860 = vunpack.c.h.b16 %v752
    %v1861 = vunpack.c.l.b16 %v753
    %v1862 = vunpack.c.h.b16 %v753
    %v1863 = vunpack.c.l.b16 %v754
    %v1864 = vunpack.c.h.b16 %v754
    %v1865 = vunpack.c.l.b16 %v755
    %v1866 = vunpack.c.h.b16 %v755
    %v1867 = vunpack.c.l.b16 %v756
    %v1868 = vunpack.c.h.b16 %v756
    %v1869 = vunpack.c.l.b16 %v757
    %v1870 = vunpack.c.h.b16 %v757
    %v1871 = vunpack.c.l.b16 %v758
    %v1872 = vunpack.c.h.b16 %v758
    %v1873 = vunpack.c.l.b16 %v759
    %v1874 = vunpack.c.h.b16 %v759
    %v1875 = vunpack.c.l.b16 %v760
    %v1876 = vunpack.c.h.b16 %v760
    %v1877 = vunpack.c.l.b16 %v761
    %v1878 = vunpack.c.h.b16 %v761
    %v1879 = vunpack.c.l.b16 %v762
    %v1880 = vunpack.c.h.b16 %v762
    %v1881 = vunpack.c.l.b16 %v763
    %v1882 = vunpack.c.h.b16 %v763
    %v1883 = vunpack.c.l.b16 %v764
    %v1884 = vunpack.c.h.b16 %v764
    %v1885 = vunpack.c.l.b16 %v765
    %v1886 = vunpack.c.h.b16 %v765
    %v1887 = vunpack.c.l.b16 %v766
    %v1888 = vunpack.c.h.b16 %v766
    %v1889 = vunpack.c.l.b16 %v767
    %v1890 = vunpack.c.h.b16 %v767
    %v1891 = vunpack.c.l.b16 %v768
    %v1892 = vunpack.c.h.b16 %v768
    %v1893 = vunpack.c.l.b16 %v769
    %v1894 = vunpack.c.h.b16 %v769
    %v1895 = vunpack.c.l.b16 %v770
    %v1896 = vunpack.c.h.b16 %v770
    %v1897 = vunpack.c.l.b16 %v771
    %v1898 = vunpack.c.h.b16 %v771
    %v1899 = vunpack.c.l.b16 %v772
    %v1900 = vunpack.c.h.b16 %v772
    %v1901 = vunpack.c.l.b16 %v773
    %v1902 = vunpack.c.h.b16 %v773
    %v1903 = vunpack.c.l.b16 %v774
    %v1904 = vunpack.c.h.b16 %v774
    %v1905 = vunpack.c.l.b16 %v775
    %v1906 = vunpack.c.h.b16 %v775
    %v1907 = vunpack.c.l.b16 %v776
    %v1908 = vunpack.c.h.b16 %v776
    %v1909 = vunpack.c.l.b16 %v777
    %v1910 = vunpack.c.h.b16 %v777
    %v1911 = vunpack.c.l.b16 %v778
    %v1912 = vunpack.c.h.b16 %v778
    %v1913 = vunpack.c.l.b16 %v779
    %v1914 = vunpack.c.h.b16 %v779
    %v1915 = vunpack.c.l.b16 %v780
    %v1916 = vunpack.c.h.b16 %v780
    %v1917 = vunpack.c.l.b16 %v781
    %v1918 = vunpack.c.h.b16 %v781
    %v1919 = vunpack.c.l.b16 %v782
    %v1920 = vunpack.c.h.b16 %v782
    %v1921 = vunpack.c.l.b16 %v783
    %v1922 = vunpack.c.h.b16 %v783
    %v1923 = vunpack.c.l.b16 %v784
    %v1924 = vunpack.c.h.b16 %v784
    %v1925 = vunpack.c.l.b16 %v785
    %v1926 = vunpack.c.h.b16 %v785
    %v1927 = vunpack.c.l.b16 %v786
    %v1928 = vunpack.c.h.b16 %v786
    %v1929 = vunpack.c.l.b16 %v787
    %v1930 = vunpack.c.h.b16 %v787
    %v1931 = vunpack.c.l.b16 %v788
    %v1932 = vunpack.c.h.b16 %v788
    %v1933 = vunpack.c.l.b16 %v789
    %v1934 = vunpack.c.h.b16 %v789
    %v1935 = vunpack.c.l.b16 %v790
    %v1936 = vunpack.c.h.b16 %v790
    %v1937 = vunpack.c.l.b16 %v791
    %v1938 = vunpack.c.h.b16 %v791
    %v1939 = vunpack.c.l.b16 %v792
    %v1940 = vunpack.c.h.b16 %v792
    %v1941 = vunpack.c.l.b16 %v793
    %v1942 = vunpack.c.h.b16 %v793
    %v1943 = vunpack.c.l.b16 %v794
    %v1944 = vunpack.c.h.b16 %v794
    %v1945 = vunpack.c.l.b16 %v795
    %v1946 = vunpack.c.h.b16 %v795
    %v1947 = vunpack.c.l.b16 %v796
    %v1948 = vunpack.c.h.b16 %v796
    %v1949 = vunpack.c.l.b16 %v797
    %v1950 = vunpack.c.h.b16 %v797
    %v1951 = vunpack.c.l.b16 %v798
    %v1952 = vunpack.c.h.b16 %v798
    %v1953 = vunpack.c.l.b16 %v799
    %v1954 = vunpack.c.h.b16 %v799
    %v1955 = vunpack.c.l.b16 %v800
    %v1956 = vunpack.c.h.b16 %v800
    %v1957 = vunpack.c.l.b16 %v801
    %v1958 = vunpack.c.h.b16 %v801
    %v1959 = vunpack.c.l.b16 %v802
    %v1960 = vunpack.c.h.b16 %v802
    %v1961 = vunpack.c.l.b16 %v803
    %v1962 = vunpack.c.h.b16 %v803
    %v1963 = vunpack.c.l.b16 %v804
    %v1964 = vunpack.c.h.b16 %v804
    %v1965 = vunpack.c.l.b16 %v805
    %v1966 = vunpack.c.h.b16 %v805
    %v1967 = vunpack.c.l.b16 %v806
    %v1968 = vunpack.c.h.b16 %v806
    %v1969 = vunpack.c.l.b16 %v807
    %v1970 = vunpack.c.h.b16 %v807
    %v1971 = vunpack.c.l.b16 %v808
    %v1972 = vunpack.c.h.b16 %v808
    %v1973 = vunpack.c.l.b16 %v809
    %v1974 = vunpack.c.h.b16 %v809
    %v1975 = vunpack.c.l.b16 %v810
    %v1976 = vunpack.c.h.b16 %v810
    %v1977 = vunpack.c.l.b16 %v811
    %v1978 = vunpack.c.h.b16 %v811
    %v1979 = vunpack.c.l.b16 %v812
    %v1980 = vunpack.c.h.b16 %v812
    %v1981 = vunpack.c.l.b16 %v813
    %v1982 = vunpack.c.h.b16 %v813
    %v1983 = vunpack.c.l.b16 %v814
    %v1984 = vunpack.c.h.b16 %v814
    %v1985 = vunpack.c.l.b16 %v815
    %v1986 = vunpack.c.h.b16 %v815
    %v1987 = vunpack.c.l.b16 %v816
    %v1988 = vunpack.c.h.b16 %v816
    %v1989 = vunpack.c.l.b16 %v817
    %v1990 = vunpack.c.h.b16 %v817
    %v1991 = vunpack.c.l.b16 %v818
    %v1992 = vunpack.c.h.b16 %v818
    %v1993 = vunpack.c.l.b16 %v819
    %v1994 = vunpack.c.h.b16 %v819
    %v1995 = vunpack.c.l.b16 %v820
    %v1996 = vunpack.c.h.b16 %v820
    %v1997 = vunpack.c.l.b16 %v821
    %v1998 = vunpack.c.h.b16 %v821
    %v1999 = vunpack.c.l.b16 %v822
    %v2000 = vunpack.c.h.b16 %v822
    %v2001 = vunpack.c.l.b16 %v823
    %v2002 = vunpack.c.h.b16 %v823
    %v2003 = vunpack.c.l.b16 %v824
    %v2004 = vunpack.c.h.b16 %v824
    %v2005 = vunpack.c.l.b16 %v825
    %v2006 = vunpack.c.h.b16 %v825
    %v2007 = vunpack.c.l.b16 %v826
    %v2008 = vunpack.c.h.b16 %v826
    %v2009 = vunpack.c.l.b16 %v827
    %v2010 = vunpack.c.h.b16 %v827
    %v2011 = vunpack.c.l.b16 %v828
    %v2012 = vunpack.c.h.b16 %v828
    %v2013 = vunpack.c.l.b16 %v829
    %v2014 = vunpack.c.h.b16 %v829
    %v2015 = vunpack.c.l.b16 %v830
    %v2016 = vunpack.c.h.b16 %v830
    %v2017 = vunpack.c.l.b16 %v831
    %v2018 = vunpack.c.h.b16 %v831
    %v2019 = vunpack.c.l.b16 %v832
    %v2020 = vunpack.c.h.b16 %v832
    %v2021 = vunpack.c.l.b16 %v833
    %v2022 = vunpack.c.h.b16 %v833
    %v2023 = vunpack.c.l.b16 %v834
    %v2024 = vunpack.c.h.b16 %v834
    %v2025 = vunpack.c.l.b16 %v835
    %v2026 = vunpack.c.h.b16 %v835
    %v2027 = vunpack.c.l.b16 %v836
    %v2028 = vunpack.c.h.b16 %v836
    %v2029 = vunpack.c.l.b16 %v837
    %v2030 = vunpack.c.h.b16 %v837
    %v2031 = vunpack.c.l.b16 %v838
    %v2032 = vunpack.c.h.b16 %v838
    %v2033 = vunpack.c.l.b16 %v839
    %v2034 = vunpack.c.h.b16 %v839
    %v2035 = vunpack.c.l.b16 %v840
    %v2036 = vunpack.c.h.b16 %v840
    %v2037 = vunpack.c.l.b16 %v841
    %v2038 = vunpack.c.h.b16 %v841
    %v2039 = vunpack.c.l.b16 %v842
    %v2040 = vunpack.c.h.b16 %v842
    %v2041 = vunpack.c.l.b16 %v843
    %v2042 = vunpack.c.h.b16 %v843
    %v2043 = vunpack.c.l.b16 %v844
    %v2044 = vunpack.c.h.b16 %v844
    %v2045 = vunpack.c.l.b16 %v845
    %v2046 = vunpack.c.h.b16 %v845
    %v2047 = vunpack.c.l.b16 %v846
    %v2048 = vunpack.c.h.b16 %v846
    %v2049 = vunpack.c.l.b16 %v847
    %v2050 = vunpack.c.h.b16 %v847
    %v2051 = vunpack.c.l.b16 %v848
    %v2052 = vunpack.c.h.b16 %v848
    %v2053 = vunpack.c.l.b16 %v849
    %v2054 = vunpack.c.h.b16 %v849
    %v2055 = vunpack.c.l.b16 %v850
    %v2056 = vunpack.c.h.b16 %v850
    %v2057 = vunpack.c.l.b16 %v851
    %v2058 = vunpack.c.h.b16 %v851
    %v2059 = vunpack.c.l.b16 %v852
    %v2060 = vunpack.c.h.b16 %v852
    %v2061 = vunpack.c.l.b16 %v853
    %v2062 = vunpack.c.h.b16 %v853
    %v2063 = vunpack.c.l.b16 %v854
    %v2064 = vunpack.c.h.b16 %v854
    %v2065 = vunpack.c.l.b16 %v855
    %v2066 = vunpack.c.h.b16 %v855
    %v2067 = vunpack.c.l.b16 %v856
    %v2068 = vunpack.c.h.b16 %v856
    %v2069 = vunpack.c.l.b16 %v857
    %v2070 = vunpack.c.h.b16 %v857
    %v2071 = vunpack.c.l.b16 %v858
    %v2072 = vunpack.c.h.b16 %v858
    %v2073 = vunpack.c.l.b16 %v859
    %v2074 = vunpack.c.h.b16 %v859
    %v2075 = vunpack.c.l.b16 %v860
    %v2076 = vunpack.c.h.b16 %v860
    %v2077 = vunpack.c.l.b16 %v861
    %v2078 = vunpack.c.h.b16 %v861
    %v2079 = vunpack.c.l.b16 %v862
    %v2080 = vunpack.c.h.b16 %v862
    %v2081 = vunpack.c.l.b16 %v863
    %v2082 = vunpack.c.h.b16 %v863
    %v2083 = vunpack.c.l.b16 %v864
    %v2084 = vunpack.c.h.b16 %v864
    %v2085 = vunpack.c.l.b16 %v865
    %v2086 = vunpack.c.h.b16 %v865
    %v2087 = vunpack.c.l.b16 %v866
    %v2088 = vunpack.c.h.b16 %v866
    %v2089 = vunpack.c.l.b16 %v867
    %v2090 = vunpack.c.h.b16 %v867
    %v2091 = vunpack.c.l.b16 %v868
    %v2092 = vunpack.c.h.b16 %v868
    %v2093 = vunpack.c.l.b16 %v869
    %v2094 = vunpack.c.h.b16 %v869
    %v2095 = vunpack.c.l.b16 %v870
    %v2096 = vunpack.c.h.b16 %v870
    %v2097 = vunpack.c.l.b16 %v871
    %v2098 = vunpack.c.h.b16 %v871
    %v2099 = vunpack.c.l.b16 %v872
    %v2100 = vunpack.c.h.b16 %v872
    %v2101 = vunpack.c.l.b16 %v873
    %v2102 = vunpack.c.h.b16 %v873
    %v2103 = vunpack.c.l.b16 %v874
    %v2104 = vunpack.c.h.b16 %v874
    %v2105 = vunpack.c.l.b16 %v875
    %v2106 = vunpack.c.h.b16 %v875
    %v2107 = vunpack.c.l.b16 %v876
    %v2108 = vunpack.c.h.b16 %v876
    %v2109 = vunpack.c.l.b16 %v877
    %v2110 = vunpack.c.h.b16 %v877
    %v2111 = vunpack.c.l.b16 %v878
    %v2112 = vunpack.c.h.b16 %v878
    %v2113 = vunpack.c.l.b16 %v879
    %v2114 = vunpack.c.h.b16 %v879
    %v2115 = vunpack.c.l.b16 %v880
    %v2116 = vunpack.c.h.b16 %v880
    %v2117 = vunpack.c.l.b16 %v881
    %v2118 = vunpack.c.h.b16 %v881
    %v2119 = vunpack.c.l.b16 %v882
    %v2120 = vunpack.c.h.b16 %v882
    %v2121 = vunpack.c.l.b16 %v883
    %v2122 = vunpack.c.h.b16 %v883
    %v2123 = vunpack.c.l.b16 %v884
    %v2124 = vunpack.c.h.b16 %v884
    %v2125 = vunpack.c.l.b16 %v885
    %v2126 = vunpack.c.h.b16 %v885
    %v2127 = vunpack.c.l.b16 %v886
    %v2128 = vunpack.c.h.b16 %v886
    %v2129 = vunpack.c.l.b16 %v887
    %v2130 = vunpack.c.h.b16 %v887
    %v2131 = vunpack.c.l.b16 %v888
    %v2132 = vunpack.c.h.b16 %v888
    %v2133 = vunpack.c.l.b16 %v889
    %v2134 = vunpack.c.h.b16 %v889
    %v2135 = vunpack.c.l.b16 %v890
    %v2136 = vunpack.c.h.b16 %v890
    %v2137 = vunpack.c.l.b16 %v891
    %v2138 = vunpack.c.h.b16 %v891
    %v2139 = vunpack.c.l.b16 %v892
    %v2140 = vunpack.c.h.b16 %v892
    %v2141 = vunpack.c.l.b16 %v893
    %v2142 = vunpack.c.h.b16 %v893
    %v2143 = vunpack.c.l.b16 %v894
    %v2144 = vunpack.c.h.b16 %v894
    %v2145 = vunpack.c.l.b16 %v895
    %v2146 = vunpack.c.h.b16 %v895
    %v2147 = vunpack.c.l.b16 %v896
    %v2148 = vunpack.c.h.b16 %v896
    %v2149 = vunpack.c.l.b16 %v897
    %v2150 = vunpack.c.h.b16 %v897
    %v2151 = vunpack.c.l.b16 %v898
    %v2152 = vunpack.c.h.b16 %v898
    %v2153 = vunpack.c.l.b16 %v899
    %v2154 = vunpack.c.h.b16 %v899
    %v2155 = vunpack.c.l.b16 %v900
    %v2156 = vunpack.c.h.b16 %v900
    %v2157 = vunpack.c.l.b16 %v901
    %v2158 = vunpack.c.h.b16 %v901
    %v2159 = vunpack.c.l.b16 %v902
    %v2160 = vunpack.c.h.b16 %v902
    %v2161 = vunpack.c.l.b16 %v903
    %v2162 = vunpack.c.h.b16 %v903
    %v2163 = vunpack.c.l.b16 %v904
    %v2164 = vunpack.c.h.b16 %v904
    %v2165 = vunpack.c.l.b16 %v905
    %v2166 = vunpack.c.h.b16 %v905
    %v2167 = vunpack.c.l.b16 %v906
    %v2168 = vunpack.c.h.b16 %v906
    %v2169 = vunpack.c.l.b16 %v907
    %v2170 = vunpack.c.h.b16 %v907
    %v2171 = vunpack.c.l.b16 %v908
    %v2172 = vunpack.c.h.b16 %v908
    %v2173 = vunpack.c.l.b16 %v909
    %v2174 = vunpack.c.h.b16 %v909
    %v2175 = vunpack.c.l.b16 %v910
    %v2176 = vunpack.c.h.b16 %v910
    %v2177 = vunpack.c.l.b16 %v911
    %v2178 = vunpack.c.h.b16 %v911
    %v2179 = vunpack.c.l.b16 %v912
    %v2180 = vunpack.c.h.b16 %v912
    %v2181 = vunpack.c.l.b16 %v913
    %v2182 = vunpack.c.h.b16 %v913
    %v2183 = vunpack.c.l.b16 %v914
    %v2184 = vunpack.c.h.b16 %v914
    %v2185 = vunpack.c.l.b16 %v915
    %v2186 = vunpack.c.h.b16 %v915
    %v2187 = vunpack.c.l.b16 %v916
    %v2188 = vunpack.c.h.b16 %v916
    %v2189 = vunpack.c.l.b16 %v917
    %v2190 = vunpack.c.h.b16 %v917
    %v2191 = vunpack.c.l.b16 %v918
    %v2192 = vunpack.c.h.b16 %v918
    %v2193 = vunpack.c.l.b16 %v919
    %v2194 = vunpack.c.h.b16 %v919
    %v2195 = vunpack.c.l.b16 %v920
    %v2196 = vunpack.c.h.b16 %v920
    %v2197 = vunpack.c.l.b16 %v921
    %v2198 = vunpack.c.h.b16 %v921
    %v2199 = vunpack.c.l.b16 %v922
    %v2200 = vunpack.c.h.b16 %v922
    %v2201 = vunpack.c.l.b16 %v923
    %v2202 = vunpack.c.h.b16 %v923
    %v2203 = vunpack.c.l.b16 %v924
    %v2204 = vunpack.c.h.b16 %v924
    %v2205 = vunpack.c.l.b16 %v925
    %v2206 = vunpack.c.h.b16 %v925
    %v2207 = vunpack.c.l.b16 %v926
    %v2208 = vunpack.c.h.b16 %v926
    %v2209 = vunpack.c.l.b16 %v927
    %v2210 = vunpack.c.h.b16 %v927
    %v2211 = vunpack.c.l.b16 %v928
    %v2212 = vunpack.c.h.b16 %v928
    %v2213 = vunpack.c.l.b16 %v929
    %v2214 = vunpack.c.h.b16 %v929
    %v2215 = vunpack.c.l.b16 %v930
    %v2216 = vunpack.c.h.b16 %v930
    %v2217 = vunpack.c.l.b16 %v931
    %v2218 = vunpack.c.h.b16 %v931
    %v2219 = vunpack.c.l.b16 %v932
    %v2220 = vunpack.c.h.b16 %v932
    %v2221 = vunpack.c.l.b16 %v933
    %v2222 = vunpack.c.h.b16 %v933
    %v2223 = vunpack.c.l.b16 %v934
    %v2224 = vunpack.c.h.b16 %v934
    %v2225 = vunpack.c.l.b16 %v935
    %v2226 = vunpack.c.h.b16 %v935
    %v2227 = vunpack.c.l.b16 %v936
    %v2228 = vunpack.c.h.b16 %v936
    %v2229 = vunpack.c.l.b16 %v937
    %v2230 = vunpack.c.h.b16 %v937
    %v2231 = vunpack.c.l.b16 %v938
    %v2232 = vunpack.c.h.b16 %v938
    %v2233 = vunpack.c.l.b16 %v939
    %v2234 = vunpack.c.h.b16 %v939
    %v2235 = vunpack.c.l.b16 %v940
    %v2236 = vunpack.c.h.b16 %v940
    %v2237 = vunpack.c.l.b16 %v941
    %v2238 = vunpack.c.h.b16 %v941
    %v2239 = vunpack.c.l.b16 %v942
    %v2240 = vunpack.c.h.b16 %v942
    %v2241 = vunpack.c.l.b16 %v943
    %v2242 = vunpack.c.h.b16 %v943
    %v2243 = vunpack.c.l.b16 %v944
    %v2244 = vunpack.c.h.b16 %v944
    %v2245 = vunpack.c.l.b16 %v945
    %v2246 = vunpack.c.h.b16 %v945
    %v2247 = vunpack.c.l.b16 %v946
    %v2248 = vunpack.c.h.b16 %v946
    %v2249 = vunpack.c.l.b16 %v947
    %v2250 = vunpack.c.h.b16 %v947
    %v2251 = vunpack.c.l.b16 %v948
    %v2252 = vunpack.c.h.b16 %v948
    %v2253 = vunpack.c.l.b16 %v949
    %v2254 = vunpack.c.h.b16 %v949
    %v2255 = vunpack.c.l.b16 %v950
    %v2256 = vunpack.c.h.b16 %v950
    %v2257 = vunpack.c.l.b16 %v951
    %v2258 = vunpack.c.h.b16 %v951
    %v2259 = vunpack.c.l.b16 %v952
    %v2260 = vunpack.c.h.b16 %v952
    %v2261 = vunpack.c.l.b16 %v953
    %v2262 = vunpack.c.h.b16 %v953
    %v2263 = vunpack.c.l.b16 %v954
    %v2264 = vunpack.c.h.b16 %v954
    %v2265 = vunpack.c.l.b16 %v955
    %v2266 = vunpack.c.h.b16 %v955
    %v2267 = vunpack.c.l.b16 %v956
    %v2268 = vunpack.c.h.b16 %v956
    %v2269 = vunpack.c.l.b16 %v957
    %v2270 = vunpack.c.h.b16 %v957
    %v2271 = vunpack.c.l.b16 %v958
    %v2272 = vunpack.c.h.b16 %v958
    %v2273 = vunpack.c.l.b16 %v959
    %v2274 = vunpack.c.h.b16 %v959
    %v2275 = vunpack.c.l.b16 %v960
    %v2276 = vunpack.c.h.b16 %v960
    %v2277 = vunpack.c.l.b16 %v961
    %v2278 = vunpack.c.h.b16 %v961
    %v2279 = vunpack.c.l.b16 %v962
    %v2280 = vunpack.c.h.b16 %v962
    %v2281 = vunpack.c.l.b16 %v963
    %v2282 = vunpack.c.h.b16 %v963
    %v2283 = vunpack.c.l.b16 %v964
    %v2284 = vunpack.c.h.b16 %v964
    %v2285 = vunpack.c.l.b16 %v965
    %v2286 = vunpack.c.h.b16 %v965
    %v2287 = vunpack.c.l.b16 %v966
    %v2288 = vunpack.c.h.b16 %v966
    %v2289 = vunpack.c.l.b16 %v967
    %v2290 = vunpack.c.h.b16 %v967
    %v2291 = vunpack.c.l.b16 %v968
    %v2292 = vunpack.c.h.b16 %v968
    %v2293 = vunpack.c.l.b16 %v969
    %v2294 = vunpack.c.h.b16 %v969
    %v2295 = vunpack.c.l.b16 %v970
    %v2296 = vunpack.c.h.b16 %v970
    %v2297 = vunpack.c.l.b16 %v971
    %v2298 = vunpack.c.h.b16 %v971
    %v2299 = vunpack.c.l.b16 %v972
    %v2300 = vunpack.c.h.b16 %v972
    %v2301 = vunpack.c.l.b16 %v973
    %v2302 = vunpack.c.h.b16 %v973
    %v2303 = vunpack.c.l.b16 %v974
    %v2304 = vunpack.c.h.b16 %v974
    %v2305 = vunpack.c.l.b16 %v975
    %v2306 = vunpack.c.h.b16 %v975
    %v2307 = vunpack.c.l.b16 %v976
    %v2308 = vunpack.c.h.b16 %v976
    %v2309 = vunpack.c.l.b16 %v977
    %v2310 = vunpack.c.h.b16 %v977
    %v2311 = vunpack.c.l.b16 %v978
    %v2312 = vunpack.c.h.b16 %v978
    %v2313 = vunpack.c.l.b16 %v979
    %v2314 = vunpack.c.h.b16 %v979
    %v2315 = vunpack.c.l.b16 %v980
    %v2316 = vunpack.c.h.b16 %v980
    %v2317 = vunpack.c.l.b16 %v981
    %v2318 = vunpack.c.h.b16 %v981
    %v2319 = vunpack.c.l.b16 %v982
    %v2320 = vunpack.c.h.b16 %v982
    %v2321 = vunpack.c.l.b16 %v983
    %v2322 = vunpack.c.h.b16 %v983
    %v2323 = vunpack.c.l.b16 %v984
    %v2324 = vunpack.c.h.b16 %v984
    %v2325 = vunpack.c.l.b16 %v985
    %v2326 = vunpack.c.h.b16 %v985
    %v2327 = vunpack.c.l.b16 %v986
    %v2328 = vunpack.c.h.b16 %v986
    %v2329 = vunpack.c.l.b16 %v987
    %v2330 = vunpack.c.h.b16 %v987
    %v2331 = vunpack.c.l.b16 %v988
    %v2332 = vunpack.c.h.b16 %v988
    %v2333 = vunpack.c.l.b16 %v989
    %v2334 = vunpack.c.h.b16 %v989
    %v2335 = vunpack.c.l.b16 %v990
    %v2336 = vunpack.c.h.b16 %v990
    %v2337 = vunpack.c.l.b16 %v991
    %v2338 = vunpack.c.h.b16 %v991
    %v2339 = vunpack.c.l.b16 %v992
    %v2340 = vunpack.c.h.b16 %v992
    %v2341 = vunpack.c.l.b16 %v993
    %v2342 = vunpack.c.h.b16 %v993
    %v2343 = vunpack.c.l.b16 %v994
    %v2344 = vunpack.c.h.b16 %v994
    %v2345 = vunpack.c.l.b16 %v995
    %v2346 = vunpack.c.h.b16 %v995
    %v2347 = vunpack.c.l.b16 %v996
    %v2348 = vunpack.c.h.b16 %v996
    %v2349 = vunpack.c.l.b16 %v997
    %v2350 = vunpack.c.h.b16 %v997
    %v2351 = vunpack.c.l.b16 %v998
    %v2352 = vunpack.c.h.b16 %v998
    %v2353 = vunpack.c.l.b16 %v999
    %v2354 = vunpack.c.h.b16 %v999
    %v2355 = vunpack.c.l.b16 %v1000
    %v2356 = vunpack.c.h.b16 %v1000
    %v2357 = vunpack.c.l.b16 %v1001
    %v2358 = vunpack.c.h.b16 %v1001
    %v2359 = vunpack.c.l.b16 %v1002
    %v2360 = vunpack.c.h.b16 %v1002
    %v2361 = vunpack.c.l.b16 %v1003
    %v2362 = vunpack.c.h.b16 %v1003
    %v2363 = vunpack.c.l.b16 %v1004
    %v2364 = vunpack.c.h.b16 %v1004
    %v2365 = vunpack.c.l.b16 %v1005
    %v2366 = vunpack.c.h.b16 %v1005
    %v2367 = vunpack.c.l.b16 %v1006
    %v2368 = vunpack.c.h.b16 %v1006
    %v2369 = vunpack.c.l.b16 %v1007
    %v2370 = vunpack.c.h.b16 %v1007
    %v2371 = vunpack.c.l.b16 %v1008
    %v2372 = vunpack.c.h.b16 %v1008
    %v2373 = vunpack.c.l.b16 %v1009
    %v2374 = vunpack.c.h.b16 %v1009
    %v2375 = vunpack.c.l.b16 %v1010
    %v2376 = vunpack.c.h.b16 %v1010
    %v2377 = vunpack.c.l.b16 %v1011
    %v2378 = vunpack.c.h.b16 %v1011
    %v2379 = vunpack.c.l.b16 %v1012
    %v2380 = vunpack.c.h.b16 %v1012
    %v2381 = vunpack.c.l.b16 %v1013
    %v2382 = vunpack.c.h.b16 %v1013
    %v2383 = vunpack.c.l.b16 %v1014
    %v2384 = vunpack.c.h.b16 %v1014
    %v2385 = vunpack.c.l.b16 %v1015
    %v2386 = vunpack.c.h.b16 %v1015
    %v2387 = vunpack.c.l.b16 %v1016
    %v2388 = vunpack.c.h.b16 %v1016
    %v2389 = vunpack.c.l.b16 %v1017
    %v2390 = vunpack.c.h.b16 %v1017
    %v2391 = vunpack.c.l.b16 %v1018
    %v2392 = vunpack.c.h.b16 %v1018
    %v2393 = vunpack.c.l.b16 %v1019
    %v2394 = vunpack.c.h.b16 %v1019
    %v2395 = vunpack.c.l.b16 %v1020
    %v2396 = vunpack.c.h.b16 %v1020
    %v2397 = vunpack.c.l.b16 %v1021
    %v2398 = vunpack.c.h.b16 %v1021
    %v2399 = vunpack.c.l.b16 %v1022
    %v2400 = vunpack.c.h.b16 %v1022
    %v2401 = vunpack.c.l.b16 %v1023
    %v2402 = vunpack.c.h.b16 %v1023
    %v2403 = vunpack.c.l.b16 %v1024
    %v2404 = vunpack.c.h.b16 %v1024
    %v2405 = vunpack.c.l.b16 %v1025
    %v2406 = vunpack.c.h.b16 %v1025
    %v2407 = vunpack.c.l.b16 %v1026
    %v2408 = vunpack.c.h.b16 %v1026
    %v2409 = vunpack.c.l.b16 %v1027
    %v2410 = vunpack.c.h.b16 %v1027
    %v2411 = vunpack.c.l.b16 %v1028
    %v2412 = vunpack.c.h.b16 %v1028
    %v2413 = vunpack.c.l.b16 %v1029
    %v2414 = vunpack.c.h.b16 %v1029
    %v2415 = vunpack.c.l.b16 %v1030
    %v2416 = vunpack.c.h.b16 %v1030
    %v2417 = vunpack.c.l.b16 %v1031
    %v2418 = vunpack.c.h.b16 %v1031
    %v2419 = vunpack.c.l.b16 %v1032
    %v2420 = vunpack.c.h.b16 %v1032
    %v2421 = vunpack.c.l.b16 %v1033
    %v2422 = vunpack.c.h.b16 %v1033
    %v2423 = vunpack.c.l.b16 %v1034
    %v2424 = vunpack.c.h.b16 %v1034
    %v2425 = vunpack.c.l.b16 %v1035
    %v2426 = vunpack.c.h.b16 %v1035
    %v2427 = vunpack.c.l.b16 %v1036
    %v2428 = vunpack.c.h.b16 %v1036
    %v2429 = vunpack.c.l.b16 %v1037
    %v2430 = vunpack.c.h.b16 %v1037
    %v2431 = vunpack.c.l.b16 %v1038
    %v2432 = vunpack.c.h.b16 %v1038
    %v2433 = vunpack.c.l.b16 %v1039
    %v2434 = vunpack.c.h.b16 %v1039
    %v2435 = vunpack.c.l.b16 %v1040
    %v2436 = vunpack.c.h.b16 %v1040
    %v2437 = vunpack.c.l.b16 %v1041
    %v2438 = vunpack.c.h.b16 %v1041
    %v2439 = vunpack.c.l.b16 %v1042
    %v2440 = vunpack.c.h.b16 %v1042
    %v2441 = vunpack.c.l.b16 %v1043
    %v2442 = vunpack.c.h.b16 %v1043
    %v2443 = vunpack.c.l.b16 %v1044
    %v2444 = vunpack.c.h.b16 %v1044
    %v2445 = vunpack.c.l.b16 %v1045
    %v2446 = vunpack.c.h.b16 %v1045
    %v2447 = vunpack.c.l.b16 %v1046
    %v2448 = vunpack.c.h.b16 %v1046
    %v2449 = vunpack.c.l.b16 %v1047
    %v2450 = vunpack.c.h.b16 %v1047
    %v2451 = vunpack.c.l.b16 %v1048
    %v2452 = vunpack.c.h.b16 %v1048
    %v2453 = vunpack.c.l.b16 %v1049
    %v2454 = vunpack.c.h.b16 %v1049
    %v2455 = vunpack.c.l.b16 %v1050
    %v2456 = vunpack.c.h.b16 %v1050
    %v2457 = vunpack.c.l.b16 %v1051
    %v2458 = vunpack.c.h.b16 %v1051
    %v2459 = vunpack.c.l.b16 %v1052
    %v2460 = vunpack.c.h.b16 %v1052
    %v2461 = vunpack.c.l.b16 %v1053
    %v2462 = vunpack.c.h.b16 %v1053
    %v2463 = vunpack.c.l.b16 %v1054
    %v2464 = vunpack.c.h.b16 %v1054
    %v2465 = vunpack.c.l.b16 %v1055
    %v2466 = vunpack.c.h.b16 %v1055
    %v2467 = vunpack.c.l.b16 %v1056
    %v2468 = vunpack.c.h.b16 %v1056
    %v2469 = vunpack.c.l.b16 %v1057
    %v2470 = vunpack.c.h.b16 %v1057
    %v2471 = vunpack.c.l.b16 %v1058
    %v2472 = vunpack.c.h.b16 %v1058
    %v2473 = vunpack.c.l.b16 %v1059
    %v2474 = vunpack.c.h.b16 %v1059
    %v2475 = vunpack.c.l.b16 %v1060
    %v2476 = vunpack.c.h.b16 %v1060
    %v2477 = vunpack.c.l.b16 %v1061
    %v2478 = vunpack.c.h.b16 %v1061
    %v2479 = vunpack.c.l.b16 %v1062
    %v2480 = vunpack.c.h.b16 %v1062
    %v2481 = vunpack.c.l.b16 %v1063
    %v2482 = vunpack.c.h.b16 %v1063
    %v2483 = vunpack.c.l.b16 %v1064
    %v2484 = vunpack.c.h.b16 %v1064
    %v2485 = vunpack.c.l.b16 %v1065
    %v2486 = vunpack.c.h.b16 %v1065
    %v2487 = vunpack.c.l.b16 %v1066
    %v2488 = vunpack.c.h.b16 %v1066
    %v2489 = vunpack.c.l.b16 %v1067
    %v2490 = vunpack.c.h.b16 %v1067
    %v2491 = vunpack.c.l.b16 %v1068
    %v2492 = vunpack.c.h.b16 %v1068
    %v2493 = vunpack.c.l.b16 %v1069
    %v2494 = vunpack.c.h.b16 %v1069
    %v2495 = vunpack.c.l.b16 %v1070
    %v2496 = vunpack.c.h.b16 %v1070
    %v2497 = vunpack.c.l.b16 %v1071
    %v2498 = vunpack.c.h.b16 %v1071
    %v2499 = vunpack.c.l.b16 %v1072
    %v2500 = vunpack.c.h.b16 %v1072
    %v2501 = vunpack.c.l.b16 %v1073
    %v2502 = vunpack.c.h.b16 %v1073
    %v2503 = vunpack.c.l.b16 %v1074
    %v2504 = vunpack.c.h.b16 %v1074
    %v2505 = vunpack.c.l.b16 %v1075
    %v2506 = vunpack.c.h.b16 %v1075
    %v2507 = vunpack.c.l.b16 %v1076
    %v2508 = vunpack.c.h.b16 %v1076
    %v2509 = vunpack.c.l.b16 %v1077
    %v2510 = vunpack.c.h.b16 %v1077
    %v2511 = vunpack.c.l.b16 %v1078
    %v2512 = vunpack.c.h.b16 %v1078
    %v2513 = vunpack.c.l.b16 %v1079
    %v2514 = vunpack.c.h.b16 %v1079
    %v2515 = vunpack.c.l.b16 %v1080
    %v2516 = vunpack.c.h.b16 %v1080
    %v2517 = vunpack.c.l.b16 %v1081
    %v2518 = vunpack.c.h.b16 %v1081
    %v2519 = vunpack.c.l.b16 %v1082
    %v2520 = vunpack.c.h.b16 %v1082
    %v2521 = vunpack.c.l.b16 %v1083
    %v2522 = vunpack.c.h.b16 %v1083
    %v2523 = vunpack.c.l.b16 %v1084
    %v2524 = vunpack.c.h.b16 %v1084
    %v2525 = vunpack.c.l.b16 %v1085
    %v2526 = vunpack.c.h.b16 %v1085
    %v2527 = vunpack.c.l.b16 %v1086
    %v2528 = vunpack.c.h.b16 %v1086
    %v2529 = vunpack.c.l.b16 %v1087
    %v2530 = vunpack.c.h.b16 %v1087
    %v2531 = vunpack.c.l.b16 %v1088
    %v2532 = vunpack.c.h.b16 %v1088
    %v2533 = vunpack.c.l.b16 %v1089
    %v2534 = vunpack.c.h.b16 %v1089
    %v2535 = vunpack.c.l.b16 %v1090
    %v2536 = vunpack.c.h.b16 %v1090
    %v2537 = vunpack.c.l.b16 %v1091
    %v2538 = vunpack.c.h.b16 %v1091
    %v2539 = vunpack.c.l.b16 %v1092
    %v2540 = vunpack.c.h.b16 %v1092
    %v2541 = vunpack.c.l.b16 %v1093
    %v2542 = vunpack.c.h.b16 %v1093
    %v2543 = vunpack.c.l.b16 %v1094
    %v2544 = vunpack.c.h.b16 %v1094
    %v2545 = vunpack.c.l.b16 %v1095
    %v2546 = vunpack.c.h.b16 %v1095
    %v2547 = vunpack.c.l.b16 %v1096
    %v2548 = vunpack.c.h.b16 %v1096
    %v2549 = vunpack.c.l.b16 %v1097
    %v2550 = vunpack.c.h.b16 %v1097
    %v2551 = vunpack.c.l.b16 %v1098
    %v2552 = vunpack.c.h.b16 %v1098
    %v2553 = vunpack.c.l.b16 %v1099
    %v2554 = vunpack.c.h.b16 %v1099
    %v2555 = vunpack.c.l.b16 %v1100
    %v2556 = vunpack.c.h.b16 %v1100
    %v2557 = vunpack.c.l.b16 %v1101
    %v2558 = vunpack.c.h.b16 %v1101
    %v2559 = vunpack.c.l.b16 %v1102
    %v2560 = vunpack.c.h.b16 %v1102
    %v2561 = vunpack.c.l.b16 %v1103
    %v2562 = vunpack.c.h.b16 %v1103
    %v2563 = vunpack.c.l.b16 %v1104
    %v2564 = vunpack.c.h.b16 %v1104
    %v2565 = vunpack.c.l.b16 %v1105
    %v2566 = vunpack.c.h.b16 %v1105
    %v2567 = vunpack.c.l.b16 %v1106
    %v2568 = vunpack.c.h.b16 %v1106
    %v2569 = vunpack.c.l.b16 %v1107
    %v2570 = vunpack.c.h.b16 %v1107
    %v2571 = vunpack.c.l.b16 %v1108
    %v2572 = vunpack.c.h.b16 %v1108
    %v2573 = vunpack.c.l.b16 %v1109
    %v2574 = vunpack.c.h.b16 %v1109
    %v2575 = vunpack.c.l.b16 %v1110
    %v2576 = vunpack.c.h.b16 %v1110
    %v2577 = vunpack.c.l.b16 %v1111
    %v2578 = vunpack.c.h.b16 %v1111
    %v2579 = vunpack.c.l.b16 %v1112
    %v2580 = vunpack.c.h.b16 %v1112
    %v2581 = vunpack.c.l.b16 %v1113
    %v2582 = vunpack.c.h.b16 %v1113
    %v2583 = vunpack.c.l.b16 %v1114
    %v2584 = vunpack.c.h.b16 %v1114
    %v2585 = vunpack.c.l.b16 %v1115
    %v2586 = vunpack.c.h.b16 %v1115
    %v2587 = vunpack.c.l.b16 %v1116
    %v2588 = vunpack.c.h.b16 %v1116
    %v2589 = vunpack.c.l.b16 %v1117
    %v2590 = vunpack.c.h.b16 %v1117
    %v2591 = vunpack.c.l.b16 %v1118
    %v2592 = vunpack.c.h.b16 %v1118
    %v2593 = vunpack.c.l.b16 %v1119
    %v2594 = vunpack.c.h.b16 %v1119
    %v2595 = vunpack.c.l.b16 %v1120
    %v2596 = vunpack.c.h.b16 %v1120
    %v2597 = vunpack.c.l.b16 %v1121
    %v2598 = vunpack.c.h.b16 %v1121
    %v2599 = vunpack.c.l.b16 %v1122
    %v2600 = vunpack.c.h.b16 %v1122
    %v2601 = vunpack.c.l.b16 %v1123
    %v2602 = vunpack.c.h.b16 %v1123
    %v2603 = vunpack.c.l.b16 %v1124
    %v2604 = vunpack.c.h.b16 %v1124
    %v2605 = vunpack.c.l.b16 %v1125
    %v2606 = vunpack.c.h.b16 %v1125
    %v2607 = vunpack.c.l.b16 %v1126
    %v2608 = vunpack.c.h.b16 %v1126
    %v2609 = vunpack.c.l.b16 %v1127
    %v2610 = vunpack.c.h.b16 %v1127
    %v2611 = vunpack.c.l.b16 %v1128
    %v2612 = vunpack.c.h.b16 %v1128
    %v2613 = vunpack.c.l.b16 %v1129
    %v2614 = vunpack.c.h.b16 %v1129
    %v2615 = vunpack.c.l.b16 %v1130
    %v2616 = vunpack.c.h.b16 %v1130
    %v2617 = vunpack.c.l.b16 %v1131
    %v2618 = vunpack.c.h.b16 %v1131
    %v2619 = vunpack.c.l.b16 %v1132
    %v2620 = vunpack.c.h.b16 %v1132
    %v2621 = vunpack.c.l.b16 %v1133
    %v2622 = vunpack.c.h.b16 %v1133
    %v2623 = vunpack.c.l.b16 %v1134
    %v2624 = vunpack.c.h.b16 %v1134
    %v2625 = vunpack.c.l.b16 %v1135
    %v2626 = vunpack.c.h.b16 %v1135
    %v2627 = vunpack.c.l.b16 %v1136
    %v2628 = vunpack.c.h.b16 %v1136
    %v2629 = vunpack.c.l.b16 %v1137
    %v2630 = vunpack.c.h.b16 %v1137
    %v2631 = vunpack.c.l.b16 %v1138
    %v2632 = vunpack.c.h.b16 %v1138
    %v2633 = vunpack.c.l.b16 %v1139
    %v2634 = vunpack.c.h.b16 %v1139
    %v2635 = vunpack.c.l.b16 %v1140
    %v2636 = vunpack.c.h.b16 %v1140
    %v2637 = vunpack.c.l.b16 %v1141
    %v2638 = vunpack.c.h.b16 %v1141
    %v2639 = vunpack.c.l.b16 %v1142
    %v2640 = vunpack.c.h.b16 %v1142
    %v2641 = vunpack.c.l.b16 %v1143
    %v2642 = vunpack.c.h.b16 %v1143
    %v2643 = vunpack.c.l.b16 %v1144
    %v2644 = vunpack.c.h.b16 %v1144
    %v2645 = vunpack.c.l.b16 %v1145
    %v2646 = vunpack.c.h.b16 %v1145
    %v2647 = vunpack.c.l.b16 %v1146
    %v2648 = vunpack.c.h.b16 %v1146
    %v2649 = vunpack.c.l.b16 %v1147
    %v2650 = vunpack.c.h.b16 %v1147
    %v2651 = vunpack.c.l.b16 %v1148
    %v2652 = vunpack.c.h.b16 %v1148
    %v2653 = vunpack.c.l.b16 %v1149
    %v2654 = vunpack.c.h.b16 %v1149
    %v2655 = vunpack.c.l.b16 %v1150
    %v2656 = vunpack.c.h.b16 %v1150
    %v2657 = vunpack.c.l.b16 %v1151
    %v2658 = vunpack.c.h.b16 %v1151
    %v2659 = vunpack.c.l.b16 %v1152
    %v2660 = vunpack.c.h.b16 %v1152
    %v2661 = vunpack.c.l.b16 %v1153
    %v2662 = vunpack.c.h.b16 %v1153
    %v2663 = vunpack.c.l.b16 %v1154
    %v2664 = vunpack.c.h.b16 %v1154
    %v2665 = vunpack.c.l.b16 %v1155
    %v2666 = vunpack.c.h.b16 %v1155
    %v2667 = vunpack.c.l.b16 %v1156
    %v2668 = vunpack.c.h.b16 %v1156
    %v2669 = vunpack.c.l.b16 %v1157
    %v2670 = vunpack.c.h.b16 %v1157
    %v2671 = vunpack.c.l.b16 %v1158
    %v2672 = vunpack.c.h.b16 %v1158
    %v2673 = vunpack.c.l.b16 %v1159
    %v2674 = vunpack.c.h.b16 %v1159
    %v2675 = vunpack.c.l.b16 %v1160
    %v2676 = vunpack.c.h.b16 %v1160
    %v2677 = vunpack.c.l.b16 %v1161
    %v2678 = vunpack.c.h.b16 %v1161
    %v2679 = vunpack.c.l.b16 %v1162
    %v2680 = vunpack.c.h.b16 %v1162
    %v2681 = vunpack.c.l.b16 %v1163
    %v2682 = vunpack.c.h.b16 %v1163
    %v2683 = vunpack.c.l.b16 %v1164
    %v2684 = vunpack.c.h.b16 %v1164
    %v2685 = vunpack.c.l.b16 %v1165
    %v2686 = vunpack.c.h.b16 %v1165
    %v2687 = vunpack.c.l.b16 %v1166
    %v2688 = vunpack.c.h.b16 %v1166
    %v2689 = vunpack.c.l.b16 %v1167
    %v2690 = vunpack.c.h.b16 %v1167
    %v2691 = vunpack.c.l.b16 %v1168
    %v2692 = vunpack.c.h.b16 %v1168
    %v2693 = vunpack.c.l.b16 %v1169
    %v2694 = vunpack.c.h.b16 %v1169
    %v2695 = vunpack.c.l.b16 %v1170
    %v2696 = vunpack.c.h.b16 %v1170
    %v2697 = vunpack.c.l.b16 %v1171
    %v2698 = vunpack.c.h.b16 %v1171
    %v2699 = vunpack.c.l.b16 %v1172
    %v2700 = vunpack.c.h.b16 %v1172
    %v2701 = vunpack.c.l.b16 %v1173
    %v2702 = vunpack.c.h.b16 %v1173
    %v2703 = vunpack.c.l.b16 %v1174
    %v2704 = vunpack.c.h.b16 %v1174
    %v2705 = vunpack.c.l.b16 %v1175
    %v2706 = vunpack.c.h.b16 %v1175
    %v2707 = vunpack.c.l.b16 %v1176
    %v2708 = vunpack.c.h.b16 %v1176
    %v2709 = vunpack.c.l.b16 %v1177
    %v2710 = vunpack.c.h.b16 %v1177
    %v2711 = vunpack.c.l.b16 %v1178
    %v2712 = vunpack.c.h.b16 %v1178
    %v2713 = vunpack.c.l.b16 %v1179
    %v2714 = vunpack.c.h.b16 %v1179
    %v2715 = vunpack.c.l.b16 %v1180
    %v2716 = vunpack.c.h.b16 %v1180
    %v2717 = vunpack.c.l.b16 %v1181
    %v2718 = vunpack.c.h.b16 %v1181
    %v2719 = vunpack.c.l.b16 %v1182
    %v2720 = vunpack.c.h.b16 %v1182
    %v2721 = vunpack.c.l.b16 %v1183
    %v2722 = vunpack.c.h.b16 %v1183
    %v2723 = vunpack.c.l.b16 %v1184
    %v2724 = vunpack.c.h.b16 %v1184
    %v2725 = vunpack.c.l.b16 %v1185
    %v2726 = vunpack.c.h.b16 %v1185
    %v2727 = vunpack.c.l.b16 %v1186
    %v2728 = vunpack.c.h.b16 %v1186
    %v2729 = vunpack.c.l.b16 %v1187
    %v2730 = vunpack.c.h.b16 %v1187
    %v2731 = vunpack.c.l.b16 %v1188
    %v2732 = vunpack.c.h.b16 %v1188
    %v2733 = vunpack.c.l.b16 %v1189
    %v2734 = vunpack.c.h.b16 %v1189
    %v2735 = vunpack.c.l.b16 %v1190
    %v2736 = vunpack.c.h.b16 %v1190
    %v2737 = vunpack.c.l.b16 %v1191
    %v2738 = vunpack.c.h.b16 %v1191
    %v2739 = vunpack.c.l.b16 %v1192
    %v2740 = vunpack.c.h.b16 %v1192
    %v2741 = vunpack.c.l.b16 %v1193
    %v2742 = vunpack.c.h.b16 %v1193
    %v2743 = vunpack.c.l.b16 %v1194
    %v2744 = vunpack.c.h.b16 %v1194
    %v2745 = vunpack.c.l.b16 %v1195
    %v2746 = vunpack.c.h.b16 %v1195
    %v2747 = vunpack.c.l.b16 %v1196
    %v2748 = vunpack.c.h.b16 %v1196
    %v2749 = vunpack.c.l.b16 %v1197
    %v2750 = vunpack.c.h.b16 %v1197
    %v2751 = vunpack.c.l.b16 %v1198
    %v2752 = vunpack.c.h.b16 %v1198
    %v2753 = vunpack.c.l.b16 %v1199
    %v2754 = vunpack.c.h.b16 %v1199
    %v2755 = vunpack.c.l.b16 %v1200
    %v2756 = vunpack.c.h.b16 %v1200
    %v2757 = vunpack.c.l.b16 %v1201
    %v2758 = vunpack.c.h.b16 %v1201
    %v2759 = vunpack.c.l.b16 %v1202
    %v2760 = vunpack.c.h.b16 %v1202
    %v2761 = vunpack.c.l.b16 %v1203
    %v2762 = vunpack.c.h.b16 %v1203
    %v2763 = vunpack.c.l.b16 %v1204
    %v2764 = vunpack.c.h.b16 %v1204
    %v2765 = vunpack.c.l.b16 %v1205
    %v2766 = vunpack.c.h.b16 %v1205
    %v2767 = vunpack.c.l.b16 %v1206
    %v2768 = vunpack.c.h.b16 %v1206
    %v2769 = vunpack.c.l.b16 %v1207
    %v2770 = vunpack.c.h.b16 %v1207
    %v2771 = vunpack.c.l.b16 %v1208
    %v2772 = vunpack.c.h.b16 %v1208
    %v2773 = vunpack.c.l.b16 %v1209
    %v2774 = vunpack.c.h.b16 %v1209
    %v2775 = vunpack.c.l.b16 %v1210
    %v2776 = vunpack.c.h.b16 %v1210
    %v2777 = vunpack.c.l.b16 %v1211
    %v2778 = vunpack.c.h.b16 %v1211
    %v2779 = vunpack.c.l.b16 %v1212
    %v2780 = vunpack.c.h.b16 %v1212
    %v2781 = vunpack.c.l.b16 %v1213
    %v2782 = vunpack.c.h.b16 %v1213
    %v2783 = vunpack.c.l.b16 %v1214
    %v2784 = vunpack.c.h.b16 %v1214
    %v2785 = vunpack.c.l.b16 %v1215
    %v2786 = vunpack.c.h.b16 %v1215
    %v2787 = vunpack.c.l.b16 %v1216
    %v2788 = vunpack.c.h.b16 %v1216
    %v2789 = vunpack.c.l.b16 %v1217
    %v2790 = vunpack.c.h.b16 %v1217
    %v2791 = vunpack.c.l.b16 %v1218
    %v2792 = vunpack.c.h.b16 %v1218
    %v2793 = vunpack.c.l.b16 %v1219
    %v2794 = vunpack.c.h.b16 %v1219
    %v2795 = vunpack.c.l.b16 %v1220
    %v2796 = vunpack.c.h.b16 %v1220
    %v2797 = vunpack.c.l.b16 %v1221
    %v2798 = vunpack.c.h.b16 %v1221
    %v2799 = vunpack.c.l.b16 %v1222
    %v2800 = vunpack.c.h.b16 %v1222
    %v2801 = vpack.c.b16 %v1785, %v1777
    %v2802 = vpack.c.b16 %v1786, %v1778
    %v2803 = vpack.c.b16 %v1787, %v1779
    %v2804 = vpack.c.b16 %v1788, %v1780
    %v2805 = vpack.c.b16 %v1789, %v1781
    %v2806 = vpack.c.b16 %v1790, %v1782
    %v2807 = vpack.c.b16 %v1791, %v1783
    %v2808 = vpack.c.b16 %v1792, %v1784
    %v2809 = vpack.c.b16 %v1801, %v1793
    %v2810 = vpack.c.b16 %v1802, %v1794
    %v2811 = vpack.c.b16 %v1803, %v1795
    %v2812 = vpack.c.b16 %v1804, %v1796
    %v2813 = vpack.c.b16 %v1805, %v1797
    %v2814 = vpack.c.b16 %v1806, %v1798
    %v2815 = vpack.c.b16 %v1807, %v1799
    %v2816 = vpack.c.b16 %v1808, %v1800
    %v2817 = vpack.c.b16 %v1817, %v1809
    %v2818 = vpack.c.b16 %v1818, %v1810
    %v2819 = vpack.c.b16 %v1819, %v1811
    %v2820 = vpack.c.b16 %v1820, %v1812
    %v2821 = vpack.c.b16 %v1821, %v1813
    %v2822 = vpack.c.b16 %v1822, %v1814
    %v2823 = vpack.c.b16 %v1823, %v1815
    %v2824 = vpack.c.b16 %v1824, %v1816
    %v2825 = vpack.c.b16 %v1833, %v1825
    %v2826 = vpack.c.b16 %v1834, %v1826
    %v2827 = vpack.c.b16 %v1835, %v1827
    %v2828 = vpack.c.b16 %v1836, %v1828
    %v2829 = vpack.c.b16 %v1837, %v1829
    %v2830 = vpack.c.b16 %v1838, %v1830
    %v2831 = vpack.c.b16 %v1839, %v1831
    %v2832 = vpack.c.b16 %v1840, %v1832
    %v2833 = vpack.c.b16 %v1849, %v1841
    %v2834 = vpack.c.b16 %v1850, %v1842
    %v2835 = vpack.c.b16 %v1851, %v1843
    %v2836 = vpack.c.b16 %v1852, %v1844
    %v2837 = vpack.c.b16 %v1853, %v1845
    %v2838 = vpack.c.b16 %v1854, %v1846
    %v2839 = vpack.c.b16 %v1855, %v1847
    %v2840 = vpack.c.b16 %v1856, %v1848
    %v2841 = vpack.c.b16 %v1865, %v1857
    %v2842 = vpack.c.b16 %v1866, %v1858
    %v2843 = vpack.c.b16 %v1867, %v1859
    %v2844 = vpack.c.b16 %v1868, %v1860
    %v2845 = vpack.c.b16 %v1869, %v1861
    %v2846 = vpack.c.b16 %v1870, %v1862
    %v2847 = vpack.c.b16 %v1871, %v1863
    %v2848 = vpack.c.b16 %v1872, %v1864
    %v2849 = vpack.c.b16 %v1881, %v1873
    %v2850 = vpack.c.b16 %v1882, %v1874
    %v2851 = vpack.c.b16 %v1883, %v1875
    %v2852 = vpack.c.b16 %v1884, %v1876
    %v2853 = vpack.c.b16 %v1885, %v1877
    %v2854 = vpack.c.b16 %v1886, %v1878
    %v2855 = vpack.c.b16 %v1887, %v1879
    %v2856 = vpack.c.b16 %v1888, %v1880
    %v2857 = vpack.c.b16 %v1897, %v1889
    %v2858 = vpack.c.b16 %v1898, %v1890
    %v2859 = vpack.c.b16 %v1899, %v1891
    %v2860 = vpack.c.b16 %v1900, %v1892
    %v2861 = vpack.c.b16 %v1901, %v1893
    %v2862 = vpack.c.b16 %v1902, %v1894
    %v2863 = vpack.c.b16 %v1903, %v1895
    %v2864 = vpack.c.b16 %v1904, %v1896
    %v2865 = vpack.c.b16 %v1913, %v1905
    %v2866 = vpack.c.b16 %v1914, %v1906
    %v2867 = vpack.c.b16 %v1915, %v1907
    %v2868 = vpack.c.b16 %v1916, %v1908
    %v2869 = vpack.c.b16 %v1917, %v1909
    %v2870 = vpack.c.b16 %v1918, %v1910
    %v2871 = vpack.c.b16 %v1919, %v1911
    %v2872 = vpack.c.b16 %v1920, %v1912
    %v2873 = vpack.c.b16 %v1929, %v1921
    %v2874 = vpack.c.b16 %v1930, %v1922
    %v2875 = vpack.c.b16 %v1931, %v1923
    %v2876 = vpack.c.b16 %v1932, %v1924
    %v2877 = vpack.c.b16 %v1933, %v1925
    %v2878 = vpack.c.b16 %v1934, %v1926
    %v2879 = vpack.c.b16 %v1935, %v1927
    %v2880 = vpack.c.b16 %v1936, %v1928
    %v2881 = vpack.c.b16 %v1945, %v1937
    %v2882 = vpack.c.b16 %v1946, %v1938
    %v2883 = vpack.c.b16 %v1947, %v1939
    %v2884 = vpack.c.b16 %v1948, %v1940
    %v2885 = vpack.c.b16 %v1949, %v1941
    %v2886 = vpack.c.b16 %v1950, %v1942
    %v2887 = vpack.c.b16 %v1951, %v1943
    %v2888 = vpack.c.b16 %v1952, %v1944
    %v2889 = vpack.c.b16 %v1961, %v1953
    %v2890 = vpack.c.b16 %v1962, %v1954
    %v2891 = vpack.c.b16 %v1963, %v1955
    %v2892 = vpack.c.b16 %v1964, %v1956
    %v2893 = vpack.c.b16 %v1965, %v1957
    %v2894 = vpack.c.b16 %v1966, %v1958
    %v2895 = vpack.c.b16 %v1967, %v1959
    %v2896 = vpack.c.b16 %v1968, %v1960
    %v2897 = vpack.c.b16 %v1977, %v1969
    %v2898 = vpack.c.b16 %v1978, %v1970
    %v2899 = vpack.c.b16 %v1979, %v1971
    %v2900 = vpack.c.b16 %v1980, %v1972
    %v2901 = vpack.c.b16 %v1981, %v1973
    %v2902 = vpack.c.b16 %v1982, %v1974
    %v2903 = vpack.c.b16 %v1983, %v1975
    %v2904 = vpack.c.b16 %v1984, %v1976
    %v2905 = vpack.c.b16 %v1993, %v1985
    %v2906 = vpack.c.b16 %v1994, %v1986
    %v2907 = vpack.c.b16 %v1995, %v1987
    %v2908 = vpack.c.b16 %v1996, %v1988
    %v2909 = vpack.c.b16 %v1997, %v1989
    %v2910 = vpack.c.b16 %v1998, %v1990
    %v2911 = vpack.c.b16 %v1999, %v1991
    %v2912 = vpack.c.b16 %v2000, %v1992
    %v2913 = vpack.c.b16 %v2009, %v2001
    %v2914 = vpack.c.b16 %v2010, %v2002
    %v2915 = vpack.c.b16 %v2011, %v2003
    %v2916 = vpack.c.b16 %v2012, %v2004
    %v2917 = vpack.c.b16 %v2013, %v2005
    %v2918 = vpack.c.b16 %v2014, %v2006
    %v2919 = vpack.c.b16 %v2015, %v2007
    %v2920 = vpack.c.b16 %v2016, %v2008
    %v2921 = vpack.c.b16 %v2025, %v2017
    %v2922 = vpack.c.b16 %v2026, %v2018
    %v2923 = vpack.c.b16 %v2027, %v2019
    %v2924 = vpack.c.b16 %v2028, %v2020
    %v2925 = vpack.c.b16 %v2029, %v2021
    %v2926 = vpack.c.b16 %v2030, %v2022
    %v2927 = vpack.c.b16 %v2031, %v2023
    %v2928 = vpack.c.b16 %v2032, %v2024
    %v2929 = vpack.c.b16 %v2041, %v2033
    %v2930 = vpack.c.b16 %v2042, %v2034
    %v2931 = vpack.c.b16 %v2043, %v2035
    %v2932 = vpack.c.b16 %v2044, %v2036
    %v2933 = vpack.c.b16 %v2045, %v2037
    %v2934 = vpack.c.b16 %v2046, %v2038
    %v2935 = vpack.c.b16 %v2047, %v2039
    %v2936 = vpack.c.b16 %v2048, %v2040
    %v2937 = vpack.c.b16 %v2057, %v2049
    %v2938 = vpack.c.b16 %v2058, %v2050
    %v2939 = vpack.c.b16 %v2059, %v2051
    %v2940 = vpack.c.b16 %v2060, %v2052
    %v2941 = vpack.c.b16 %v2061, %v2053
    %v2942 = vpack.c.b16 %v2062, %v2054
    %v2943 = vpack.c.b16 %v2063, %v2055
    %v2944 = vpack.c.b16 %v2064, %v2056
    %v2945 = vpack.c.b16 %v2073, %v2065
    %v2946 = vpack.c.b16 %v2074, %v2066
    %v2947 = vpack.c.b16 %v2075, %v2067
    %v2948 = vpack.c.b16 %v2076, %v2068
    %v2949 = vpack.c.b16 %v2077, %v2069
    %v2950 = vpack.c.b16 %v2078, %v2070
    %v2951 = vpack.c.b16 %v2079, %v2071
    %v2952 = vpack.c.b16 %v2080, %v2072
    %v2953 = vpack.c.b16 %v2089, %v2081
    %v2954 = vpack.c.b16 %v2090, %v2082
    %v2955 = vpack.c.b16 %v2091, %v2083
    %v2956 = vpack.c.b16 %v2092, %v2084
    %v2957 = vpack.c.b16 %v2093, %v2085
    %v2958 = vpack.c.b16 %v2094, %v2086
    %v2959 = vpack.c.b16 %v2095, %v2087
    %v2960 = vpack.c.b16 %v2096, %v2088
    %v2961 = vpack.c.b16 %v2105, %v2097
    %v2962 = vpack.c.b16 %v2106, %v2098
    %v2963 = vpack.c.b16 %v2107, %v2099
    %v2964 = vpack.c.b16 %v2108, %v2100
    %v2965 = vpack.c.b16 %v2109, %v2101
    %v2966 = vpack.c.b16 %v2110, %v2102
    %v2967 = vpack.c.b16 %v2111, %v2103
    %v2968 = vpack.c.b16 %v2112, %v2104
    %v2969 = vpack.c.b16 %v2121, %v2113
    %v2970 = vpack.c.b16 %v2122, %v2114
    %v2971 = vpack.c.b16 %v2123, %v2115
    %v2972 = vpack.c.b16 %v2124, %v2116
    %v2973 = vpack.c.b16 %v2125, %v2117
    %v2974 = vpack.c.b16 %v2126, %v2118
    %v2975 = vpack.c.b16 %v2127, %v2119
    %v2976 = vpack.c.b16 %v2128, %v2120
    %v2977 = vpack.c.b16 %v2137, %v2129
    %v2978 = vpack.c.b16 %v2138, %v2130
    %v2979 = vpack.c.b16 %v2139, %v2131
    %v2980 = vpack.c.b16 %v2140, %v2132
    %v2981 = vpack.c.b16 %v2141, %v2133
    %v2982 = vpack.c.b16 %v2142, %v2134
    %v2983 = vpack.c.b16 %v2143, %v2135
    %v2984 = vpack.c.b16 %v2144, %v2136
    %v2985 = vpack.c.b16 %v2153, %v2145
    %v2986 = vpack.c.b16 %v2154, %v2146
    %v2987 = vpack.c.b16 %v2155, %v2147
    %v2988 = vpack.c.b16 %v2156, %v2148
    %v2989 = vpack.c.b16 %v2157, %v2149
    %v2990 = vpack.c.b16 %v2158, %v2150
    %v2991 = vpack.c.b16 %v2159, %v2151
    %v2992 = vpack.c.b16 %v2160, %v2152
    %v2993 = vpack.c.b16 %v2169, %v2161
    %v2994 = vpack.c.b16 %v2170, %v2162
    %v2995 = vpack.c.b16 %v2171, %v2163
    %v2996 = vpack.c.b16 %v2172, %v2164
    %v2997 = vpack.c.b16 %v2173, %v2165
    %v2998 = vpack.c.b16 %v2174, %v2166
    %v2999 = vpack.c.b16 %v2175, %v2167
    %v3000 = vpack.c.b16 %v2176, %v2168
    %v3001 = vpack.c.b16 %v2185, %v2177
    %v3002 = vpack.c.b16 %v2186, %v2178
    %v3003 = vpack.c.b16 %v2187, %v2179
    %v3004 = vpack.c.b16 %v2188, %v2180
    %v3005 = vpack.c.b16 %v2189, %v2181
    %v3006 = vpack.c.b16 %v2190, %v2182
    %v3007 = vpack.c.b16 %v2191, %v2183
    %v3008 = vpack.c.b16 %v2192, %v2184
    %v3009 = vpack.c.b16 %v2201, %v2193
    %v3010 = vpack.c.b16 %v2202, %v2194
    %v3011 = vpack.c.b16 %v2203, %v2195
    %v3012 = vpack.c.b16 %v2204, %v2196
    %v3013 = vpack.c.b16 %v2205, %v2197
    %v3014 = vpack.c.b16 %v2206, %v2198
    %v3015 = vpack.c.b16 %v2207, %v2199
    %v3016 = vpack.c.b16 %v2208, %v2200
    %v3017 = vpack.c.b16 %v2217, %v2209
    %v3018 = vpack.c.b16 %v2218, %v2210
    %v3019 = vpack.c.b16 %v2219, %v2211
    %v3020 = vpack.c.b16 %v2220, %v2212
    %v3021 = vpack.c.b16 %v2221, %v2213
    %v3022 = vpack.c.b16 %v2222, %v2214
    %v3023 = vpack.c.b16 %v2223, %v2215
    %v3024 = vpack.c.b16 %v2224, %v2216
    %v3025 = vpack.c.b16 %v2233, %v2225
    %v3026 = vpack.c.b16 %v2234, %v2226
    %v3027 = vpack.c.b16 %v2235, %v2227
    %v3028 = vpack.c.b16 %v2236, %v2228
    %v3029 = vpack.c.b16 %v2237, %v2229
    %v3030 = vpack.c.b16 %v2238, %v2230
    %v3031 = vpack.c.b16 %v2239, %v2231
    %v3032 = vpack.c.b16 %v2240, %v2232
    %v3033 = vpack.c.b16 %v2249, %v2241
    %v3034 = vpack.c.b16 %v2250, %v2242
    %v3035 = vpack.c.b16 %v2251, %v2243
    %v3036 = vpack.c.b16 %v2252, %v2244
    %v3037 = vpack.c.b16 %v2253, %v2245
    %v3038 = vpack.c.b16 %v2254, %v2246
    %v3039 = vpack.c.b16 %v2255, %v2247
    %v3040 = vpack.c.b16 %v2256, %v2248
    %v3041 = vpack.c.b16 %v2265, %v2257
    %v3042 = vpack.c.b16 %v2266, %v2258
    %v3043 = vpack.c.b16 %v2267, %v2259
    %v3044 = vpack.c.b16 %v2268, %v2260
    %v3045 = vpack.c.b16 %v2269, %v2261
    %v3046 = vpack.c.b16 %v2270, %v2262
    %v3047 = vpack.c.b16 %v2271, %v2263
    %v3048 = vpack.c.b16 %v2272, %v2264
    %v3049 = vpack.c.b16 %v2281, %v2273
    %v3050 = vpack.c.b16 %v2282, %v2274
    %v3051 = vpack.c.b16 %v2283, %v2275
    %v3052 = vpack.c.b16 %v2284, %v2276
    %v3053 = vpack.c.b16 %v2285, %v2277
    %v3054 = vpack.c.b16 %v2286, %v2278
    %v3055 = vpack.c.b16 %v2287, %v2279
    %v3056 = vpack.c.b16 %v2288, %v2280
    %v3057 = vpack.c.b16 %v2297, %v2289
    %v3058 = vpack.c.b16 %v2298, %v2290
    %v3059 = vpack.c.b16 %v2299, %v2291
    %v3060 = vpack.c.b16 %v2300, %v2292
    %v3061 = vpack.c.b16 %v2301, %v2293
    %v3062 = vpack.c.b16 %v2302, %v2294
    %v3063 = vpack.c.b16 %v2303, %v2295
    %v3064 = vpack.c.b16 %v2304, %v2296
    %v3065 = vpack.c.b16 %v2313, %v2305
    %v3066 = vpack.c.b16 %v2314, %v2306
    %v3067 = vpack.c.b16 %v2315, %v2307
    %v3068 = vpack.c.b16 %v2316, %v2308
    %v3069 = vpack.c.b16 %v2317, %v2309
    %v3070 = vpack.c.b16 %v2318, %v2310
    %v3071 = vpack.c.b16 %v2319, %v2311
    %v3072 = vpack.c.b16 %v2320, %v2312
    %v3073 = vpack.c.b16 %v2329, %v2321
    %v3074 = vpack.c.b16 %v2330, %v2322
    %v3075 = vpack.c.b16 %v2331, %v2323
    %v3076 = vpack.c.b16 %v2332, %v2324
    %v3077 = vpack.c.b16 %v2333, %v2325
    %v3078 = vpack.c.b16 %v2334, %v2326
    %v3079 = vpack.c.b16 %v2335, %v2327
    %v3080 = vpack.c.b16 %v2336, %v2328
    %v3081 = vpack.c.b16 %v2345, %v2337
    %v3082 = vpack.c.b16 %v2346, %v2338
    %v3083 = vpack.c.b16 %v2347, %v2339
    %v3084 = vpack.c.b16 %v2348, %v2340
    %v3085 = vpack.c.b16 %v2349, %v2341
    %v3086 = vpack.c.b16 %v2350, %v2342
    %v3087 = vpack.c.b16 %v2351, %v2343
    %v3088 = vpack.c.b16 %v2352, %v2344
    %v3089 = vpack.c.b16 %v2361, %v2353
    %v3090 = vpack.c.b16 %v2362, %v2354
    %v3091 = vpack.c.b16 %v2363, %v2355
    %v3092 = vpack.c.b16 %v2364, %v2356
    %v3093 = vpack.c.b16 %v2365, %v2357
    %v3094 = vpack.c.b16 %v2366, %v2358
    %v3095 = vpack.c.b16 %v2367, %v2359
    %v3096 = vpack.c.b16 %v2368, %v2360
    %v3097 = vpack.c.b16 %v2377, %v2369
    %v3098 = vpack.c.b16 %v2378, %v2370
    %v3099 = vpack.c.b16 %v2379, %v2371
    %v3100 = vpack.c.b16 %v2380, %v2372
    %v3101 = vpack.c.b16 %v2381, %v2373
    %v3102 = vpack.c.b16 %v2382, %v2374
    %v3103 = vpack.c.b16 %v2383, %v2375
    %v3104 = vpack.c.b16 %v2384, %v2376
    %v3105 = vpack.c.b16 %v2393, %v2385
    %v3106 = vpack.c.b16 %v2394, %v2386
    %v3107 = vpack.c.b16 %v2395, %v2387
    %v3108 = vpack.c.b16 %v2396, %v2388
    %v3109 = vpack.c.b16 %v2397, %v2389
    %v3110 = vpack.c.b16 %v2398, %v2390
    %v3111 = vpack.c.b16 %v2399, %v2391
    %v3112 = vpack.c.b16 %v2400, %v2392
    %v3113 = vpack.c.b16 %v2409, %v2401
    %v3114 = vpack.c.b16 %v2410, %v2402
    %v3115 = vpack.c.b16 %v2411, %v2403
    %v3116 = vpack.c.b16 %v2412, %v2404
    %v3117 = vpack.c.b16 %v2413, %v2405
    %v3118 = vpack.c.b16 %v2414, %v2406
    %v3119 = vpack.c.b16 %v2415, %v2407
    %v3120 = vpack.c.b16 %v2416, %v2408
    %v3121 = vpack.c.b16 %v2425, %v2417
    %v3122 = vpack.c.b16 %v2426, %v2418
    %v3123 = vpack.c.b16 %v2427, %v2419
    %v3124 = vpack.c.b16 %v2428, %v2420
    %v3125 = vpack.c.b16 %v2429, %v2421
    %v3126 = vpack.c.b16 %v2430, %v2422
    %v3127 = vpack.c.b16 %v2431, %v2423
    %v3128 = vpack.c.b16 %v2432, %v2424
    %v3129 = vpack.c.b16 %v2441, %v2433
    %v3130 = vpack.c.b16 %v2442, %v2434
    %v3131 = vpack.c.b16 %v2443, %v2435
    %v3132 = vpack.c.b16 %v2444, %v2436
    %v3133 = vpack.c.b16 %v2445, %v2437
    %v3134 = vpack.c.b16 %v2446, %v2438
    %v3135 = vpack.c.b16 %v2447, %v2439
    %v3136 = vpack.c.b16 %v2448, %v2440
    %v3137 = vpack.c.b16 %v2457, %v2449
    %v3138 = vpack.c.b16 %v2458, %v2450
    %v3139 = vpack.c.b16 %v2459, %v2451
    %v3140 = vpack.c.b16 %v2460, %v2452
    %v3141 = vpack.c.b16 %v2461, %v2453
    %v3142 = vpack.c.b16 %v2462, %v2454
    %v3143 = vpack.c.b16 %v2463, %v2455
    %v3144 = vpack.c.b16 %v2464, %v2456
    %v3145 = vpack.c.b16 %v2473, %v2465
    %v3146 = vpack.c.b16 %v2474, %v2466
    %v3147 = vpack.c.b16 %v2475, %v2467
    %v3148 = vpack.c.b16 %v2476, %v2468
    %v3149 = vpack.c.b16 %v2477, %v2469
    %v3150 = vpack.c.b16 %v2478, %v2470
    %v3151 = vpack.c.b16 %v2479, %v2471
    %v3152 = vpack.c.b16 %v2480, %v2472
    %v3153 = vpack.c.b16 %v2489, %v2481
    %v3154 = vpack.c.b16 %v2490, %v2482
    %v3155 = vpack.c.b16 %v2491, %v2483
    %v3156 = vpack.c.b16 %v2492, %v2484
    %v3157 = vpack.c.b16 %v2493, %v2485
    %v3158 = vpack.c.b16 %v2494, %v2486
    %v3159 = vpack.c.b16 %v2495, %v2487
    %v3160 = vpack.c.b16 %v2496, %v2488
    %v3161 = vpack.c.b16 %v2505, %v2497
    %v3162 = vpack.c.b16 %v2506, %v2498
    %v3163 = vpack.c.b16 %v2507, %v2499
    %v3164 = vpack.c.b16 %v2508, %v2500
    %v3165 = vpack.c.b16 %v2509, %v2501
    %v3166 = vpack.c.b16 %v2510, %v2502
    %v3167 = vpack.c.b16 %v2511, %v2503
    %v3168 = vpack.c.b16 %v2512, %v2504
    %v3169 = vpack.c.b16 %v2521, %v2513
    %v3170 = vpack.c.b16 %v2522, %v2514
    %v3171 = vpack.c.b16 %v2523, %v2515
    %v3172 = vpack.c.b16 %v2524, %v2516
    %v3173 = vpack.c.b16 %v2525, %v2517
    %v3174 = vpack.c.b16 %v2526, %v2518
    %v3175 = vpack.c.b16 %v2527, %v2519
    %v3176 = vpack.c.b16 %v2528, %v2520
    %v3177 = vpack.c.b16 %v2537, %v2529
    %v3178 = vpack.c.b16 %v2538, %v2530
    %v3179 = vpack.c.b16 %v2539, %v2531
    %v3180 = vpack.c.b16 %v2540, %v2532
    %v3181 = vpack.c.b16 %v2541, %v2533
    %v3182 = vpack.c.b16 %v2542, %v2534
    %v3183 = vpack.c.b16 %v2543, %v2535
    %v3184 = vpack.c.b16 %v2544, %v2536
    %v3185 = vpack.c.b16 %v2553, %v2545
    %v3186 = vpack.c.b16 %v2554, %v2546
    %v3187 = vpack.c.b16 %v2555, %v2547
    %v3188 = vpack.c.b16 %v2556, %v2548
    %v3189 = vpack.c.b16 %v2557, %v2549
    %v3190 = vpack.c.b16 %v2558, %v2550
    %v3191 = vpack.c.b16 %v2559, %v2551
    %v3192 = vpack.c.b16 %v2560, %v2552
    %v3193 = vpack.c.b16 %v2569, %v2561
    %v3194 = vpack.c.b16 %v2570, %v2562
    %v3195 = vpack.c.b16 %v2571, %v2563
    %v3196 = vpack.c.b16 %v2572, %v2564
    %v3197 = vpack.c.b16 %v2573, %v2565
    %v3198 = vpack.c.b16 %v2574, %v2566
    %v3199 = vpack.c.b16 %v2575, %v2567
    %v3200 = vpack.c.b16 %v2576, %v2568
    %v3201 = vpack.c.b16 %v2585, %v2577
    %v3202 = vpack.c.b16 %v2586, %v2578
    %v3203 = vpack.c.b16 %v2587, %v2579
    %v3204 = vpack.c.b16 %v2588, %v2580
    %v3205 = vpack.c.b16 %v2589, %v2581
    %v3206 = vpack.c.b16 %v2590, %v2582
    %v3207 = vpack.c.b16 %v2591, %v2583
    %v3208 = vpack.c.b16 %v2592, %v2584
    %v3209 = vpack.c.b16 %v2601, %v2593
    %v3210 = vpack.c.b16 %v2602, %v2594
    %v3211 = vpack.c.b16 %v2603, %v2595
    %v3212 = vpack.c.b16 %v2604, %v2596
    %v3213 = vpack.c.b16 %v2605, %v2597
    %v3214 = vpack.c.b16 %v2606, %v2598
    %v3215 = vpack.c.b16 %v2607, %v2599
    %v3216 = vpack.c.b16 %v2608, %v2600
    %v3217 = vpack.c.b16 %v2617, %v2609
    %v3218 = vpack.c.b16 %v2618, %v2610
    %v3219 = vpack.c.b16 %v2619, %v2611
    %v3220 = vpack.c.b16 %v2620, %v2612
    %v3221 = vpack.c.b16 %v2621, %v2613
    %v3222 = vpack.c.b16 %v2622, %v2614
    %v3223 = vpack.c.b16 %v2623, %v2615
    %v3224 = vpack.c.b16 %v2624, %v2616
    %v3225 = vpack.c.b16 %v2633, %v2625
    %v3226 = vpack.c.b16 %v2634, %v2626
    %v3227 = vpack.c.b16 %v2635, %v2627
    %v3228 = vpack.c.b16 %v2636, %v2628
    %v3229 = vpack.c.b16 %v2637, %v2629
    %v3230 = vpack.c.b16 %v2638, %v2630
    %v3231 = vpack.c.b16 %v2639, %v2631
    %v3232 = vpack.c.b16 %v2640, %v2632
    %v3233 = vpack.c.b16 %v2649, %v2641
    %v3234 = vpack.c.b16 %v2650, %v2642
    %v3235 = vpack.c.b16 %v2651, %v2643
    %v3236 = vpack.c.b16 %v2652, %v2644
    %v3237 = vpack.c.b16 %v2653, %v2645
    %v3238 = vpack.c.b16 %v2654, %v2646
    %v3239 = vpack.c.b16 %v2655, %v2647
    %v3240 = vpack.c.b16 %v2656, %v2648
    %v3241 = vpack.c.b16 %v2665, %v2657
    %v3242 = vpack.c.b16 %v2666, %v2658
    %v3243 = vpack.c.b16 %v2667, %v2659
    %v3244 = vpack.c.b16 %v2668, %v2660
    %v3245 = vpack.c.b16 %v2669, %v2661
    %v3246 = vpack.c.b16 %v2670, %v2662
    %v3247 = vpack.c.b16 %v2671, %v2663
    %v3248 = vpack.c.b16 %v2672, %v2664
    %v3249 = vpack.c.b16 %v2681, %v2673
    %v3250 = vpack.c.b16 %v2682, %v2674
    %v3251 = vpack.c.b16 %v2683, %v2675
    %v3252 = vpack.c.b16 %v2684, %v2676
    %v3253 = vpack.c.b16 %v2685, %v2677
    %v3254 = vpack.c.b16 %v2686, %v2678
    %v3255 = vpack.c.b16 %v2687, %v2679
    %v3256 = vpack.c.b16 %v2688, %v2680
    %v3257 = vpack.c.b16 %v2697, %v2689
    %v3258 = vpack.c.b16 %v2698, %v2690
    %v3259 = vpack.c.b16 %v2699, %v2691
    %v3260 = vpack.c.b16 %v2700, %v2692
    %v3261 = vpack.c.b16 %v2701, %v2693
    %v3262 = vpack.c.b16 %v2702, %v2694
    %v3263 = vpack.c.b16 %v2703, %v2695
    %v3264 = vpack.c.b16 %v2704, %v2696
    %v3265 = vpack.c.b16 %v2713, %v2705
    %v3266 = vpack.c.b16 %v2714, %v2706
    %v3267 = vpack.c.b16 %v2715, %v2707
    %v3268 = vpack.c.b16 %v2716, %v2708
    %v3269 = vpack.c.b16 %v2717, %v2709
    %v3270 = vpack.c.b16 %v2718, %v2710
    %v3271 = vpack.c.b16 %v2719, %v2711
    %v3272 = vpack.c.b16 %v2720, %v2712
    %v3273 = vpack.c.b16 %v2729, %v2721
    %v3274 = vpack.c.b16 %v2730, %v2722
    %v3275 = vpack.c.b16 %v2731, %v2723
    %v3276 = vpack.c.b16 %v2732, %v2724
    %v3277 = vpack.c.b16 %v2733, %v2725
    %v3278 = vpack.c.b16 %v2734, %v2726
    %v3279 = vpack.c.b16 %v2735, %v2727
    %v3280 = vpack.c.b16 %v2736, %v2728
    %v3281 = vpack.c.b16 %v2745, %v2737
    %v3282 = vpack.c.b16 %v2746, %v2738
    %v3283 = vpack.c.b16 %v2747, %v2739
    %v3284 = vpack.c.b16 %v2748, %v2740
    %v3285 = vpack.c.b16 %v2749, %v2741
    %v3286 = vpack.c.b16 %v2750, %v2742
    %v3287 = vpack.c.b16 %v2751, %v2743
    %v3288 = vpack.c.b16 %v2752, %v2744
    %v3289 = vpack.c.b16 %v2761, %v2753
    %v3290 = vpack.c.b16 %v2762, %v2754
    %v3291 = vpack.c.b16 %v2763, %v2755
    %v3292 = vpack.c.b16 %v2764, %v2756
    %v3293 = vpack.c.b16 %v2765, %v2757
    %v3294 = vpack.c.b16 %v2766, %v2758
    %v3295 = vpack.c.b16 %v2767, %v2759
    %v3296 = vpack.c.b16 %v2768, %v2760
    %v3297 = vpack.c.b16 %v2777, %v2769
    %v3298 = vpack.c.b16 %v2778, %v2770
    %v3299 = vpack.c.b16 %v2779, %v2771
    %v3300 = vpack.c.b16 %v2780, %v2772
    %v3301 = vpack.c.b16 %v2781, %v2773
    %v3302 = vpack.c.b16 %v2782, %v2774
    %v3303 = vpack.c.b16 %v2783, %v2775
    %v3304 = vpack.c.b16 %v2784, %v2776
    %v3305 = vpack.c.b16 %v2793, %v2785
    %v3306 = vpack.c.b16 %v2794, %v2786
    %v3307 = vpack.c.b16 %v2795, %v2787
    %v3308 = vpack.c.b16 %v2796, %v2788
    %v3309 = vpack.c.b16 %v2797, %v2789
    %v3310 = vpack.c.b16 %v2798, %v2790
    %v3311 = vpack.c.b16 %v2799, %v2791
    %v3312 = vpack.c.b16 %v2800, %v2792
    %3825 = vmatprep.subr.bf16.mxu0 %v2802
    %3826 = vmatpush1.bf16.msra.mxu0 %v2801
    %3827 = vmatprep.subr.bf16.mxu0 %v2810
    %3828 = vmatpush1.bf16.msra.mxu0 %v2809
    %3829 = vmatprep.subr.bf16.mxu0 %v2818
    %3830 = vmatpush1.bf16.msra.mxu0 %v2817
    %3831 = vmatprep.subr.bf16.mxu0 %v2826
    %3832 = vmatpush1.bf16.msra.mxu0 %v2825
    %3833 = vmatprep.subr.bf16.mxu0 %v2834
    %3834 = vmatpush1.bf16.msra.mxu0 %v2833
    %3835 = vmatprep.subr.bf16.mxu0 %v2842
    %3836 = vmatpush1.bf16.msra.mxu0 %v2841
    %3837 = vmatprep.subr.bf16.mxu0 %v2850
    %3838 = vmatpush1.bf16.msra.mxu0 %v2849
    %3839 = vmatprep.subr.bf16.mxu0 %v2858
    %3840 = vmatpush1.bf16.msra.mxu0 %v2857
    %3841 = vmatprep.subr.bf16.mxu0 %v2866
    %3842 = vmatpush1.bf16.msra.mxu0 %v2865
    %3843 = vmatprep.subr.bf16.mxu0 %v2874
    %3844 = vmatpush1.bf16.msra.mxu0 %v2873
    %3845 = vmatprep.subr.bf16.mxu0 %v2882
    %3846 = vmatpush1.bf16.msra.mxu0 %v2881
    %3847 = vmatprep.subr.bf16.mxu0 %v2890
    %3848 = vmatpush1.bf16.msra.mxu0 %v2889
    %3849 = vmatprep.subr.bf16.mxu0 %v2898
    %3850 = vmatpush1.bf16.msra.mxu0 %v2897
    %3851 = vmatprep.subr.bf16.mxu0 %v2906
    %3852 = vmatpush1.bf16.msra.mxu0 %v2905
    %3853 = vmatprep.subr.bf16.mxu0 %v2914
    %3854 = vmatpush1.bf16.msra.mxu0 %v2913
    %3855 = vmatprep.subr.bf16.mxu0 %v2922
    %3856 = vmatpush1.bf16.msra.mxu0 %v2921
    %3857 = vmatprep.mubr.bf16.mxu0 %v704
    %3858 = vmatmul.mubr.bf16.gmra.mrb[0].mxu0 %v703
    %v3859 = vpop.f32.mrb[0].mxu0
    %v3860 = vadd.f32 %v1228, %v3859
    %v3861 = vpop.f32.mrb[0].mxu0
    %v3862 = vadd.f32 %v1232, %v3861
    %v3863 = vpop.f32.mrb[0].mxu0
    %v3864 = vpop.f32.mrb[0].mxu0
    %3865 = vdwg.mxu0
    %3866 = vmatprep.subr.bf16.mxu0 %v2930
    %3867 = vmatpush1.bf16.msra.mxu0 %v2929
    %3868 = vmatprep.subr.bf16.mxu0 %v2938
    %3869 = vmatpush1.bf16.msra.mxu0 %v2937
    %3870 = vmatprep.subr.bf16.mxu0 %v2946
    %3871 = vmatpush1.bf16.msra.mxu0 %v2945
    %3872 = vmatprep.subr.bf16.mxu0 %v2954
    %3873 = vmatpush1.bf16.msra.mxu0 %v2953
    %3874 = vmatprep.subr.bf16.mxu0 %v2962
    %3875 = vmatpush1.bf16.msra.mxu0 %v2961
    %3876 = vmatprep.subr.bf16.mxu0 %v2970
    %3877 = vmatpush1.bf16.msra.mxu0 %v2969
    %3878 = vmatprep.subr.bf16.mxu0 %v2978
    %3879 = vmatpush1.bf16.msra.mxu0 %v2977
    %3880 = vmatprep.subr.bf16.mxu0 %v2986
    %3881 = vmatpush1.bf16.msra.mxu0 %v2985
    %3882 = vmatprep.subr.bf16.mxu0 %v2994
    %3883 = vmatpush1.bf16.msra.mxu0 %v2993
    %3884 = vmatprep.subr.bf16.mxu0 %v3002
    %3885 = vmatpush1.bf16.msra.mxu0 %v3001
    %3886 = vmatprep.subr.bf16.mxu0 %v3010
    %3887 = vmatpush1.bf16.msra.mxu0 %v3009
    %3888 = vmatprep.subr.bf16.mxu0 %v3018
    %3889 = vmatpush1.bf16.msra.mxu0 %v3017
    %3890 = vmatprep.subr.bf16.mxu0 %v3026
    %3891 = vmatpush1.bf16.msra.mxu0 %v3025
    %3892 = vmatprep.subr.bf16.mxu0 %v3034
    %3893 = vmatpush1.bf16.msra.mxu0 %v3033
    %3894 = vmatprep.subr.bf16.mxu0 %v3042
    %3895 = vmatpush1.bf16.msra.mxu0 %v3041
    %3896 = vmatprep.subr.bf16.mxu0 %v3050
    %3897 = vmatpush1.bf16.msra.mxu0 %v3049
    %3898 = vmatprep.mubr.bf16.mxu0 %v706
    %3899 = vmatmul.mubr.bf16.gmra.mrb[0].mxu0 %v705
    %v3900 = vpop.f32.mrb[0].mxu0
    %v3901 = vadd.f32 %v3860, %v3900
    %v3902 = vpop.f32.mrb[0].mxu0
    %v3903 = vadd.f32 %v3862, %v3902
    %v3904 = vpop.f32.mrb[0].mxu0
    %v3905 = vpop.f32.mrb[0].mxu0
    %3906 = vdwg.mxu0
    %3907 = vmatprep.subr.bf16.mxu0 %v3058
    %3908 = vmatpush1.bf16.msra.mxu0 %v3057
    %3909 = vmatprep.subr.bf16.mxu0 %v3066
    %3910 = vmatpush1.bf16.msra.mxu0 %v3065
    %3911 = vmatprep.subr.bf16.mxu0 %v3074
    %3912 = vmatpush1.bf16.msra.mxu0 %v3073
    %3913 = vmatprep.subr.bf16.mxu0 %v3082
    %3914 = vmatpush1.bf16.msra.mxu0 %v3081
    %3915 = vmatprep.subr.bf16.mxu0 %v3090
    %3916 = vmatpush1.bf16.msra.mxu0 %v3089
    %3917 = vmatprep.subr.bf16.mxu0 %v3098
    %3918 = vmatpush1.bf16.msra.mxu0 %v3097
    %3919 = vmatprep.subr.bf16.mxu0 %v3106
    %3920 = vmatpush1.bf16.msra.mxu0 %v3105
    %3921 = vmatprep.subr.bf16.mxu0 %v3114
    %3922 = vmatpush1.bf16.msra.mxu0 %v3113
    %3923 = vmatprep.subr.bf16.mxu0 %v3122
    %3924 = vmatpush1.bf16.msra.mxu0 %v3121
    %3925 = vmatprep.subr.bf16.mxu0 %v3130
    %3926 = vmatpush1.bf16.msra.mxu0 %v3129
    %3927 = vmatprep.subr.bf16.mxu0 %v3138
    %3928 = vmatpush1.bf16.msra.mxu0 %v3137
    %3929 = vmatprep.subr.bf16.mxu0 %v3146
    %3930 = vmatpush1.bf16.msra.mxu0 %v3145
    %3931 = vmatprep.subr.bf16.mxu0 %v3154
    %3932 = vmatpush1.bf16.msra.mxu0 %v3153
    %3933 = vmatprep.subr.bf16.mxu0 %v3162
    %3934 = vmatpush1.bf16.msra.mxu0 %v3161
    %3935 = vmatprep.subr.bf16.mxu0 %v3170
    %3936 = vmatpush1.bf16.msra.mxu0 %v3169
    %3937 = vmatprep.subr.bf16.mxu0 %v3178
    %3938 = vmatpush1.bf16.msra.mxu0 %v3177
    %3939 = vmatprep.mubr.bf16.mxu0 %v708
    %3940 = vmatmul.mubr.bf16.gmra.mrb[0].mxu0 %v707
    %v3941 = vpop.f32.mrb[0].mxu0
    %v3942 = vadd.f32 %v3901, %v3941
    %v3943 = vpop.f32.mrb[0].mxu0
    %v3944 = vadd.f32 %v3903, %v3943
    %v3945 = vpop.f32.mrb[0].mxu0
    %v3946 = vpop.f32.mrb[0].mxu0
    %3947 = vdwg.mxu0
    %3948 = vmatprep.subr.bf16.mxu0 %v3186
    %3949 = vmatpush1.bf16.msra.mxu0 %v3185
    %3950 = vmatprep.subr.bf16.mxu0 %v3194
    %3951 = vmatpush1.bf16.msra.mxu0 %v3193
    %3952 = vmatprep.subr.bf16.mxu0 %v3202
    %3953 = vmatpush1.bf16.msra.mxu0 %v3201
    %3954 = vmatprep.subr.bf16.mxu0 %v3210
    %3955 = vmatpush1.bf16.msra.mxu0 %v3209
    %3956 = vmatprep.subr.bf16.mxu0 %v3218
    %3957 = vmatpush1.bf16.msra.mxu0 %v3217
    %3958 = vmatprep.subr.bf16.mxu0 %v3226
    %3959 = vmatpush1.bf16.msra.mxu0 %v3225
    %3960 = vmatprep.subr.bf16.mxu0 %v3234
    %3961 = vmatpush1.bf16.msra.mxu0 %v3233
    %3962 = vmatprep.subr.bf16.mxu0 %v3242
    %3963 = vmatpush1.bf16.msra.mxu0 %v3241
    %3964 = vmatprep.subr.bf16.mxu0 %v3250
    %3965 = vmatpush1.bf16.msra.mxu0 %v3249
    %3966 = vmatprep.subr.bf16.mxu0 %v3258
    %3967 = vmatpush1.bf16.msra.mxu0 %v3257
    %3968 = vmatprep.subr.bf16.mxu0 %v3266
    %3969 = vmatpush1.bf16.msra.mxu0 %v3265
    %3970 = vmatprep.subr.bf16.mxu0 %v3274
    %3971 = vmatpush1.bf16.msra.mxu0 %v3273
    %3972 = vmatprep.subr.bf16.mxu0 %v3282
    %3973 = vmatpush1.bf16.msra.mxu0 %v3281
    %3974 = vmatprep.subr.bf16.mxu0 %v3290
    %3975 = vmatpush1.bf16.msra.mxu0 %v3289
    %3976 = vmatprep.subr.bf16.mxu0 %v3298
    %3977 = vmatpush1.bf16.msra.mxu0 %v3297
    %3978 = vmatprep.subr.bf16.mxu0 %v3306
    %3979 = vmatpush1.bf16.msra.mxu0 %v3305
    %3980 = vmatprep.mubr.bf16.mxu0 %v710
    %3981 = vmatmul.mubr.bf16.gmra.mrb[0].mxu0 %v709
    %v3982 = vpop.f32.mrb[0].mxu0
    %v3983 = vadd.f32 %v3942, %v3982
    %v3984 = vpop.f32.mrb[0].mxu0
    %v3985 = vadd.f32 %v3944, %v3984
    %v3986 = vpop.f32.mrb[0].mxu0
    %v3987 = vpop.f32.mrb[0].mxu0
    %3988 = vdwg.mxu0
    %3989 = vmatprep.subr.bf16.mxu0 %v2804
    %3990 = vmatpush1.bf16.msra.mxu0 %v2803
    %3991 = vmatprep.subr.bf16.mxu0 %v2812
    %3992 = vmatpush1.bf16.msra.mxu0 %v2811
    %3993 = vmatprep.subr.bf16.mxu0 %v2820
    %3994 = vmatpush1.bf16.msra.mxu0 %v2819
    %3995 = vmatprep.subr.bf16.mxu0 %v2828
    %3996 = vmatpush1.bf16.msra.mxu0 %v2827
    %3997 = vmatprep.subr.bf16.mxu0 %v2836
    %3998 = vmatpush1.bf16.msra.mxu0 %v2835
    %3999 = vmatprep.subr.bf16.mxu0 %v2844
    %4000 = vmatpush1.bf16.msra.mxu0 %v2843
    %4001 = vmatprep.subr.bf16.mxu0 %v2852
    %4002 = vmatpush1.bf16.msra.mxu0 %v2851
    %4003 = vmatprep.subr.bf16.mxu0 %v2860
    %4004 = vmatpush1.bf16.msra.mxu0 %v2859
    %4005 = vmatprep.subr.bf16.mxu0 %v2868
    %4006 = vmatpush1.bf16.msra.mxu0 %v2867
    %4007 = vmatprep.subr.bf16.mxu0 %v2876
    %4008 = vmatpush1.bf16.msra.mxu0 %v2875
    %4009 = vmatprep.subr.bf16.mxu0 %v2884
    %4010 = vmatpush1.bf16.msra.mxu0 %v2883
    %4011 = vmatprep.subr.bf16.mxu0 %v2892
    %4012 = vmatpush1.bf16.msra.mxu0 %v2891
    %4013 = vmatprep.subr.bf16.mxu0 %v2900
    %4014 = vmatpush1.bf16.msra.mxu0 %v2899
    %4015 = vmatprep.subr.bf16.mxu0 %v2908
    %4016 = vmatpush1.bf16.msra.mxu0 %v2907
    %4017 = vmatprep.subr.bf16.mxu0 %v2916
    %4018 = vmatpush1.bf16.msra.mxu0 %v2915
    %4019 = vmatprep.subr.bf16.mxu0 %v2924
    %4020 = vmatpush1.bf16.msra.mxu0 %v2923
    %4021 = vmatprep.mubr.bf16.mxu0 %v704
    %4022 = vmatmul.mubr.bf16.gmra.mrb[0].mxu0 %v703
    %v4023 = vpop.f32.mrb[0].mxu0
    %v4024 = vadd.f32 %v1236, %v4023
    %v4025 = vpop.f32.mrb[0].mxu0
    %v4026 = vadd.f32 %v1240, %v4025
    %v4027 = vpop.f32.mrb[0].mxu0
    %v4028 = vpop.f32.mrb[0].mxu0
    %4029 = vdwg.mxu0
    %4030 = vmatprep.subr.bf16.mxu0 %v2932
    %4031 = vmatpush1.bf16.msra.mxu0 %v2931
    %4032 = vmatprep.subr.bf16.mxu0 %v2940
    %4033 = vmatpush1.bf16.msra.mxu0 %v2939
    %4034 = vmatprep.subr.bf16.mxu0 %v2948
    %4035 = vmatpush1.bf16.msra.mxu0 %v2947
    %4036 = vmatprep.subr.bf16.mxu0 %v2956
    %4037 = vmatpush1.bf16.msra.mxu0 %v2955
    %4038 = vmatprep.subr.bf16.mxu0 %v2964
    %4039 = vmatpush1.bf16.msra.mxu0 %v2963
    %4040 = vmatprep.subr.bf16.mxu0 %v2972
    %4041 = vmatpush1.bf16.msra.mxu0 %v2971
    %4042 = vmatprep.subr.bf16.mxu0 %v2980
    %4043 = vmatpush1.bf16.msra.mxu0 %v2979
    %4044 = vmatprep.subr.bf16.mxu0 %v2988
    %4045 = vmatpush1.bf16.msra.mxu0 %v2987
    %4046 = vmatprep.subr.bf16.mxu0 %v2996
    %4047 = vmatpush1.bf16.msra.mxu0 %v2995
    %4048 = vmatprep.subr.bf16.mxu0 %v3004
    %4049 = vmatpush1.bf16.msra.mxu0 %v3003
    %4050 = vmatprep.subr.bf16.mxu0 %v3012
    %4051 = vmatpush1.bf16.msra.mxu0 %v3011
    %4052 = vmatprep.subr.bf16.mxu0 %v3020
    %4053 = vmatpush1.bf16.msra.mxu0 %v3019
    %4054 = vmatprep.subr.bf16.mxu0 %v3028
    %4055 = vmatpush1.bf16.msra.mxu0 %v3027
    %4056 = vmatprep.subr.bf16.mxu0 %v3036
    %4057 = vmatpush1.bf16.msra.mxu0 %v3035
    %4058 = vmatprep.subr.bf16.mxu0 %v3044
    %4059 = vmatpush1.bf16.msra.mxu0 %v3043
    %4060 = vmatprep.subr.bf16.mxu0 %v3052
    %4061 = vmatpush1.bf16.msra.mxu0 %v3051
    %4062 = vmatprep.mubr.bf16.mxu0 %v706
    %4063 = vmatmul.mubr.bf16.gmra.mrb[0].mxu0 %v705
    %v4064 = vpop.f32.mrb[0].mxu0
    %v4065 = vadd.f32 %v4024, %v4064
    %v4066 = vpop.f32.mrb[0].mxu0
    %v4067 = vadd.f32 %v4026, %v4066
    %v4068 = vpop.f32.mrb[0].mxu0
    %v4069 = vpop.f32.mrb[0].mxu0
    %4070 = vdwg.mxu0
    %4071 = vmatprep.subr.bf16.mxu0 %v3060
    %4072 = vmatpush1.bf16.msra.mxu0 %v3059
    %4073 = vmatprep.subr.bf16.mxu0 %v3068
    %4074 = vmatpush1.bf16.msra.mxu0 %v3067
    %4075 = vmatprep.subr.bf16.mxu0 %v3076
    %4076 = vmatpush1.bf16.msra.mxu0 %v3075
    %4077 = vmatprep.subr.bf16.mxu0 %v3084
    %4078 = vmatpush1.bf16.msra.mxu0 %v3083
    %4079 = vmatprep.subr.bf16.mxu0 %v3092
    %4080 = vmatpush1.bf16.msra.mxu0 %v3091
    %4081 = vmatprep.subr.bf16.mxu0 %v3100
    %4082 = vmatpush1.bf16.msra.mxu0 %v3099
    %4083 = vmatprep.subr.bf16.mxu0 %v3108
    %4084 = vmatpush1.bf16.msra.mxu0 %v3107
    %4085 = vmatprep.subr.bf16.mxu0 %v3116
    %4086 = vmatpush1.bf16.msra.mxu0 %v3115
    %4087 = vmatprep.subr.bf16.mxu0 %v3124
    %4088 = vmatpush1.bf16.msra.mxu0 %v3123
    %4089 = vmatprep.subr.bf16.mxu0 %v3132
    %4090 = vmatpush1.bf16.msra.mxu0 %v3131
    %4091 = vmatprep.subr.bf16.mxu0 %v3140
    %4092 = vmatpush1.bf16.msra.mxu0 %v3139
    %4093 = vmatprep.subr.bf16.mxu0 %v3148
    %4094 = vmatpush1.bf16.msra.mxu0 %v3147
    %4095 = vmatprep.subr.bf16.mxu0 %v3156
    %4096 = vmatpush1.bf16.msra.mxu0 %v3155
    %4097 = vmatprep.subr.bf16.mxu0 %v3164
    %4098 = vmatpush1.bf16.msra.mxu0 %v3163
    %4099 = vmatprep.subr.bf16.mxu0 %v3172
    %4100 = vmatpush1.bf16.msra.mxu0 %v3171
    %4101 = vmatprep.subr.bf16.mxu0 %v3180
    %4102 = vmatpush1.bf16.msra.mxu0 %v3179
    %4103 = vmatprep.mubr.bf16.mxu0 %v708
    %4104 = vmatmul.mubr.bf16.gmra.mrb[0].mxu0 %v707
    %v4105 = vpop.f32.mrb[0].mxu0
    %v4106 = vadd.f32 %v4065, %v4105
    %v4107 = vpop.f32.mrb[0].mxu0
    %v4108 = vadd.f32 %v4067, %v4107
    %v4109 = vpop.f32.mrb[0].mxu0
    %v4110 = vpop.f32.mrb[0].mxu0
    %4111 = vdwg.mxu0
    %4112 = vmatprep.subr.bf16.mxu0 %v3188
    %4113 = vmatpush1.bf16.msra.mxu0 %v3187
    %4114 = vmatprep.subr.bf16.mxu0 %v3196
    %4115 = vmatpush1.bf16.msra.mxu0 %v3195
    %4116 = vmatprep.subr.bf16.mxu0 %v3204
    %4117 = vmatpush1.bf16.msra.mxu0 %v3203
    %4118 = vmatprep.subr.bf16.mxu0 %v3212
    %4119 = vmatpush1.bf16.msra.mxu0 %v3211
    %4120 = vmatprep.subr.bf16.mxu0 %v3220
    %4121 = vmatpush1.bf16.msra.mxu0 %v3219
    %4122 = vmatprep.subr.bf16.mxu0 %v3228
    %4123 = vmatpush1.bf16.msra.mxu0 %v3227
    %4124 = vmatprep.subr.bf16.mxu0 %v3236
    %4125 = vmatpush1.bf16.msra.mxu0 %v3235
    %4126 = vmatprep.subr.bf16.mxu0 %v3244
    %4127 = vmatpush1.bf16.msra.mxu0 %v3243
    %4128 = vmatprep.subr.bf16.mxu0 %v3252
    %4129 = vmatpush1.bf16.msra.mxu0 %v3251
    %4130 = vmatprep.subr.bf16.mxu0 %v3260
    %4131 = vmatpush1.bf16.msra.mxu0 %v3259
    %4132 = vmatprep.subr.bf16.mxu0 %v3268
    %4133 = vmatpush1.bf16.msra.mxu0 %v3267
    %4134 = vmatprep.subr.bf16.mxu0 %v3276
    %4135 = vmatpush1.bf16.msra.mxu0 %v3275
    %4136 = vmatprep.subr.bf16.mxu0 %v3284
    %4137 = vmatpush1.bf16.msra.mxu0 %v3283
    %4138 = vmatprep.subr.bf16.mxu0 %v3292
    %4139 = vmatpush1.bf16.msra.mxu0 %v3291
    %4140 = vmatprep.subr.bf16.mxu0 %v3300
    %4141 = vmatpush1.bf16.msra.mxu0 %v3299
    %4142 = vmatprep.subr.bf16.mxu0 %v3308
    %4143 = vmatpush1.bf16.msra.mxu0 %v3307
    %4144 = vmatprep.mubr.bf16.mxu0 %v710
    %4145 = vmatmul.mubr.bf16.gmra.mrb[0].mxu0 %v709
    %v4146 = vpop.f32.mrb[0].mxu0
    %v4147 = vadd.f32 %v4106, %v4146
    %v4148 = vpop.f32.mrb[0].mxu0
    %v4149 = vadd.f32 %v4108, %v4148
    %v4150 = vpop.f32.mrb[0].mxu0
    %v4151 = vpop.f32.mrb[0].mxu0
    %4152 = vdwg.mxu0
    %4153 = vmatprep.subr.bf16.mxu0 %v2806
    %4154 = vmatpush1.bf16.msra.mxu0 %v2805
    %4155 = vmatprep.subr.bf16.mxu0 %v2814
    %4156 = vmatpush1.bf16.msra.mxu0 %v2813
    %4157 = vmatprep.subr.bf16.mxu0 %v2822
    %4158 = vmatpush1.bf16.msra.mxu0 %v2821
    %4159 = vmatprep.subr.bf16.mxu0 %v2830
    %4160 = vmatpush1.bf16.msra.mxu0 %v2829
    %4161 = vmatprep.subr.bf16.mxu0 %v2838
    %4162 = vmatpush1.bf16.msra.mxu0 %v2837
    %4163 = vmatprep.subr.bf16.mxu0 %v2846
    %4164 = vmatpush1.bf16.msra.mxu0 %v2845
    %4165 = vmatprep.subr.bf16.mxu0 %v2854
    %4166 = vmatpush1.bf16.msra.mxu0 %v2853
    %4167 = vmatprep.subr.bf16.mxu0 %v2862
    %4168 = vmatpush1.bf16.msra.mxu0 %v2861
    %4169 = vmatprep.subr.bf16.mxu0 %v2870
    %4170 = vmatpush1.bf16.msra.mxu0 %v2869
    %4171 = vmatprep.subr.bf16.mxu0 %v2878
    %4172 = vmatpush1.bf16.msra.mxu0 %v2877
    %4173 = vmatprep.subr.bf16.mxu0 %v2886
    %4174 = vmatpush1.bf16.msra.mxu0 %v2885
    %4175 = vmatprep.subr.bf16.mxu0 %v2894
    %4176 = vmatpush1.bf16.msra.mxu0 %v2893
    %4177 = vmatprep.subr.bf16.mxu0 %v2902
    %4178 = vmatpush1.bf16.msra.mxu0 %v2901
    %4179 = vmatprep.subr.bf16.mxu0 %v2910
    %4180 = vmatpush1.bf16.msra.mxu0 %v2909
    %4181 = vmatprep.subr.bf16.mxu0 %v2918
    %4182 = vmatpush1.bf16.msra.mxu0 %v2917
    %4183 = vmatprep.subr.bf16.mxu0 %v2926
    %4184 = vmatpush1.bf16.msra.mxu0 %v2925
    %4185 = vmatprep.mubr.bf16.mxu0 %v704
    %4186 = vmatmul.mubr.bf16.gmra.mrb[0].mxu0 %v703
    %v4187 = vpop.f32.mrb[0].mxu0
    %v4188 = vadd.f32 %v1244, %v4187
    %v4189 = vpop.f32.mrb[0].mxu0
    %v4190 = vadd.f32 %v1248, %v4189
    %v4191 = vpop.f32.mrb[0].mxu0
    %v4192 = vpop.f32.mrb[0].mxu0
    %4193 = vdwg.mxu0
    %4194 = vmatprep.subr.bf16.mxu0 %v2934
    %4195 = vmatpush1.bf16.msra.mxu0 %v2933
    %4196 = vmatprep.subr.bf16.mxu0 %v2942
    %4197 = vmatpush1.bf16.msra.mxu0 %v2941
    %4198 = vmatprep.subr.bf16.mxu0 %v2950
    %4199 = vmatpush1.bf16.msra.mxu0 %v2949
    %4200 = vmatprep.subr.bf16.mxu0 %v2958
    %4201 = vmatpush1.bf16.msra.mxu0 %v2957
    %4202 = vmatprep.subr.bf16.mxu0 %v2966
    %4203 = vmatpush1.bf16.msra.mxu0 %v2965
    %4204 = vmatprep.subr.bf16.mxu0 %v2974
    %4205 = vmatpush1.bf16.msra.mxu0 %v2973
    %4206 = vmatprep.subr.bf16.mxu0 %v2982
    %4207 = vmatpush1.bf16.msra.mxu0 %v2981
    %4208 = vmatprep.subr.bf16.mxu0 %v2990
    %4209 = vmatpush1.bf16.msra.mxu0 %v2989
    %4210 = vmatprep.subr.bf16.mxu0 %v2998
    %4211 = vmatpush1.bf16.msra.mxu0 %v2997
    %4212 = vmatprep.subr.bf16.mxu0 %v3006
    %4213 = vmatpush1.bf16.msra.mxu0 %v3005
    %4214 = vmatprep.subr.bf16.mxu0 %v3014
    %4215 = vmatpush1.bf16.msra.mxu0 %v3013
    %4216 = vmatprep.subr.bf16.mxu0 %v3022
    %4217 = vmatpush1.bf16.msra.mxu0 %v3021
    %4218 = vmatprep.subr.bf16.mxu0 %v3030
    %4219 = vmatpush1.bf16.msra.mxu0 %v3029
    %4220 = vmatprep.subr.bf16.mxu0 %v3038
    %4221 = vmatpush1.bf16.msra.mxu0 %v3037
    %4222 = vmatprep.subr.bf16.mxu0 %v3046
    %4223 = vmatpush1.bf16.msra.mxu0 %v3045
    %4224 = vmatprep.subr.bf16.mxu0 %v3054
    %4225 = vmatpush1.bf16.msra.mxu0 %v3053
    %4226 = vmatprep.mubr.bf16.mxu0 %v706
    %4227 = vmatmul.mubr.bf16.gmra.mrb[0].mxu0 %v705
    %v4228 = vpop.f32.mrb[0].mxu0
    %v4229 = vadd.f32 %v4188, %v4228
    %v4230 = vpop.f32.mrb[0].mxu0
    %v4231 = vadd.f32 %v4190, %v4230
    %v4232 = vpop.f32.mrb[0].mxu0
    %v4233 = vpop.f32.mrb[0].mxu0
    %4234 = vdwg.mxu0
    %4235 = vmatprep.subr.bf16.mxu0 %v3062
    %4236 = vmatpush1.bf16.msra.mxu0 %v3061
    %4237 = vmatprep.subr.bf16.mxu0 %v3070
    %4238 = vmatpush1.bf16.msra.mxu0 %v3069
    %4239 = vmatprep.subr.bf16.mxu0 %v3078
    %4240 = vmatpush1.bf16.msra.mxu0 %v3077
    %4241 = vmatprep.subr.bf16.mxu0 %v3086
    %4242 = vmatpush1.bf16.msra.mxu0 %v3085
    %4243 = vmatprep.subr.bf16.mxu0 %v3094
    %4244 = vmatpush1.bf16.msra.mxu0 %v3093
    %4245 = vmatprep.subr.bf16.mxu0 %v3102
    %4246 = vmatpush1.bf16.msra.mxu0 %v3101
    %4247 = vmatprep.subr.bf16.mxu0 %v3110
    %4248 = vmatpush1.bf16.msra.mxu0 %v3109
    %4249 = vmatprep.subr.bf16.mxu0 %v3118
    %4250 = vmatpush1.bf16.msra.mxu0 %v3117
    %4251 = vmatprep.subr.bf16.mxu0 %v3126
    %4252 = vmatpush1.bf16.msra.mxu0 %v3125
    %4253 = vmatprep.subr.bf16.mxu0 %v3134
    %4254 = vmatpush1.bf16.msra.mxu0 %v3133
    %4255 = vmatprep.subr.bf16.mxu0 %v3142
    %4256 = vmatpush1.bf16.msra.mxu0 %v3141
    %4257 = vmatprep.subr.bf16.mxu0 %v3150
    %4258 = vmatpush1.bf16.msra.mxu0 %v3149
    %4259 = vmatprep.subr.bf16.mxu0 %v3158
    %4260 = vmatpush1.bf16.msra.mxu0 %v3157
    %4261 = vmatprep.subr.bf16.mxu0 %v3166
    %4262 = vmatpush1.bf16.msra.mxu0 %v3165
    %4263 = vmatprep.subr.bf16.mxu0 %v3174
    %4264 = vmatpush1.bf16.msra.mxu0 %v3173
    %4265 = vmatprep.subr.bf16.mxu0 %v3182
    %4266 = vmatpush1.bf16.msra.mxu0 %v3181
    %4267 = vmatprep.mubr.bf16.mxu0 %v708
    %4268 = vmatmul.mubr.bf16.gmra.mrb[0].mxu0 %v707
    %v4269 = vpop.f32.mrb[0].mxu0
    %v4270 = vadd.f32 %v4229, %v4269
    %v4271 = vpop.f32.mrb[0].mxu0
    %v4272 = vadd.f32 %v4231, %v4271
    %v4273 = vpop.f32.mrb[0].mxu0
    %v4274 = vpop.f32.mrb[0].mxu0
    %4275 = vdwg.mxu0
    %4276 = vmatprep.subr.bf16.mxu0 %v3190
    %4277 = vmatpush1.bf16.msra.mxu0 %v3189
    %4278 = vmatprep.subr.bf16.mxu0 %v3198
    %4279 = vmatpush1.bf16.msra.mxu0 %v3197
    %4280 = vmatprep.subr.bf16.mxu0 %v3206
    %4281 = vmatpush1.bf16.msra.mxu0 %v3205
    %4282 = vmatprep.subr.bf16.mxu0 %v3214
    %4283 = vmatpush1.bf16.msra.mxu0 %v3213
    %4284 = vmatprep.subr.bf16.mxu0 %v3222
    %4285 = vmatpush1.bf16.msra.mxu0 %v3221
    %4286 = vmatprep.subr.bf16.mxu0 %v3230
    %4287 = vmatpush1.bf16.msra.mxu0 %v3229
    %4288 = vmatprep.subr.bf16.mxu0 %v3238
    %4289 = vmatpush1.bf16.msra.mxu0 %v3237
    %4290 = vmatprep.subr.bf16.mxu0 %v3246
    %4291 = vmatpush1.bf16.msra.mxu0 %v3245
    %4292 = vmatprep.subr.bf16.mxu0 %v3254
    %4293 = vmatpush1.bf16.msra.mxu0 %v3253
    %4294 = vmatprep.subr.bf16.mxu0 %v3262
    %4295 = vmatpush1.bf16.msra.mxu0 %v3261
    %4296 = vmatprep.subr.bf16.mxu0 %v3270
    %4297 = vmatpush1.bf16.msra.mxu0 %v3269
    %4298 = vmatprep.subr.bf16.mxu0 %v3278
    %4299 = vmatpush1.bf16.msra.mxu0 %v3277
    %4300 = vmatprep.subr.bf16.mxu0 %v3286
    %4301 = vmatpush1.bf16.msra.mxu0 %v3285
    %4302 = vmatprep.subr.bf16.mxu0 %v3294
    %4303 = vmatpush1.bf16.msra.mxu0 %v3293
    %4304 = vmatprep.subr.bf16.mxu0 %v3302
    %4305 = vmatpush1.bf16.msra.mxu0 %v3301
    %4306 = vmatprep.subr.bf16.mxu0 %v3310
    %4307 = vmatpush1.bf16.msra.mxu0 %v3309
    %4308 = vmatprep.mubr.bf16.mxu0 %v710
    %4309 = vmatmul.mubr.bf16.gmra.mrb[0].mxu0 %v709
    %v4310 = vpop.f32.mrb[0].mxu0
    %v4311 = vadd.f32 %v4270, %v4310
    %v4312 = vpop.f32.mrb[0].mxu0
    %v4313 = vadd.f32 %v4272, %v4312
    %v4314 = vpop.f32.mrb[0].mxu0
    %v4315 = vpop.f32.mrb[0].mxu0
    %4316 = vdwg.mxu0
    %4317 = vmatprep.subr.bf16.mxu0 %v2808
    %4318 = vmatpush1.bf16.msra.mxu0 %v2807
    %4319 = vmatprep.subr.bf16.mxu0 %v2816
    %4320 = vmatpush1.bf16.msra.mxu0 %v2815
    %4321 = vmatprep.subr.bf16.mxu0 %v2824
    %4322 = vmatpush1.bf16.msra.mxu0 %v2823
    %4323 = vmatprep.subr.bf16.mxu0 %v2832
    %4324 = vmatpush1.bf16.msra.mxu0 %v2831
    %4325 = vmatprep.subr.bf16.mxu0 %v2840
    %4326 = vmatpush1.bf16.msra.mxu0 %v2839
    %4327 = vmatprep.subr.bf16.mxu0 %v2848
    %4328 = vmatpush1.bf16.msra.mxu0 %v2847
    %4329 = vmatprep.subr.bf16.mxu0 %v2856
    %4330 = vmatpush1.bf16.msra.mxu0 %v2855
    %4331 = vmatprep.subr.bf16.mxu0 %v2864
    %4332 = vmatpush1.bf16.msra.mxu0 %v2863
    %4333 = vmatprep.subr.bf16.mxu0 %v2872
    %4334 = vmatpush1.bf16.msra.mxu0 %v2871
    %4335 = vmatprep.subr.bf16.mxu0 %v2880
    %4336 = vmatpush1.bf16.msra.mxu0 %v2879
    %4337 = vmatprep.subr.bf16.mxu0 %v2888
    %4338 = vmatpush1.bf16.msra.mxu0 %v2887
    %4339 = vmatprep.subr.bf16.mxu0 %v2896
    %4340 = vmatpush1.bf16.msra.mxu0 %v2895
    %4341 = vmatprep.subr.bf16.mxu0 %v2904
    %4342 = vmatpush1.bf16.msra.mxu0 %v2903
    %4343 = vmatprep.subr.bf16.mxu0 %v2912
    %4344 = vmatpush1.bf16.msra.mxu0 %v2911
    %4345 = vmatprep.subr.bf16.mxu0 %v2920
    %4346 = vmatpush1.bf16.msra.mxu0 %v2919
    %4347 = vmatprep.subr.bf16.mxu0 %v2928
    %4348 = vmatpush1.bf16.msra.mxu0 %v2927
    %4349 = vmatprep.mubr.bf16.mxu0 %v704
    %4350 = vmatmul.mubr.bf16.gmra.mrb[0].mxu0 %v703
    %v4351 = vpop.f32.mrb[0].mxu0
    %v4352 = vadd.f32 %v1252, %v4351
    %v4353 = vpop.f32.mrb[0].mxu0
    %v4354 = vadd.f32 %v1256, %v4353
    %v4355 = vpop.f32.mrb[0].mxu0
    %v4356 = vpop.f32.mrb[0].mxu0
    %4357 = vdwg.mxu0
    %4358 = vmatprep.subr.bf16.mxu0 %v2936
    %4359 = vmatpush1.bf16.msra.mxu0 %v2935
    %4360 = vmatprep.subr.bf16.mxu0 %v2944
    %4361 = vmatpush1.bf16.msra.mxu0 %v2943
    %4362 = vmatprep.subr.bf16.mxu0 %v2952
    %4363 = vmatpush1.bf16.msra.mxu0 %v2951
    %4364 = vmatprep.subr.bf16.mxu0 %v2960
    %4365 = vmatpush1.bf16.msra.mxu0 %v2959
    %4366 = vmatprep.subr.bf16.mxu0 %v2968
    %4367 = vmatpush1.bf16.msra.mxu0 %v2967
    %4368 = vmatprep.subr.bf16.mxu0 %v2976
    %4369 = vmatpush1.bf16.msra.mxu0 %v2975
    %4370 = vmatprep.subr.bf16.mxu0 %v2984
    %4371 = vmatpush1.bf16.msra.mxu0 %v2983
    %4372 = vmatprep.subr.bf16.mxu0 %v2992
    %4373 = vmatpush1.bf16.msra.mxu0 %v2991
    %4374 = vmatprep.subr.bf16.mxu0 %v3000
    %4375 = vmatpush1.bf16.msra.mxu0 %v2999
    %4376 = vmatprep.subr.bf16.mxu0 %v3008
    %4377 = vmatpush1.bf16.msra.mxu0 %v3007
    %4378 = vmatprep.subr.bf16.mxu0 %v3016
    %4379 = vmatpush1.bf16.msra.mxu0 %v3015
    %4380 = vmatprep.subr.bf16.mxu0 %v3024
    %4381 = vmatpush1.bf16.msra.mxu0 %v3023
    %4382 = vmatprep.subr.bf16.mxu0 %v3032
    %4383 = vmatpush1.bf16.msra.mxu0 %v3031
    %4384 = vmatprep.subr.bf16.mxu0 %v3040
    %4385 = vmatpush1.bf16.msra.mxu0 %v3039
    %4386 = vmatprep.subr.bf16.mxu0 %v3048
    %4387 = vmatpush1.bf16.msra.mxu0 %v3047
    %4388 = vmatprep.subr.bf16.mxu0 %v3056
    %4389 = vmatpush1.bf16.msra.mxu0 %v3055
    %4390 = vmatprep.mubr.bf16.mxu0 %v706
    %4391 = vmatmul.mubr.bf16.gmra.mrb[0].mxu0 %v705
    %v4392 = vpop.f32.mrb[0].mxu0
    %v4393 = vadd.f32 %v4352, %v4392
    %v4394 = vpop.f32.mrb[0].mxu0
    %v4395 = vadd.f32 %v4354, %v4394
    %v4396 = vpop.f32.mrb[0].mxu0
    %v4397 = vpop.f32.mrb[0].mxu0
    %4398 = vdwg.mxu0
    %4399 = vmatprep.subr.bf16.mxu0 %v3064
    %4400 = vmatpush1.bf16.msra.mxu0 %v3063
    %4401 = vmatprep.subr.bf16.mxu0 %v3072
    %4402 = vmatpush1.bf16.msra.mxu0 %v3071
    %4403 = vmatprep.subr.bf16.mxu0 %v3080
    %4404 = vmatpush1.bf16.msra.mxu0 %v3079
    %4405 = vmatprep.subr.bf16.mxu0 %v3088
    %4406 = vmatpush1.bf16.msra.mxu0 %v3087
    %4407 = vmatprep.subr.bf16.mxu0 %v3096
    %4408 = vmatpush1.bf16.msra.mxu0 %v3095
    %4409 = vmatprep.subr.bf16.mxu0 %v3104
    %4410 = vmatpush1.bf16.msra.mxu0 %v3103
    %4411 = vmatprep.subr.bf16.mxu0 %v3112
    %4412 = vmatpush1.bf16.msra.mxu0 %v3111
    %4413 = vmatprep.subr.bf16.mxu0 %v3120
    %4414 = vmatpush1.bf16.msra.mxu0 %v3119
    %4415 = vmatprep.subr.bf16.mxu0 %v3128
    %4416 = vmatpush1.bf16.msra.mxu0 %v3127
    %4417 = vmatprep.subr.bf16.mxu0 %v3136
    %4418 = vmatpush1.bf16.msra.mxu0 %v3135
    %4419 = vmatprep.subr.bf16.mxu0 %v3144
    %4420 = vmatpush1.bf16.msra.mxu0 %v3143
    %4421 = vmatprep.subr.bf16.mxu0 %v3152
    %4422 = vmatpush1.bf16.msra.mxu0 %v3151
    %4423 = vmatprep.subr.bf16.mxu0 %v3160
    %4424 = vmatpush1.bf16.msra.mxu0 %v3159
    %4425 = vmatprep.subr.bf16.mxu0 %v3168
    %4426 = vmatpush1.bf16.msra.mxu0 %v3167
    %4427 = vmatprep.subr.bf16.mxu0 %v3176
    %4428 = vmatpush1.bf16.msra.mxu0 %v3175
    %4429 = vmatprep.subr.bf16.mxu0 %v3184
    %4430 = vmatpush1.bf16.msra.mxu0 %v3183
    %4431 = vmatprep.mubr.bf16.mxu0 %v708
    %4432 = vmatmul.mubr.bf16.gmra.mrb[0].mxu0 %v707
    %v4433 = vpop.f32.mrb[0].mxu0
    %v4434 = vadd.f32 %v4393, %v4433
    %v4435 = vpop.f32.mrb[0].mxu0
    %v4436 = vadd.f32 %v4395, %v4435
    %v4437 = vpop.f32.mrb[0].mxu0
    %v4438 = vpop.f32.mrb[0].mxu0
    %4439 = vdwg.mxu0
    %4440 = vmatprep.subr.bf16.mxu0 %v3192
    %4441 = vmatpush1.bf16.msra.mxu0 %v3191
    %4442 = vmatprep.subr.bf16.mxu0 %v3200
    %4443 = vmatpush1.bf16.msra.mxu0 %v3199
    %4444 = vmatprep.subr.bf16.mxu0 %v3208
    %4445 = vmatpush1.bf16.msra.mxu0 %v3207
    %4446 = vmatprep.subr.bf16.mxu0 %v3216
    %4447 = vmatpush1.bf16.msra.mxu0 %v3215
    %4448 = vmatprep.subr.bf16.mxu0 %v3224
    %4449 = vmatpush1.bf16.msra.mxu0 %v3223
    %4450 = vmatprep.subr.bf16.mxu0 %v3232
    %4451 = vmatpush1.bf16.msra.mxu0 %v3231
    %4452 = vmatprep.subr.bf16.mxu0 %v3240
    %4453 = vmatpush1.bf16.msra.mxu0 %v3239
    %4454 = vmatprep.subr.bf16.mxu0 %v3248
    %4455 = vmatpush1.bf16.msra.mxu0 %v3247
    %4456 = vmatprep.subr.bf16.mxu0 %v3256
    %4457 = vmatpush1.bf16.msra.mxu0 %v3255
    %4458 = vmatprep.subr.bf16.mxu0 %v3264
    %4459 = vmatpush1.bf16.msra.mxu0 %v3263
    %4460 = vmatprep.subr.bf16.mxu0 %v3272
    %4461 = vmatpush1.bf16.msra.mxu0 %v3271
    %4462 = vmatprep.subr.bf16.mxu0 %v3280
    %4463 = vmatpush1.bf16.msra.mxu0 %v3279
    %4464 = vmatprep.subr.bf16.mxu0 %v3288
    %4465 = vmatpush1.bf16.msra.mxu0 %v3287
    %4466 = vmatprep.subr.bf16.mxu0 %v3296
    %4467 = vmatpush1.bf16.msra.mxu0 %v3295
    %4468 = vmatprep.subr.bf16.mxu0 %v3304
    %4469 = vmatpush1.bf16.msra.mxu0 %v3303
    %4470 = vmatprep.subr.bf16.mxu0 %v3312
    %4471 = vmatpush1.bf16.msra.mxu0 %v3311
    %4472 = vmatprep.mubr.bf16.mxu0 %v710
    %4473 = vmatmul.mubr.bf16.gmra.mrb[0].mxu0 %v709
    %v4474 = vpop.f32.mrb[0].mxu0
    %v4475 = vadd.f32 %v4434, %v4474
    %v4476 = vpop.f32.mrb[0].mxu0
    %v4477 = vadd.f32 %v4436, %v4476
    %v4478 = vpop.f32.mrb[0].mxu0
    %v4479 = vpop.f32.mrb[0].mxu0
    %4480 = vdwg.mxu0
    %v4481 = vmax.f32 %v3983, 0.0
    %v4482 = vmax.f32 %v3985, 0.0
    %v4483 = vmax.f32 %v4147, 0.0
    %v4484 = vmax.f32 %v4149, 0.0
    %v4485 = vmax.f32 %v4311, 0.0
    %v4486 = vmax.f32 %v4313, 0.0
    %v4487 = vmax.f32 %v4475, 0.0
    %v4488 = vmax.f32 %v4477, 0.0
    %v4489 = vpack.c.bf16 %v4481, %v4481
    %v4490 = vpack.c.bf16 %v4482, %v4482
    %v4491 = vpack.c.bf16 %v4483, %v4483
    %v4492 = vpack.c.bf16 %v4484, %v4484
    %v4493 = vpack.c.bf16 %v4485, %v4485
    %v4494 = vpack.c.bf16 %v4486, %v4486
    %v4495 = vpack.c.bf16 %v4487, %v4487
    %v4496 = vpack.c.bf16 %v4488, %v4488
    %v4497 = vld [vmem:[#allocation9] sm:$0xf]
    %v4498 = vld [vmem:[#allocation9 + $0x4] sm:$0xf]
    %v4499 = vld [vmem:[#allocation9 + $0x8] sm:$0xf]
    %v4500 = vld [vmem:[#allocation9 + $0xc] sm:$0xf]
    %v4501 = vld [vmem:[#allocation9 + $0x10] sm:$0xf]
    %v4502 = vld [vmem:[#allocation9 + $0x14] sm:$0xf]
    %v4503 = vld [vmem:[#allocation9 + $0x18] sm:$0xf]
    %v4504 = vld [vmem:[#allocation9 + $0x1c] sm:$0xf]
    %v4505 = vld [vmem:[#allocation9 + $0x20] sm:$0xf]
    %v4506 = vld [vmem:[#allocation9 + $0x24] sm:$0xf]
    %v4507 = vld [vmem:[#allocation9 + $0x28] sm:$0xf]
    %v4508 = vld [vmem:[#allocation9 + $0x2c] sm:$0xf]
    %v4509 = vld [vmem:[#allocation9 + $0x30] sm:$0xf]
    %v4510 = vld [vmem:[#allocation9 + $0x34] sm:$0xf]
    %v4511 = vld [vmem:[#allocation9 + $0x38] sm:$0xf]
    %v4512 = vld [vmem:[#allocation9 + $0x3c] sm:$0xf]
    %v4513 = vld [vmem:[#allocation9 + $0x40] sm:$0xf]
    %v4514 = vld [vmem:[#allocation9 + $0x44] sm:$0xf]
    %v4515 = vld [vmem:[#allocation9 + $0x48] sm:$0xf]
    %v4516 = vld [vmem:[#allocation9 + $0x4c] sm:$0xf]
    %v4517 = vld [vmem:[#allocation9 + $0x50] sm:$0xf]
    %v4518 = vld [vmem:[#allocation9 + $0x54] sm:$0xf]
    %v4519 = vld [vmem:[#allocation9 + $0x58] sm:$0xf]
    %v4520 = vld [vmem:[#allocation9 + $0x5c] sm:$0xf]
    %v4521 = vld [vmem:[#allocation9 + $0x60] sm:$0xf]
    %v4522 = vld [vmem:[#allocation9 + $0x64] sm:$0xf]
    %v4523 = vld [vmem:[#allocation9 + $0x68] sm:$0xf]
    %v4524 = vld [vmem:[#allocation9 + $0x6c] sm:$0xf]
    %v4525 = vld [vmem:[#allocation9 + $0x70] sm:$0xf]
    %v4526 = vld [vmem:[#allocation9 + $0x74] sm:$0xf]
    %v4527 = vld [vmem:[#allocation9 + $0x78] sm:$0xf]
    %v4528 = vld [vmem:[#allocation9 + $0x7c] sm:$0xf]
    %v4529 = vld [vmem:[#allocation9 + $0x80] sm:$0xf]
    %v4530 = vld [vmem:[#allocation9 + $0x84] sm:$0xf]
    %v4531 = vld [vmem:[#allocation9 + $0x88] sm:$0xf]
    %v4532 = vld [vmem:[#allocation9 + $0x8c] sm:$0xf]
    %v4533 = vld [vmem:[#allocation9 + $0x90] sm:$0xf]
    %v4534 = vld [vmem:[#allocation9 + $0x94] sm:$0xf]
    %v4535 = vld [vmem:[#allocation9 + $0x98] sm:$0xf]
    %v4536 = vld [vmem:[#allocation9 + $0x9c] sm:$0xf]
    %v4537 = vld [vmem:[#allocation9 + $0xa0] sm:$0xf]
    %v4538 = vld [vmem:[#allocation9 + $0xa4] sm:$0xf]
    %v4539 = vld [vmem:[#allocation9 + $0xa8] sm:$0xf]
    %v4540 = vld [vmem:[#allocation9 + $0xac] sm:$0xf]
    %v4541 = vld [vmem:[#allocation9 + $0xb0] sm:$0xf]
    %v4542 = vld [vmem:[#allocation9 + $0xb4] sm:$0xf]
    %v4543 = vld [vmem:[#allocation9 + $0xb8] sm:$0xf]
    %v4544 = vld [vmem:[#allocation9 + $0xbc] sm:$0xf]
    %v4545 = vld [vmem:[#allocation9 + $0xc0] sm:$0xf]
    %v4546 = vld [vmem:[#allocation9 + $0xc4] sm:$0xf]
    %v4547 = vld [vmem:[#allocation9 + $0xc8] sm:$0xf]
    %v4548 = vld [vmem:[#allocation9 + $0xcc] sm:$0xf]
    %v4549 = vld [vmem:[#allocation9 + $0xd0] sm:$0xf]
    %v4550 = vld [vmem:[#allocation9 + $0xd4] sm:$0xf]
    %v4551 = vld [vmem:[#allocation9 + $0xd8] sm:$0xf]
    %v4552 = vld [vmem:[#allocation9 + $0xdc] sm:$0xf]
    %v4553 = vld [vmem:[#allocation9 + $0xe0] sm:$0xf]
    %v4554 = vld [vmem:[#allocation9 + $0xe4] sm:$0xf]
    %v4555 = vld [vmem:[#allocation9 + $0xe8] sm:$0xf]
    %v4556 = vld [vmem:[#allocation9 + $0xec] sm:$0xf]
    %v4557 = vld [vmem:[#allocation9 + $0xf0] sm:$0xf]
    %v4558 = vld [vmem:[#allocation9 + $0xf4] sm:$0xf]
    %v4559 = vld [vmem:[#allocation9 + $0xf8] sm:$0xf]
    %v4560 = vld [vmem:[#allocation9 + $0xfc] sm:$0xf]
    %v4561 = vld [vmem:[#allocation9 + $0x100] sm:$0xf]
    %v4562 = vld [vmem:[#allocation9 + $0x104] sm:$0xf]
    %v4563 = vld [vmem:[#allocation9 + $0x108] sm:$0xf]
    %v4564 = vld [vmem:[#allocation9 + $0x10c] sm:$0xf]
    %v4565 = vld [vmem:[#allocation9 + $0x110] sm:$0xf]
    %v4566 = vld [vmem:[#allocation9 + $0x114] sm:$0xf]
    %v4567 = vld [vmem:[#allocation9 + $0x118] sm:$0xf]
    %v4568 = vld [vmem:[#allocation9 + $0x11c] sm:$0xf]
    %v4569 = vld [vmem:[#allocation9 + $0x120] sm:$0xf]
    %v4570 = vld [vmem:[#allocation9 + $0x124] sm:$0xf]
    %v4571 = vld [vmem:[#allocation9 + $0x128] sm:$0xf]
    %v4572 = vld [vmem:[#allocation9 + $0x12c] sm:$0xf]
    %v4573 = vld [vmem:[#allocation9 + $0x130] sm:$0xf]
    %v4574 = vld [vmem:[#allocation9 + $0x134] sm:$0xf]
    %v4575 = vld [vmem:[#allocation9 + $0x138] sm:$0xf]
    %v4576 = vld [vmem:[#allocation9 + $0x13c] sm:$0xf]
    %v4577 = vld [vmem:[#allocation9 + $0x140] sm:$0xf]
    %v4578 = vld [vmem:[#allocation9 + $0x144] sm:$0xf]
    %v4579 = vld [vmem:[#allocation9 + $0x148] sm:$0xf]
    %v4580 = vld [vmem:[#allocation9 + $0x14c] sm:$0xf]
    %v4581 = vld [vmem:[#allocation9 + $0x150] sm:$0xf]
    %v4582 = vld [vmem:[#allocation9 + $0x154] sm:$0xf]
    %v4583 = vld [vmem:[#allocation9 + $0x158] sm:$0xf]
    %v4584 = vld [vmem:[#allocation9 + $0x15c] sm:$0xf]
    %v4585 = vld [vmem:[#allocation9 + $0x160] sm:$0xf]
    %v4586 = vld [vmem:[#allocation9 + $0x164] sm:$0xf]
    %v4587 = vld [vmem:[#allocation9 + $0x168] sm:$0xf]
    %v4588 = vld [vmem:[#allocation9 + $0x16c] sm:$0xf]
    %v4589 = vld [vmem:[#allocation9 + $0x170] sm:$0xf]
    %v4590 = vld [vmem:[#allocation9 + $0x174] sm:$0xf]
    %v4591 = vld [vmem:[#allocation9 + $0x178] sm:$0xf]
    %v4592 = vld [vmem:[#allocation9 + $0x17c] sm:$0xf]
    %v4593 = vld [vmem:[#allocation9 + $0x180] sm:$0xf]
    %v4594 = vld [vmem:[#allocation9 + $0x184] sm:$0xf]
    %v4595 = vld [vmem:[#allocation9 + $0x188] sm:$0xf]
    %v4596 = vld [vmem:[#allocation9 + $0x18c] sm:$0xf]
    %v4597 = vld [vmem:[#allocation9 + $0x190] sm:$0xf]
    %v4598 = vld [vmem:[#allocation9 + $0x194] sm:$0xf]
    %v4599 = vld [vmem:[#allocation9 + $0x198] sm:$0xf]
    %v4600 = vld [vmem:[#allocation9 + $0x19c] sm:$0xf]
    %v4601 = vld [vmem:[#allocation9 + $0x1a0] sm:$0xf]
    %v4602 = vld [vmem:[#allocation9 + $0x1a4] sm:$0xf]
    %v4603 = vld [vmem:[#allocation9 + $0x1a8] sm:$0xf]
    %v4604 = vld [vmem:[#allocation9 + $0x1ac] sm:$0xf]
    %v4605 = vld [vmem:[#allocation9 + $0x1b0] sm:$0xf]
    %v4606 = vld [vmem:[#allocation9 + $0x1b4] sm:$0xf]
    %v4607 = vld [vmem:[#allocation9 + $0x1b8] sm:$0xf]
    %v4608 = vld [vmem:[#allocation9 + $0x1bc] sm:$0xf]
    %v4609 = vld [vmem:[#allocation9 + $0x1c0] sm:$0xf]
    %v4610 = vld [vmem:[#allocation9 + $0x1c4] sm:$0xf]
    %v4611 = vld [vmem:[#allocation9 + $0x1c8] sm:$0xf]
    %v4612 = vld [vmem:[#allocation9 + $0x1cc] sm:$0xf]
    %v4613 = vld [vmem:[#allocation9 + $0x1d0] sm:$0xf]
    %v4614 = vld [vmem:[#allocation9 + $0x1d4] sm:$0xf]
    %v4615 = vld [vmem:[#allocation9 + $0x1d8] sm:$0xf]
    %v4616 = vld [vmem:[#allocation9 + $0x1dc] sm:$0xf]
    %v4617 = vld [vmem:[#allocation9 + $0x1e0] sm:$0xf]
    %v4618 = vld [vmem:[#allocation9 + $0x1e4] sm:$0xf]
    %v4619 = vld [vmem:[#allocation9 + $0x1e8] sm:$0xf]
    %v4620 = vld [vmem:[#allocation9 + $0x1ec] sm:$0xf]
    %v4621 = vld [vmem:[#allocation9 + $0x1f0] sm:$0xf]
    %v4622 = vld [vmem:[#allocation9 + $0x1f4] sm:$0xf]
    %v4623 = vld [vmem:[#allocation9 + $0x1f8] sm:$0xf]
    %v4624 = vld [vmem:[#allocation9 + $0x1fc] sm:$0xf]
    %v4625 = vld [vmem:[#allocation10] sm:$0x1]
    %v4627 = vlaneseq
    %v4628 = vshrl.u32 %v4627, 7
    %v4629 = vsub.s32 0, %v4628
    %v4630 = vrot.slane %v4625, %v4629
    %v4760 = vunpack.c.l.b16 %v4497
    %v4761 = vunpack.c.l.b16 %v4498
    %v4762 = vunpack.c.l.b16 %v4499
    %v4763 = vunpack.c.l.b16 %v4500
    %v4764 = vunpack.c.l.b16 %v4501
    %v4765 = vunpack.c.l.b16 %v4502
    %v4766 = vunpack.c.l.b16 %v4503
    %v4767 = vunpack.c.l.b16 %v4504
    %v4768 = vunpack.c.l.b16 %v4505
    %v4769 = vunpack.c.l.b16 %v4506
    %v4770 = vunpack.c.l.b16 %v4507
    %v4771 = vunpack.c.l.b16 %v4508
    %v4772 = vunpack.c.l.b16 %v4509
    %v4773 = vunpack.c.l.b16 %v4510
    %v4774 = vunpack.c.l.b16 %v4511
    %v4775 = vunpack.c.l.b16 %v4512
    %v4776 = vunpack.c.l.b16 %v4513
    %v4777 = vunpack.c.l.b16 %v4514
    %v4778 = vunpack.c.l.b16 %v4515
    %v4779 = vunpack.c.l.b16 %v4516
    %v4780 = vunpack.c.l.b16 %v4517
    %v4781 = vunpack.c.l.b16 %v4518
    %v4782 = vunpack.c.l.b16 %v4519
    %v4783 = vunpack.c.l.b16 %v4520
    %v4784 = vunpack.c.l.b16 %v4521
    %v4785 = vunpack.c.l.b16 %v4522
    %v4786 = vunpack.c.l.b16 %v4523
    %v4787 = vunpack.c.l.b16 %v4524
    %v4788 = vunpack.c.l.b16 %v4525
    %v4789 = vunpack.c.l.b16 %v4526
    %v4790 = vunpack.c.l.b16 %v4527
    %v4791 = vunpack.c.l.b16 %v4528
    %v4792 = vunpack.c.l.b16 %v4529
    %v4793 = vunpack.c.l.b16 %v4530
    %v4794 = vunpack.c.l.b16 %v4531
    %v4795 = vunpack.c.l.b16 %v4532
    %v4796 = vunpack.c.l.b16 %v4533
    %v4797 = vunpack.c.l.b16 %v4534
    %v4798 = vunpack.c.l.b16 %v4535
    %v4799 = vunpack.c.l.b16 %v4536
    %v4800 = vunpack.c.l.b16 %v4537
    %v4801 = vunpack.c.l.b16 %v4538
    %v4802 = vunpack.c.l.b16 %v4539
    %v4803 = vunpack.c.l.b16 %v4540
    %v4804 = vunpack.c.l.b16 %v4541
    %v4805 = vunpack.c.l.b16 %v4542
    %v4806 = vunpack.c.l.b16 %v4543
    %v4807 = vunpack.c.l.b16 %v4544
    %v4808 = vunpack.c.l.b16 %v4545
    %v4809 = vunpack.c.l.b16 %v4546
    %v4810 = vunpack.c.l.b16 %v4547
    %v4811 = vunpack.c.l.b16 %v4548
    %v4812 = vunpack.c.l.b16 %v4549
    %v4813 = vunpack.c.l.b16 %v4550
    %v4814 = vunpack.c.l.b16 %v4551
    %v4815 = vunpack.c.l.b16 %v4552
    %v4816 = vunpack.c.l.b16 %v4553
    %v4817 = vunpack.c.l.b16 %v4554
    %v4818 = vunpack.c.l.b16 %v4555
    %v4819 = vunpack.c.l.b16 %v4556
    %v4820 = vunpack.c.l.b16 %v4557
    %v4821 = vunpack.c.l.b16 %v4558
    %v4822 = vunpack.c.l.b16 %v4559
    %v4823 = vunpack.c.l.b16 %v4560
    %v4824 = vunpack.c.l.b16 %v4561
    %v4825 = vunpack.c.l.b16 %v4562
    %v4826 = vunpack.c.l.b16 %v4563
    %v4827 = vunpack.c.l.b16 %v4564
    %v4828 = vunpack.c.l.b16 %v4565
    %v4829 = vunpack.c.l.b16 %v4566
    %v4830 = vunpack.c.l.b16 %v4567
    %v4831 = vunpack.c.l.b16 %v4568
    %v4832 = vunpack.c.l.b16 %v4569
    %v4833 = vunpack.c.l.b16 %v4570
    %v4834 = vunpack.c.l.b16 %v4571
    %v4835 = vunpack.c.l.b16 %v4572
    %v4836 = vunpack.c.l.b16 %v4573
    %v4837 = vunpack.c.l.b16 %v4574
    %v4838 = vunpack.c.l.b16 %v4575
    %v4839 = vunpack.c.l.b16 %v4576
    %v4840 = vunpack.c.l.b16 %v4577
    %v4841 = vunpack.c.l.b16 %v4578
    %v4842 = vunpack.c.l.b16 %v4579
    %v4843 = vunpack.c.l.b16 %v4580
    %v4844 = vunpack.c.l.b16 %v4581
    %v4845 = vunpack.c.l.b16 %v4582
    %v4846 = vunpack.c.l.b16 %v4583
    %v4847 = vunpack.c.l.b16 %v4584
    %v4848 = vunpack.c.l.b16 %v4585
    %v4849 = vunpack.c.l.b16 %v4586
    %v4850 = vunpack.c.l.b16 %v4587
    %v4851 = vunpack.c.l.b16 %v4588
    %v4852 = vunpack.c.l.b16 %v4589
    %v4853 = vunpack.c.l.b16 %v4590
    %v4854 = vunpack.c.l.b16 %v4591
    %v4855 = vunpack.c.l.b16 %v4592
    %v4856 = vunpack.c.l.b16 %v4593
    %v4857 = vunpack.c.l.b16 %v4594
    %v4858 = vunpack.c.l.b16 %v4595
    %v4859 = vunpack.c.l.b16 %v4596
    %v4860 = vunpack.c.l.b16 %v4597
    %v4861 = vunpack.c.l.b16 %v4598
    %v4862 = vunpack.c.l.b16 %v4599
    %v4863 = vunpack.c.l.b16 %v4600
    %v4864 = vunpack.c.l.b16 %v4601
    %v4865 = vunpack.c.l.b16 %v4602
    %v4866 = vunpack.c.l.b16 %v4603
    %v4867 = vunpack.c.l.b16 %v4604
    %v4868 = vunpack.c.l.b16 %v4605
    %v4869 = vunpack.c.l.b16 %v4606
    %v4870 = vunpack.c.l.b16 %v4607
    %v4871 = vunpack.c.l.b16 %v4608
    %v4872 = vunpack.c.l.b16 %v4609
    %v4873 = vunpack.c.l.b16 %v4610
    %v4874 = vunpack.c.l.b16 %v4611
    %v4875 = vunpack.c.l.b16 %v4612
    %v4876 = vunpack.c.l.b16 %v4613
    %v4877 = vunpack.c.l.b16 %v4614
    %v4878 = vunpack.c.l.b16 %v4615
    %v4879 = vunpack.c.l.b16 %v4616
    %v4880 = vunpack.c.l.b16 %v4617
    %v4881 = vunpack.c.l.b16 %v4618
    %v4882 = vunpack.c.l.b16 %v4619
    %v4883 = vunpack.c.l.b16 %v4620
    %v4884 = vunpack.c.l.b16 %v4621
    %v4885 = vunpack.c.l.b16 %v4622
    %v4886 = vunpack.c.l.b16 %v4623
    %v4887 = vunpack.c.l.b16 %v4624
    %v4888 = vpack.c.b16 %v4761, %v4760
    %v4889 = vpack.c.b16 %v4763, %v4762
    %v4890 = vpack.c.b16 %v4765, %v4764
    %v4891 = vpack.c.b16 %v4767, %v4766
    %v4892 = vpack.c.b16 %v4769, %v4768
    %v4893 = vpack.c.b16 %v4771, %v4770
    %v4894 = vpack.c.b16 %v4773, %v4772
    %v4895 = vpack.c.b16 %v4775, %v4774
    %v4896 = vpack.c.b16 %v4777, %v4776
    %v4897 = vpack.c.b16 %v4779, %v4778
    %v4898 = vpack.c.b16 %v4781, %v4780
    %v4899 = vpack.c.b16 %v4783, %v4782
    %v4900 = vpack.c.b16 %v4785, %v4784
    %v4901 = vpack.c.b16 %v4787, %v4786
    %v4902 = vpack.c.b16 %v4789, %v4788
    %v4903 = vpack.c.b16 %v4791, %v4790
    %v4904 = vpack.c.b16 %v4793, %v4792
    %v4905 = vpack.c.b16 %v4795, %v4794
    %v4906 = vpack.c.b16 %v4797, %v4796
    %v4907 = vpack.c.b16 %v4799, %v4798
    %v4908 = vpack.c.b16 %v4801, %v4800
    %v4909 = vpack.c.b16 %v4803, %v4802
    %v4910 = vpack.c.b16 %v4805, %v4804
    %v4911 = vpack.c.b16 %v4807, %v4806
    %v4912 = vpack.c.b16 %v4809, %v4808
    %v4913 = vpack.c.b16 %v4811, %v4810
    %v4914 = vpack.c.b16 %v4813, %v4812
    %v4915 = vpack.c.b16 %v4815, %v4814
    %v4916 = vpack.c.b16 %v4817, %v4816
    %v4917 = vpack.c.b16 %v4819, %v4818
    %v4918 = vpack.c.b16 %v4821, %v4820
    %v4919 = vpack.c.b16 %v4823, %v4822
    %v4920 = vpack.c.b16 %v4825, %v4824
    %v4921 = vpack.c.b16 %v4827, %v4826
    %v4922 = vpack.c.b16 %v4829, %v4828
    %v4923 = vpack.c.b16 %v4831, %v4830
    %v4924 = vpack.c.b16 %v4833, %v4832
    %v4925 = vpack.c.b16 %v4835, %v4834
    %v4926 = vpack.c.b16 %v4837, %v4836
    %v4927 = vpack.c.b16 %v4839, %v4838
    %v4928 = vpack.c.b16 %v4841, %v4840
    %v4929 = vpack.c.b16 %v4843, %v4842
    %v4930 = vpack.c.b16 %v4845, %v4844
    %v4931 = vpack.c.b16 %v4847, %v4846
    %v4932 = vpack.c.b16 %v4849, %v4848
    %v4933 = vpack.c.b16 %v4851, %v4850
    %v4934 = vpack.c.b16 %v4853, %v4852
    %v4935 = vpack.c.b16 %v4855, %v4854
    %v4936 = vpack.c.b16 %v4857, %v4856
    %v4937 = vpack.c.b16 %v4859, %v4858
    %v4938 = vpack.c.b16 %v4861, %v4860
    %v4939 = vpack.c.b16 %v4863, %v4862
    %v4940 = vpack.c.b16 %v4865, %v4864
    %v4941 = vpack.c.b16 %v4867, %v4866
    %v4942 = vpack.c.b16 %v4869, %v4868
    %v4943 = vpack.c.b16 %v4871, %v4870
    %v4944 = vpack.c.b16 %v4873, %v4872
    %v4945 = vpack.c.b16 %v4875, %v4874
    %v4946 = vpack.c.b16 %v4877, %v4876
    %v4947 = vpack.c.b16 %v4879, %v4878
    %v4948 = vpack.c.b16 %v4881, %v4880
    %v4949 = vpack.c.b16 %v4883, %v4882
    %v4950 = vpack.c.b16 %v4885, %v4884
    %v4951 = vpack.c.b16 %v4887, %v4886
    %5016 = vmatprep.subr.bf16.mxu0 0
    %5017 = vmatpush1.bf16.msra.mxu0 %v4888
    %5018 = vmatprep.subr.bf16.mxu0 0
    %5019 = vmatpush1.bf16.msra.mxu0 %v4889
    %5020 = vmatprep.subr.bf16.mxu0 0
    %5021 = vmatpush1.bf16.msra.mxu0 %v4890
    %5022 = vmatprep.subr.bf16.mxu0 0
    %5023 = vmatpush1.bf16.msra.mxu0 %v4891
    %5024 = vmatprep.subr.bf16.mxu0 0
    %5025 = vmatpush1.bf16.msra.mxu0 %v4892
    %5026 = vmatprep.subr.bf16.mxu0 0
    %5027 = vmatpush1.bf16.msra.mxu0 %v4893
    %5028 = vmatprep.subr.bf16.mxu0 0
    %5029 = vmatpush1.bf16.msra.mxu0 %v4894
    %5030 = vmatprep.subr.bf16.mxu0 0
    %5031 = vmatpush1.bf16.msra.mxu0 %v4895
    %5032 = vmatprep.subr.bf16.mxu0 0
    %5033 = vmatpush1.bf16.msra.mxu0 %v4896
    %5034 = vmatprep.subr.bf16.mxu0 0
    %5035 = vmatpush1.bf16.msra.mxu0 %v4897
    %5036 = vmatprep.subr.bf16.mxu0 0
    %5037 = vmatpush1.bf16.msra.mxu0 %v4898
    %5038 = vmatprep.subr.bf16.mxu0 0
    %5039 = vmatpush1.bf16.msra.mxu0 %v4899
    %5040 = vmatprep.subr.bf16.mxu0 0
    %5041 = vmatpush1.bf16.msra.mxu0 %v4900
    %5042 = vmatprep.subr.bf16.mxu0 0
    %5043 = vmatpush1.bf16.msra.mxu0 %v4901
    %5044 = vmatprep.subr.bf16.mxu0 0
    %5045 = vmatpush1.bf16.msra.mxu0 %v4902
    %5046 = vmatprep.subr.bf16.mxu0 0
    %5047 = vmatpush1.bf16.msra.mxu0 %v4903
    %5048 = vmatprep.mubr.bf16.mxu0 %v4490
    %5049 = vmatmul.mubr.bf16.gmra.mrb[0].mxu0 %v4489
    %v5050 = vpop.f32.mrb[0].mxu0
    %v5051 = vadd.f32 %v4630, %v5050
    %v5052 = vpop.f32.mrb[0].mxu0
    %v5053 = vpop.f32.mrb[0].mxu0
    %v5054 = vpop.f32.mrb[0].mxu0
    %5055 = vdwg.mxu0
    %5056 = vmatprep.subr.bf16.mxu0 0
    %5057 = vmatpush1.bf16.msra.mxu0 %v4904
    %5058 = vmatprep.subr.bf16.mxu0 0
    %5059 = vmatpush1.bf16.msra.mxu0 %v4905
    %5060 = vmatprep.subr.bf16.mxu0 0
    %5061 = vmatpush1.bf16.msra.mxu0 %v4906
    %5062 = vmatprep.subr.bf16.mxu0 0
    %5063 = vmatpush1.bf16.msra.mxu0 %v4907
    %5064 = vmatprep.subr.bf16.mxu0 0
    %5065 = vmatpush1.bf16.msra.mxu0 %v4908
    %5066 = vmatprep.subr.bf16.mxu0 0
    %5067 = vmatpush1.bf16.msra.mxu0 %v4909
    %5068 = vmatprep.subr.bf16.mxu0 0
    %5069 = vmatpush1.bf16.msra.mxu0 %v4910
    %5070 = vmatprep.subr.bf16.mxu0 0
    %5071 = vmatpush1.bf16.msra.mxu0 %v4911
    %5072 = vmatprep.subr.bf16.mxu0 0
    %5073 = vmatpush1.bf16.msra.mxu0 %v4912
    %5074 = vmatprep.subr.bf16.mxu0 0
    %5075 = vmatpush1.bf16.msra.mxu0 %v4913
    %5076 = vmatprep.subr.bf16.mxu0 0
    %5077 = vmatpush1.bf16.msra.mxu0 %v4914
    %5078 = vmatprep.subr.bf16.mxu0 0
    %5079 = vmatpush1.bf16.msra.mxu0 %v4915
    %5080 = vmatprep.subr.bf16.mxu0 0
    %5081 = vmatpush1.bf16.msra.mxu0 %v4916
    %5082 = vmatprep.subr.bf16.mxu0 0
    %5083 = vmatpush1.bf16.msra.mxu0 %v4917
    %5084 = vmatprep.subr.bf16.mxu0 0
    %5085 = vmatpush1.bf16.msra.mxu0 %v4918
    %5086 = vmatprep.subr.bf16.mxu0 0
    %5087 = vmatpush1.bf16.msra.mxu0 %v4919
    %5088 = vmatprep.mubr.bf16.mxu0 %v4492
    %5089 = vmatmul.mubr.bf16.gmra.mrb[0].mxu0 %v4491
    %v5090 = vpop.f32.mrb[0].mxu0
    %v5091 = vadd.f32 %v5051, %v5090
    %v5092 = vpop.f32.mrb[0].mxu0
    %v5093 = vpop.f32.mrb[0].mxu0
    %v5094 = vpop.f32.mrb[0].mxu0
    %5095 = vdwg.mxu0
    %5096 = vmatprep.subr.bf16.mxu0 0
    %5097 = vmatpush1.bf16.msra.mxu0 %v4920
    %5098 = vmatprep.subr.bf16.mxu0 0
    %5099 = vmatpush1.bf16.msra.mxu0 %v4921
    %5100 = vmatprep.subr.bf16.mxu0 0
    %5101 = vmatpush1.bf16.msra.mxu0 %v4922
    %5102 = vmatprep.subr.bf16.mxu0 0
    %5103 = vmatpush1.bf16.msra.mxu0 %v4923
    %5104 = vmatprep.subr.bf16.mxu0 0
    %5105 = vmatpush1.bf16.msra.mxu0 %v4924
    %5106 = vmatprep.subr.bf16.mxu0 0
    %5107 = vmatpush1.bf16.msra.mxu0 %v4925
    %5108 = vmatprep.subr.bf16.mxu0 0
    %5109 = vmatpush1.bf16.msra.mxu0 %v4926
    %5110 = vmatprep.subr.bf16.mxu0 0
    %5111 = vmatpush1.bf16.msra.mxu0 %v4927
    %5112 = vmatprep.subr.bf16.mxu0 0
    %5113 = vmatpush1.bf16.msra.mxu0 %v4928
    %5114 = vmatprep.subr.bf16.mxu0 0
    %5115 = vmatpush1.bf16.msra.mxu0 %v4929
    %5116 = vmatprep.subr.bf16.mxu0 0
    %5117 = vmatpush1.bf16.msra.mxu0 %v4930
    %5118 = vmatprep.subr.bf16.mxu0 0
    %5119 = vmatpush1.bf16.msra.mxu0 %v4931
    %5120 = vmatprep.subr.bf16.mxu0 0
    %5121 = vmatpush1.bf16.msra.mxu0 %v4932
    %5122 = vmatprep.subr.bf16.mxu0 0
    %5123 = vmatpush1.bf16.msra.mxu0 %v4933
    %5124 = vmatprep.subr.bf16.mxu0 0
    %5125 = vmatpush1.bf16.msra.mxu0 %v4934
    %5126 = vmatprep.subr.bf16.mxu0 0
    %5127 = vmatpush1.bf16.msra.mxu0 %v4935
    %5128 = vmatprep.mubr.bf16.mxu0 %v4494
    %5129 = vmatmul.mubr.bf16.gmra.mrb[0].mxu0 %v4493
    %v5130 = vpop.f32.mrb[0].mxu0
    %v5131 = vadd.f32 %v5091, %v5130
    %v5132 = vpop.f32.mrb[0].mxu0
    %v5133 = vpop.f32.mrb[0].mxu0
    %v5134 = vpop.f32.mrb[0].mxu0
    %5135 = vdwg.mxu0
    %5136 = vmatprep.subr.bf16.mxu0 0
    %5137 = vmatpush1.bf16.msra.mxu0 %v4936
    %5138 = vmatprep.subr.bf16.mxu0 0
    %5139 = vmatpush1.bf16.msra.mxu0 %v4937
    %5140 = vmatprep.subr.bf16.mxu0 0
    %5141 = vmatpush1.bf16.msra.mxu0 %v4938
    %5142 = vmatprep.subr.bf16.mxu0 0
    %5143 = vmatpush1.bf16.msra.mxu0 %v4939
    %5144 = vmatprep.subr.bf16.mxu0 0
    %5145 = vmatpush1.bf16.msra.mxu0 %v4940
    %5146 = vmatprep.subr.bf16.mxu0 0
    %5147 = vmatpush1.bf16.msra.mxu0 %v4941
    %5148 = vmatprep.subr.bf16.mxu0 0
    %5149 = vmatpush1.bf16.msra.mxu0 %v4942
    %5150 = vmatprep.subr.bf16.mxu0 0
    %5151 = vmatpush1.bf16.msra.mxu0 %v4943
    %5152 = vmatprep.subr.bf16.mxu0 0
    %5153 = vmatpush1.bf16.msra.mxu0 %v4944
    %5154 = vmatprep.subr.bf16.mxu0 0
    %5155 = vmatpush1.bf16.msra.mxu0 %v4945
    %5156 = vmatprep.subr.bf16.mxu0 0
    %5157 = vmatpush1.bf16.msra.mxu0 %v4946
    %5158 = vmatprep.subr.bf16.mxu0 0
    %5159 = vmatpush1.bf16.msra.mxu0 %v4947
    %5160 = vmatprep.subr.bf16.mxu0 0
    %5161 = vmatpush1.bf16.msra.mxu0 %v4948
    %5162 = vmatprep.subr.bf16.mxu0 0
    %5163 = vmatpush1.bf16.msra.mxu0 %v4949
    %5164 = vmatprep.subr.bf16.mxu0 0
    %5165 = vmatpush1.bf16.msra.mxu0 %v4950
    %5166 = vmatprep.subr.bf16.mxu0 0
    %5167 = vmatpush1.bf16.msra.mxu0 %v4951
    %5168 = vmatprep.mubr.bf16.mxu0 %v4496
    %5169 = vmatmul.mubr.bf16.gmra.mrb[0].mxu0 %v4495
    %v5170 = vpop.f32.mrb[0].mxu0
    %v5171 = vadd.f32 %v5131, %v5170
    %v5172 = vpop.f32.mrb[0].mxu0
    %v5173 = vpop.f32.mrb[0].mxu0
    %v5174 = vpop.f32.mrb[0].mxu0
    %5175 = vdwg.mxu0
    %v5176 = vlaneseq
    %v5177 = vand.u32 %v5176, 127
    %vm5178 = vcmp.ge.s32.totalorder %v5177, 10
    %vm5179 = vcmp.lt.s32.totalorder %v5177, 12
    %vm5180 = vmand %vm5178, %vm5179
    %5181 = vrot.lane.b32.xlu0 %v5171, 127
    %v5182 = vpop.permute.xlu0 %5181
    %5183 = vrot.lane.b32.xlu0 %v5171, 1
    %v5184 = vpop.permute.xlu0 %5183
    %vm5185 = vcmp.eq.s32.totalorder %v5177, 10
    %v5186 = vsel %vm5185, %v5182, %v5184
    %v5187 = vsub.f32 %v5171, %v5186
    %v5188 = vsel %vm5180, %v5187, 0.0
    %v5189 = vsub.f32 0.0, %v5188
    %v5190 = vmul.f32 %v5189, 1.442695
    %v5191 = vpow.pop %v5190
    %v5192 = vadd.f32 %v5191, 1.0
    %v5193 = vrcp.pop %v5192
    %v5194 = vmul.f32 1.0, %v5193
    %v5195 = vsel %vm5180, %v5194, %v5171
    %5196 = vst [vmem:[%s7] sm:$0xff] %v5195
    // Predicated region
    $region54: #{encoder_forward.1} parent=1 // pred_check
      _
    $region55: #{encoder_forward.1} parent=1 // pred_check_branch
      %5198 = sbr.rel (0) target = $region57
    $region56: #{encoder_forward.1} parent=1 // pred_region
      _
    $region57: #{encoder_forward.1} parent=1 // pred_fallthru
      _
    // Predicated region
    $region58: #{encoder_forward.1} parent=1 // pred_check
      _
    $region59: #{encoder_forward.1} parent=1 // pred_check_branch
      %5200 = sbr.rel (0) target = $region61
    $region60: #{encoder_forward.1} parent=1 // pred_region
      _
    $region61: #{encoder_forward.1} parent=1 // pred_fallthru
      _
    %5201 = vsyncpa [#allocation3], 1
    %5202 = vsyncpa [#allocation5], 1
    %5203 = vsyncpa [#allocation8], 1
    %5204 = vsyncpa [#allocation11], 1

</llo_original>
